<compile_context>
chip_gen: v5e
topology: v5e:2x2
jax: 0.10.0
libtpu: 0.0.40
codegen_flags: <defaults>
</compile_context>

<pallas_src>
import jax
import jax.numpy as jnp
from jax import lax
from jax.experimental import pallas as pl
from jax.experimental.pallas import tpu as pltpu

# ---------------- scaled-down configuration (structure identical to reference) ------------
BATCH = 2
C_IN = 4                  # input image channels
H_IN = W_IN = 16          # input image spatial
KBB = 3                   # stand-in backbone conv kernel (valid conv, stride 1)
H_F = H_IN - KBB + 1      # 14  backbone feature spatial
C_FEAT = 128              # backbone channels = NUM_PC_CAPS * DIM_PC_CAPS   (orig 1280)
KPC = 8                   # PrimaryCaps depthwise conv kernel               (same as ref)
S = H_F - KPC + 1         # 7   seq_len                                     (same as ref)
NUM_PC_CAPS = 16          # primary capsules                                (orig 64)
DIM_PC_CAPS = 8           # primary capsule dim                             (orig 20)
NUM_CAPS = 2              # digit capsules                                  (same as ref)
DIM_CAPS = 16             # digit capsule dim                               (orig 50)
I_HEADS = 8               # attention heads I                               (same as ref)

LANES = NUM_PC_CAPS * I_HEADS   # 128 : routing lane layout, lane = p * I_HEADS + i
ND = NUM_CAPS * DIM_CAPS        # 32  : (n, d) rows of the routing tensors
M = S * S                       # 49  : spatial positions
PATCH_COLS = KBB * KBB * C_IN   # 36  : im2col columns
CHUNKS = S                      # routing processed one spatial row (7 positions) at a time
HALF = S * S * DIM_CAPS         # 784 : elements per digit capsule under torch's .view(B,N,-1)


# ---------------------------------- fused Pallas kernel -----------------------------------
# TODO(synk): PartialDenseNet (pretrained DenseNet169 prefix up to `transition3`) has no
# clean in-script Pallas equivalent (32+ pretrained layers); it is replaced by a single
# deterministic 3x3 valid conv that produces the feature map the capsule head expects.
def fused_capsnet_kernel(patch_ref, wbb_ref, wpc_ref, bpc_ref, g8_ref, q_ref, td_ref,
                         p8_ref, g16_ref, xout_ref, xprime_ref, feat_ref, sv_ref):
    """One batch element end-to-end.
       patch_ref : (1, H_F*H_F, PATCH_COLS)   im2col patch matrix (built in the wrapper)
       wbb_ref   : (PATCH_COLS, C_FEAT)       im2col backbone weights
       wpc_ref   : (KPC, KPC, C_FEAT)         depthwise conv filters
       bpc_ref   : (1, C_FEAT)                depthwise conv bias
       g8_ref    : (C_FEAT, C_FEAT)           0/1 block-diag (8-groups) segment-sum matrix
       q_ref     : (ND, LANES)                sum_h(W1) * W_affine  laid out (n*D+d, p*I+i)
       td_ref    : (ND, LANES)                (W_t - max_p W_t) / sqrt(D), same layout
       p8_ref    : (LANES, LANES)             0/1 "same head i" (stride-8) segment-sum matrix
       g16_ref   : (ND, ND)                   0/1 block-diag (16-groups) segment-sum matrix
       xout_ref  : (CHUNKS, S, ND)  xprime_ref: (1, 1, NUM_CAPS)
       feat_ref, sv_ref : VMEM scratch."""

    # ---- backbone conv: (196, 36) @ (36, 128) on the MXU (im2col done in the wrapper) ----
    feat = jnp.dot(patch_ref[0], wbb_ref[...], preferred_element_type=jnp.float32)  # (196,128)
    feat_ref[...] = feat.reshape(H_F, H_F, C_FEAT)

    # ---- PrimaryCaps: depthwise KPCxKPC conv + bias ---------------------------------------
    # b outer / a inner: only KPC sublane-crossing slices of feat_ref (hoisted); the inner
    # slice is on the outermost dim of the value (free whole-tile selection).
    acc = jnp.zeros((S, S, C_FEAT), jnp.float32)
    for b in range(KPC):
        fb = feat_ref[:, b:b + S, :]                          # (H_F, S, C_FEAT), one slice per b
        for a in range(KPC):
            acc = acc + fb[a:a + S] * wpc_ref[a, b]           # per-channel (depthwise) filter
    x7 = acc + bpc_ref[0]                                     # (S, S, C_FEAT)

    # ---- lateral inhibition: r=2 -> channel shifts {-1,0,+1}, a=1, k=3e-5 (circular,
    #      exactly like torch.roll over the channel dim) ------------------------------------
    xm = jnp.mean(x7, axis=-1, keepdims=True)
    den = jnp.abs(x7 - xm) + 3e-05
    den = den + jnp.abs(pltpu.roll(x7, shift=1, axis=2) - xm)
    den = den + jnp.abs(pltpu.roll(x7, shift=C_FEAT - 1, axis=2) - xm)
    pc = x7 * pl.reciprocal(den, approx=True)                 # den >= 3e-5 -> safe
    pcf = pc.reshape(M, C_FEAT)                               # channel c = p*8 + d

    # ---- PrimaryCaps.squash over the capsule dim (8-lane groups, via MXU segment sums) ----
    g8 = g8_ref[...]
    ss = jnp.dot(pcf * pcf, g8, preferred_element_type=jnp.float32)  # ||.||^2 per capsule, bcast
    rs = lax.rsqrt(ss + 1e-12)                                # no inf even for ~0 norms
    norm = ss * rs                                            # == sqrt(ss)
    coef = 1.0 - jnp.exp(-norm)                               # == 1 - 1/exp(norm)
    v = coef * rs * pcf                                       # squashed primary caps
    sv = jnp.dot(v, g8, preferred_element_type=jnp.float32)   # sum_d v, bcast per group
    # sv[m, p*8 + i] == sum_d v[m, p, d]  -> already in the routing lane layout (p*I + i).
    sv_ref[...] = sv.reshape(CHUNKS, S, LANES)                # one aligned (S,128) slab per row

    # ---- DigitCapsP1 + MHSA + DigitCapsP2, chunked one spatial row at a time --------------
    q = q_ref[...]                                            # read once before the loop
    td = td_ref[...]
    p8 = p8_ref[...]
    g16 = g16_ref[...]

    def routing_row(c, carry):
        t0, t1 = carry
        svc = sv_ref[c]                                       # (S, LANES)
        # U_hat_I[m, (n,d), (p,i)] = sv[m,p] * (sum_h W1)[p,n,d] * W_affine[n,d,p,i]
        U = svc[:, None, :] * q[None, :, :]                   # (S, ND, LANES)
        # diag(U U^T) summed over p, bcast to every lane of its head: one MXU segment-sum
        d_raw = jnp.dot((U * U).reshape(S * ND, LANES), p8,
                        preferred_element_type=jnp.float32).reshape(S, ND, LANES)
        # softmax over p; max subtraction & 1/sqrt(D) folded into td (d_raw >= 0, td <= 0)
        E = jnp.exp(d_raw * td[None, :, :])
        Es = jnp.dot(E.reshape(S * ND, LANES), p8,
                     preferred_element_type=jnp.float32).reshape(S, ND, LANES)
        UC = U * E * pl.reciprocal(Es, approx=True)           # Es >= 1
        # DigitCapsP2: sum over (p, i) + bias (reference DigitCapsP2.bias = 1e-4; B is zero)
        s = jnp.sum(UC, axis=-1) + 1e-4                       # (S, ND)
        # DigitCapsP2.squash over dim_capsules (16-lane groups, via MXU segment sums)
        n2 = jnp.dot(s * s, g16, preferred_element_type=jnp.float32)
        v_out = (n2 * pl.reciprocal(1.0 + n2, approx=True)) * s * lax.rsqrt(n2 + 1e-12)
        xout_ref[c] = v_out                                   # aligned (S, ND) slab store
        # CapsLen accumulation over torch's .view(B, N, -1) row-major reinterpretation
        row = lax.broadcasted_iota(jnp.int32, (S, ND), 0)
        col = lax.broadcasted_iota(jnp.int32, (S, ND), 1)
        flat = (c * S + row) * ND + col
        v2 = v_out * v_out
        t0 = t0 + jnp.sum(jnp.where(flat < HALF, v2, 0.0))
        t1 = t1 + jnp.sum(jnp.where(flat >= HALF, v2, 0.0))
        return t0, t1

    t0, t1 = lax.fori_loop(0, CHUNKS, routing_row,
                           (jnp.zeros((), jnp.float32), jnp.zeros((), jnp.float32)))

    sel = lax.broadcasted_iota(jnp.int32, (1, NUM_CAPS), 1)
    xprime_ref[0] = jnp.sqrt(jnp.where(sel == 0, t0, t1) + 1e-10)    # CapsLen eps


# ---------------------------------- pallas_call wrapper -----------------------------------
def run_fused(patches, p):
    return pl.pallas_call(
        fused_capsnet_kernel,
        out_shape=(
            jax.ShapeDtypeStruct((BATCH, CHUNKS, S, ND), jnp.float32),
            jax.ShapeDtypeStruct((BATCH, 1, NUM_CAPS), jnp.float32),
        ),
        grid=(BATCH,),
        in_specs=[
            pl.BlockSpec((1, H_F * H_F, PATCH_COLS), lambda b: (b, 0, 0)),
            pl.BlockSpec((PATCH_COLS, C_FEAT), lambda b: (0, 0)),
            pl.BlockSpec((KPC, KPC, C_FEAT), lambda b: (0, 0, 0)),
            pl.BlockSpec((1, C_FEAT), lambda b: (0, 0)),
            pl.BlockSpec((C_FEAT, C_FEAT), lambda b: (0, 0)),
            pl.BlockSpec((ND, LANES), lambda b: (0, 0)),
            pl.BlockSpec((ND, LANES), lambda b: (0, 0)),
            pl.BlockSpec((LANES, LANES), lambda b: (0, 0)),
            pl.BlockSpec((ND, ND), lambda b: (0, 0)),
        ],
        out_specs=[
            pl.BlockSpec((None, CHUNKS, S, ND), lambda b: (b, 0, 0, 0)),   # batch dim squeezed
            pl.BlockSpec((1, 1, NUM_CAPS), lambda b: (b, 0, 0)),
        ],
        scratch_shapes=[
            pltpu.VMEM((H_F, H_F, C_FEAT), jnp.float32),    # backbone feature map
            pltpu.VMEM((CHUNKS, S, LANES), jnp.float32),    # sum_d(v), one slab per spatial row
        ],
        compiler_params=pltpu.CompilerParams(dimension_semantics=("parallel",)),
    )(patches, p["wbb_mat"], p["w_pc"], p["b_pc"], p["g8"], p["q_mat"], p["td_mat"],
      p["p8"], p["g16"])


# ---------------------------------- parameters & forward ----------------------------------
def init_params(key):
    ks = jax.random.split(key, 6)
    w_bb = 0.10 * jax.random.normal(ks[0], (KBB, KBB, C_IN, C_FEAT), jnp.float32)
    w_pc = 0.05 * jax.random.normal(ks[1], (KPC, KPC, C_FEAT), jnp.float32)     # depthwise filters
    b_pc = 0.01 * jax.random.normal(ks[2], (1, C_FEAT), jnp.float32)
    # DigitCapsP1.W : (1, in_caps, num_caps, in_dim, dim_caps)
    w1 = 0.10 * jax.random.normal(
        ks[3], (1, NUM_PC_CAPS, NUM_CAPS, DIM_PC_CAPS, DIM_CAPS), jnp.float32)
    # MHSA.W_t: (1, num_caps, dim_caps, in_caps, I); W_affine_other: (1,1,num_caps,dim_caps,in_caps,I)
    wt = 0.10 * jax.random.normal(ks[4], (1, NUM_CAPS, DIM_CAPS, NUM_PC_CAPS, I_HEADS), jnp.float32)
    wa = 0.10 * jax.random.normal(ks[5], (1, 1, NUM_CAPS, DIM_CAPS, NUM_PC_CAPS, I_HEADS), jnp.float32)

    p = {"w_pc": w_pc, "b_pc": b_pc}
    # im2col backbone weights, rows ordered (ki, kj, c) to match the wrapper's patch build.
    p["wbb_mat"] = w_bb.reshape(KBB * KBB * C_IN, C_FEAT)
    # DigitCapsP1 einsum 'abcde,abceghi->abcegi' factorises: sum over input_dim_capsules h.
    sw = jnp.sum(w1[0], axis=2)                                   # (NPC, N, D)
    q4 = jnp.transpose(sw, (1, 2, 0))[..., None] * wa[0, 0]       # (N, D, NPC, I) = sw * W_affine
    p["q_mat"] = q4.reshape(ND, LANES)                            # lane = p*I + i
    # softmax logits are diag * W_t with diag >= 0 -> fold max-subtraction and 1/sqrt(D) here.
    t4 = wt[0]                                                    # (N, D, NPC, I)
    td4 = (t4 - jnp.max(t4, axis=2, keepdims=True)) / jnp.sqrt(jnp.float32(DIM_CAPS))
    p["td_mat"] = td4.reshape(ND, LANES)
    # constant 0/1 matrices: exact segment sums (and broadcast) done on the MXU.
    c = jnp.arange(C_FEAT)
    p["g8"] = (c[:, None] // DIM_PC_CAPS == c[None, :] // DIM_PC_CAPS).astype(jnp.float32)
    l = jnp.arange(LANES)
    p["p8"] = (l[:, None] % I_HEADS == l[None, :] % I_HEADS).astype(jnp.float32)
    d = jnp.arange(ND)
    p["g16"] = (d[:, None] // DIM_CAPS == d[None, :] // DIM_CAPS).astype(jnp.float32)
    # DigitCapsP2.B is zero-initialised -> adding it to C is a no-op (kept implicit).
    return p


def _im2col_backbone(x_nhwc):
    """Layout plumbing only: valid 3x3 patches, columns ordered (ki, kj, c) row-major."""
    bsz = x_nhwc.shape[0]
    cols = []
    for ki in range(KBB):
        for kj in range(KBB):
            cols.append(x_nhwc[:, ki:ki + H_F, kj:kj + H_F, :].reshape(bsz, H_F * H_F, C_IN))
    return jnp.concatenate(cols, axis=-1)                         # (B, 196, 36)


def final_capsnet_forward(x_nchw, params):
    x_nhwc = jnp.transpose(x_nchw, (0, 2, 3, 1))                  # layout plumbing only
    patches = _im2col_backbone(x_nhwc)                            # (B, 196, 36)
    xout_raw, xprime_raw = run_fused(patches, params)             # (B, 7, 7, 32), (B, 1, 2)
    # matches torch: v.view(B*S*S, N, D) then .view(B, N, -1) (row-major reinterpretation)
    x_out = xout_raw.reshape(BATCH, NUM_CAPS, S * S * DIM_CAPS)
    x_prime = xprime_raw.reshape(BATCH, NUM_CAPS)
    # TODO(synk): CapsMask and ReconstructionNet are instantiated in the reference module but
    # their results are not part of forward()'s return value; omitted here.
    return x_out, x_prime


if __name__ == "__main__":
    key = jax.random.PRNGKey(0)
    k_x, k_p = jax.random.split(key)
    x = jax.random.normal(k_x, (BATCH, C_IN, H_IN, W_IN), jnp.float32)  # NCHW, like PyTorch
    params = init_params(k_p)
    fwd = jax.jit(final_capsnet_forward)
    x_out, x_prime = fwd(x, params)
    jax.block_until_ready((x_out, x_prime))
    assert x_out.shape == (BATCH, NUM_CAPS, S * S * DIM_CAPS)
    assert x_prime.shape == (BATCH, NUM_CAPS)
    assert bool(jnp.all(jnp.isfinite(x_out))) and bool(jnp.all(jnp.isfinite(x_prime)))
    print("KERNEL_OK")
</pallas_src>

<mosaic_0001>
module attributes {stable_mosaic.version = 11 : i64} {
  func.func @fused_capsnet_kernel(%arg0: i32, %arg1: memref<1x196x36xf32, #tpu.memory_space<vmem>>, %arg2: memref<36x128xf32, #tpu.memory_space<vmem>>, %arg3: memref<8x8x128xf32, #tpu.memory_space<vmem>>, %arg4: memref<1x128xf32, #tpu.memory_space<vmem>>, %arg5: memref<128x128xf32, #tpu.memory_space<vmem>>, %arg6: memref<32x128xf32, #tpu.memory_space<vmem>>, %arg7: memref<32x128xf32, #tpu.memory_space<vmem>>, %arg8: memref<128x128xf32, #tpu.memory_space<vmem>>, %arg9: memref<32x32xf32, #tpu.memory_space<vmem>>, %arg10: memref<1x7x7x32xf32, #tpu.memory_space<vmem>>, %arg11: memref<1x1x2xf32, #tpu.memory_space<vmem>>, %arg12: memref<14x14x128xf32, #tpu.memory_space<vmem>>, %arg13: memref<7x7x128xf32, #tpu.memory_space<vmem>>) attributes {dimension_semantics = [#tpu.dimension_semantics<parallel>], iteration_bounds = array<i64: 2>, scalar_prefetch = 0 : i64, scratch_operands = 2 : i64, tpu.core_type = #tpu.core_type<tc>, window_params = [{transform_indices = @transform_0, window_bounds = array<i64: 1, 196, 36>}, {pipeline_mode = #tpu.pipeline_mode<synchronous>, transform_indices = @transform_1, window_bounds = array<i64: 36, 128>}, {pipeline_mode = #tpu.pipeline_mode<synchronous>, transform_indices = @transform_2, window_bounds = array<i64: 8, 8, 128>}, {pipeline_mode = #tpu.pipeline_mode<synchronous>, transform_indices = @transform_3, window_bounds = array<i64: 1, 128>}, {pipeline_mode = #tpu.pipeline_mode<synchronous>, transform_indices = @transform_4, window_bounds = array<i64: 128, 128>}, {pipeline_mode = #tpu.pipeline_mode<synchronous>, transform_indices = @transform_5, window_bounds = array<i64: 32, 128>}, {pipeline_mode = #tpu.pipeline_mode<synchronous>, transform_indices = @transform_6, window_bounds = array<i64: 32, 128>}, {pipeline_mode = #tpu.pipeline_mode<synchronous>, transform_indices = @transform_7, window_bounds = array<i64: 128, 128>}, {pipeline_mode = #tpu.pipeline_mode<synchronous>, transform_indices = @transform_8, window_bounds = array<i64: 32, 32>}, {transform_indices = @transform_9, window_bounds = array<i64: 1, 7, 7, 32>}, {transform_indices = @transform_10, window_bounds = array<i64: 1, 1, 2>}]} {
    %c0 = arith.constant 0 : index
    %c0_0 = arith.constant 0 : index
    %c0_1 = arith.constant 0 : index
    %0 = vector.load %arg1[%c0, %c0_0, %c0_1] : memref<1x196x36xf32, #tpu.memory_space<vmem>>, vector<1x196x36xf32>
    %1 = vector.shape_cast %0 : vector<1x196x36xf32> to vector<196x36xf32>
    %c0_2 = arith.constant 0 : index
    %c0_3 = arith.constant 0 : index
    %2 = vector.load %arg2[%c0_2, %c0_3] : memref<36x128xf32, #tpu.memory_space<vmem>>, vector<36x128xf32>
    %cst = arith.constant dense<0.000000e+00> : vector<196x128xf32>
    %3 = tpu.matmul %1, %2, %cst {dimension_numbers = #tpu.dot_dimension_numbers<[1], [0], [0], [1], [0, 0, 1, 1], [], []>} : vector<196x36xf32>, vector<36x128xf32>, vector<196x128xf32> -> vector<196x128xf32>
    %4 = vector.shape_cast %3 : vector<196x128xf32> to vector<14x14x128xf32>
    %c0_4 = arith.constant 0 : index
    %c0_5 = arith.constant 0 : index
    %c0_6 = arith.constant 0 : index
    %5 = vector.load %arg12[%c0_4, %c0_5, %c0_6] : memref<14x14x128xf32, #tpu.memory_space<vmem>>, vector<14x14x128xf32>
    tpu.vector_store %arg12[%c0_4, %c0_5, %c0_6], %4 {strides = array<i32>} : memref<14x14x128xf32, #tpu.memory_space<vmem>>, vector<14x14x128xf32>,
    %cst_7 = arith.constant 0.000000e+00 : f32
    %6 = vector.broadcast %cst_7 : f32 to vector<7x7x128xf32>
    %c0_8 = arith.constant 0 : index
    %c0_9 = arith.constant 0 : index
    %c0_10 = arith.constant 0 : index
    %7 = vector.load %arg12[%c0_8, %c0_9, %c0_10] : memref<14x14x128xf32, #tpu.memory_space<vmem>>, vector<14x7x128xf32>
    %8 = vector.extract_strided_slice %7 {offsets = [0, 0, 0], sizes = [7, 7, 128], strides = [1, 1, 1]} : vector<14x7x128xf32> to vector<7x7x128xf32>
    %c0_11 = arith.constant 0 : index
    %c0_12 = arith.constant 0 : index
    %c0_13 = arith.constant 0 : index
    %9 = vector.load %arg3[%c0_11, %c0_12, %c0_13] : memref<8x8x128xf32, #tpu.memory_space<vmem>>, vector<1x1x128xf32>
    %10 = vector.shape_cast %9 : vector<1x1x128xf32> to vector<128xf32>
    %11 = vector.shape_cast %10 : vector<128xf32> to vector<1x1x128xf32>
    %12 = vector.broadcast %11 : vector<1x1x128xf32> to vector<7x7x128xf32>
    %13 = arith.mulf %8, %12 : vector<7x7x128xf32>
    %14 = arith.addf %6, %13 : vector<7x7x128xf32>
    %15 = vector.extract_strided_slice %7 {offsets = [1, 0, 0], sizes = [7, 7, 128], strides = [1, 1, 1]} : vector<14x7x128xf32> to vector<7x7x128xf32>
    %c1 = arith.constant 1 : index
    %c0_14 = arith.constant 0 : index
    %c0_15 = arith.constant 0 : index
    %16 = vector.load %arg3[%c1, %c0_14, %c0_15] : memref<8x8x128xf32, #tpu.memory_space<vmem>>, vector<1x1x128xf32>
    %17 = vector.shape_cast %16 : vector<1x1x128xf32> to vector<128xf32>
    %18 = vector.shape_cast %17 : vector<128xf32> to vector<1x1x128xf32>
    %19 = vector.broadcast %18 : vector<1x1x128xf32> to vector<7x7x128xf32>
    %20 = arith.mulf %15, %19 : vector<7x7x128xf32>
    %21 = arith.addf %14, %20 : vector<7x7x128xf32>
    %22 = vector.extract_strided_slice %7 {offsets = [2, 0, 0], sizes = [7, 7, 128], strides = [1, 1, 1]} : vector<14x7x128xf32> to vector<7x7x128xf32>
    %c2 = arith.constant 2 : index
    %c0_16 = arith.constant 0 : index
    %c0_17 = arith.constant 0 : index
    %23 = vector.load %arg3[%c2, %c0_16, %c0_17] : memref<8x8x128xf32, #tpu.memory_space<vmem>>, vector<1x1x128xf32>
    %24 = vector.shape_cast %23 : vector<1x1x128xf32> to vector<128xf32>
    %25 = vector.shape_cast %24 : vector<128xf32> to vector<1x1x128xf32>
    %26 = vector.broadcast %25 : vector<1x1x128xf32> to vector<7x7x128xf32>
    %27 = arith.mulf %22, %26 : vector<7x7x128xf32>
    %28 = arith.addf %21, %27 : vector<7x7x128xf32>
    %29 = vector.extract_strided_slice %7 {offsets = [3, 0, 0], sizes = [7, 7, 128], strides = [1, 1, 1]} : vector<14x7x128xf32> to vector<7x7x128xf32>
    %c3 = arith.constant 3 : index
    %c0_18 = arith.constant 0 : index
    %c0_19 = arith.constant 0 : index
    %30 = vector.load %arg3[%c3, %c0_18, %c0_19] : memref<8x8x128xf32, #tpu.memory_space<vmem>>, vector<1x1x128xf32>
    %31 = vector.shape_cast %30 : vector<1x1x128xf32> to vector<128xf32>
    %32 = vector.shape_cast %31 : vector<128xf32> to vector<1x1x128xf32>
    %33 = vector.broadcast %32 : vector<1x1x128xf32> to vector<7x7x128xf32>
    %34 = arith.mulf %29, %33 : vector<7x7x128xf32>
    %35 = arith.addf %28, %34 : vector<7x7x128xf32>
    %36 = vector.extract_strided_slice %7 {offsets = [4, 0, 0], sizes = [7, 7, 128], strides = [1, 1, 1]} : vector<14x7x128xf32> to vector<7x7x128xf32>
    %c4 = arith.constant 4 : index
    %c0_20 = arith.constant 0 : index
    %c0_21 = arith.constant 0 : index
    %37 = vector.load %arg3[%c4, %c0_20, %c0_21] : memref<8x8x128xf32, #tpu.memory_space<vmem>>, vector<1x1x128xf32>
    %38 = vector.shape_cast %37 : vector<1x1x128xf32> to vector<128xf32>
    %39 = vector.shape_cast %38 : vector<128xf32> to vector<1x1x128xf32>
    %40 = vector.broadcast %39 : vector<1x1x128xf32> to vector<7x7x128xf32>
    %41 = arith.mulf %36, %40 : vector<7x7x128xf32>
    %42 = arith.addf %35, %41 : vector<7x7x128xf32>
    %43 = vector.extract_strided_slice %7 {offsets = [5, 0, 0], sizes = [7, 7, 128], strides = [1, 1, 1]} : vector<14x7x128xf32> to vector<7x7x128xf32>
    %c5 = arith.constant 5 : index
    %c0_22 = arith.constant 0 : index
    %c0_23 = arith.constant 0 : index
    %44 = vector.load %arg3[%c5, %c0_22, %c0_23] : memref<8x8x128xf32, #tpu.memory_space<vmem>>, vector<1x1x128xf32>
    %45 = vector.shape_cast %44 : vector<1x1x128xf32> to vector<128xf32>
    %46 = vector.shape_cast %45 : vector<128xf32> to vector<1x1x128xf32>
    %47 = vector.broadcast %46 : vector<1x1x128xf32> to vector<7x7x128xf32>
    %48 = arith.mulf %43, %47 : vector<7x7x128xf32>
    %49 = arith.addf %42, %48 : vector<7x7x128xf32>
    %50 = vector.extract_strided_slice %7 {offsets = [6, 0, 0], sizes = [7, 7, 128], strides = [1, 1, 1]} : vector<14x7x128xf32> to vector<7x7x128xf32>
    %c6 = arith.constant 6 : index
    %c0_24 = arith.constant 0 : index
    %c0_25 = arith.constant 0 : index
    %51 = vector.load %arg3[%c6, %c0_24, %c0_25] : memref<8x8x128xf32, #tpu.memory_space<vmem>>, vector<1x1x128xf32>
    %52 = vector.shape_cast %51 : vector<1x1x128xf32> to vector<128xf32>
    %53 = vector.shape_cast %52 : vector<128xf32> to vector<1x1x128xf32>
    %54 = vector.broadcast %53 : vector<1x1x128xf32> to vector<7x7x128xf32>
    %55 = arith.mulf %50, %54 : vector<7x7x128xf32>
    %56 = arith.addf %49, %55 : vector<7x7x128xf32>
    %57 = vector.extract_strided_slice %7 {offsets = [7, 0, 0], sizes = [7, 7, 128], strides = [1, 1, 1]} : vector<14x7x128xf32> to vector<7x7x128xf32>
    %c7 = arith.constant 7 : index
    %c0_26 = arith.constant 0 : index
    %c0_27 = arith.constant 0 : index
    %58 = vector.load %arg3[%c7, %c0_26, %c0_27] : memref<8x8x128xf32, #tpu.memory_space<vmem>>, vector<1x1x128xf32>
    %59 = vector.shape_cast %58 : vector<1x1x128xf32> to vector<128xf32>
    %60 = vector.shape_cast %59 : vector<128xf32> to vector<1x1x128xf32>
    %61 = vector.broadcast %60 : vector<1x1x128xf32> to vector<7x7x128xf32>
    %62 = arith.mulf %57, %61 : vector<7x7x128xf32>
    %63 = arith.addf %56, %62 : vector<7x7x128xf32>
    %c0_28 = arith.constant 0 : index
    %c1_29 = arith.constant 1 : index
    %c0_30 = arith.constant 0 : index
    %64 = vector.load %arg12[%c0_28, %c1_29, %c0_30] : memref<14x14x128xf32, #tpu.memory_space<vmem>>, vector<14x7x128xf32>
    %65 = vector.extract_strided_slice %64 {offsets = [0, 0, 0], sizes = [7, 7, 128], strides = [1, 1, 1]} : vector<14x7x128xf32> to vector<7x7x128xf32>
    %c0_31 = arith.constant 0 : index
    %c1_32 = arith.constant 1 : index
    %c0_33 = arith.constant 0 : index
    %66 = vector.load %arg3[%c0_31, %c1_32, %c0_33] : memref<8x8x128xf32, #tpu.memory_space<vmem>>, vector<1x1x128xf32>
    %67 = vector.shape_cast %66 : vector<1x1x128xf32> to vector<128xf32>
    %68 = vector.shape_cast %67 : vector<128xf32> to vector<1x1x128xf32>
    %69 = vector.broadcast %68 : vector<1x1x128xf32> to vector<7x7x128xf32>
    %70 = arith.mulf %65, %69 : vector<7x7x128xf32>
    %71 = arith.addf %63, %70 : vector<7x7x128xf32>
    %72 = vector.extract_strided_slice %64 {offsets = [1, 0, 0], sizes = [7, 7, 128], strides = [1, 1, 1]} : vector<14x7x128xf32> to vector<7x7x128xf32>
    %c1_34 = arith.constant 1 : index
    %c1_35 = arith.constant 1 : index
    %c0_36 = arith.constant 0 : index
    %73 = vector.load %arg3[%c1_34, %c1_35, %c0_36] : memref<8x8x128xf32, #tpu.memory_space<vmem>>, vector<1x1x128xf32>
    %74 = vector.shape_cast %73 : vector<1x1x128xf32> to vector<128xf32>
    %75 = vector.shape_cast %74 : vector<128xf32> to vector<1x1x128xf32>
    %76 = vector.broadcast %75 : vector<1x1x128xf32> to vector<7x7x128xf32>
    %77 = arith.mulf %72, %76 : vector<7x7x128xf32>
    %78 = arith.addf %71, %77 : vector<7x7x128xf32>
    %79 = vector.extract_strided_slice %64 {offsets = [2, 0, 0], sizes = [7, 7, 128], strides = [1, 1, 1]} : vector<14x7x128xf32> to vector<7x7x128xf32>
    %c2_37 = arith.constant 2 : index
    %c1_38 = arith.constant 1 : index
    %c0_39 = arith.constant 0 : index
    %80 = vector.load %arg3[%c2_37, %c1_38, %c0_39] : memref<8x8x128xf32, #tpu.memory_space<vmem>>, vector<1x1x128xf32>
    %81 = vector.shape_cast %80 : vector<1x1x128xf32> to vector<128xf32>
    %82 = vector.shape_cast %81 : vector<128xf32> to vector<1x1x128xf32>
    %83 = vector.broadcast %82 : vector<1x1x128xf32> to vector<7x7x128xf32>
    %84 = arith.mulf %79, %83 : vector<7x7x128xf32>
    %85 = arith.addf %78, %84 : vector<7x7x128xf32>
    %86 = vector.extract_strided_slice %64 {offsets = [3, 0, 0], sizes = [7, 7, 128], strides = [1, 1, 1]} : vector<14x7x128xf32> to vector<7x7x128xf32>
    %c3_40 = arith.constant 3 : index
    %c1_41 = arith.constant 1 : index
    %c0_42 = arith.constant 0 : index
    %87 = vector.load %arg3[%c3_40, %c1_41, %c0_42] : memref<8x8x128xf32, #tpu.memory_space<vmem>>, vector<1x1x128xf32>
    %88 = vector.shape_cast %87 : vector<1x1x128xf32> to vector<128xf32>
    %89 = vector.shape_cast %88 : vector<128xf32> to vector<1x1x128xf32>
    %90 = vector.broadcast %89 : vector<1x1x128xf32> to vector<7x7x128xf32>
    %91 = arith.mulf %86, %90 : vector<7x7x128xf32>
    %92 = arith.addf %85, %91 : vector<7x7x128xf32>
    %93 = vector.extract_strided_slice %64 {offsets = [4, 0, 0], sizes = [7, 7, 128], strides = [1, 1, 1]} : vector<14x7x128xf32> to vector<7x7x128xf32>
    %c4_43 = arith.constant 4 : index
    %c1_44 = arith.constant 1 : index
    %c0_45 = arith.constant 0 : index
    %94 = vector.load %arg3[%c4_43, %c1_44, %c0_45] : memref<8x8x128xf32, #tpu.memory_space<vmem>>, vector<1x1x128xf32>
    %95 = vector.shape_cast %94 : vector<1x1x128xf32> to vector<128xf32>
    %96 = vector.shape_cast %95 : vector<128xf32> to vector<1x1x128xf32>
    %97 = vector.broadcast %96 : vector<1x1x128xf32> to vector<7x7x128xf32>
    %98 = arith.mulf %93, %97 : vector<7x7x128xf32>
    %99 = arith.addf %92, %98 : vector<7x7x128xf32>
    %100 = vector.extract_strided_slice %64 {offsets = [5, 0, 0], sizes = [7, 7, 128], strides = [1, 1, 1]} : vector<14x7x128xf32> to vector<7x7x128xf32>
    %c5_46 = arith.constant 5 : index
    %c1_47 = arith.constant 1 : index
    %c0_48 = arith.constant 0 : index
    %101 = vector.load %arg3[%c5_46, %c1_47, %c0_48] : memref<8x8x128xf32, #tpu.memory_space<vmem>>, vector<1x1x128xf32>
    %102 = vector.shape_cast %101 : vector<1x1x128xf32> to vector<128xf32>
    %103 = vector.shape_cast %102 : vector<128xf32> to vector<1x1x128xf32>
    %104 = vector.broadcast %103 : vector<1x1x128xf32> to vector<7x7x128xf32>
    %105 = arith.mulf %100, %104 : vector<7x7x128xf32>
    %106 = arith.addf %99, %105 : vector<7x7x128xf32>
    %107 = vector.extract_strided_slice %64 {offsets = [6, 0, 0], sizes = [7, 7, 128], strides = [1, 1, 1]} : vector<14x7x128xf32> to vector<7x7x128xf32>
    %c6_49 = arith.constant 6 : index
    %c1_50 = arith.constant 1 : index
    %c0_51 = arith.constant 0 : index
    %108 = vector.load %arg3[%c6_49, %c1_50, %c0_51] : memref<8x8x128xf32, #tpu.memory_space<vmem>>, vector<1x1x128xf32>
    %109 = vector.shape_cast %108 : vector<1x1x128xf32> to vector<128xf32>
    %110 = vector.shape_cast %109 : vector<128xf32> to vector<1x1x128xf32>
    %111 = vector.broadcast %110 : vector<1x1x128xf32> to vector<7x7x128xf32>
    %112 = arith.mulf %107, %111 : vector<7x7x128xf32>
    %113 = arith.addf %106, %112 : vector<7x7x128xf32>
    %114 = vector.extract_strided_slice %64 {offsets = [7, 0, 0], sizes = [7, 7, 128], strides = [1, 1, 1]} : vector<14x7x128xf32> to vector<7x7x128xf32>
    %c7_52 = arith.constant 7 : index
    %c1_53 = arith.constant 1 : index
    %c0_54 = arith.constant 0 : index
    %115 = vector.load %arg3[%c7_52, %c1_53, %c0_54] : memref<8x8x128xf32, #tpu.memory_space<vmem>>, vector<1x1x128xf32>
    %116 = vector.shape_cast %115 : vector<1x1x128xf32> to vector<128xf32>
    %117 = vector.shape_cast %116 : vector<128xf32> to vector<1x1x128xf32>
    %118 = vector.broadcast %117 : vector<1x1x128xf32> to vector<7x7x128xf32>
    %119 = arith.mulf %114, %118 : vector<7x7x128xf32>
    %120 = arith.addf %113, %119 : vector<7x7x128xf32>
    %c0_55 = arith.constant 0 : index
    %c2_56 = arith.constant 2 : index
    %c0_57 = arith.constant 0 : index
    %121 = vector.load %arg12[%c0_55, %c2_56, %c0_57] : memref<14x14x128xf32, #tpu.memory_space<vmem>>, vector<14x7x128xf32>
    %122 = vector.extract_strided_slice %121 {offsets = [0, 0, 0], sizes = [7, 7, 128], strides = [1, 1, 1]} : vector<14x7x128xf32> to vector<7x7x128xf32>
    %c0_58 = arith.constant 0 : index
    %c2_59 = arith.constant 2 : index
    %c0_60 = arith.constant 0 : index
    %123 = vector.load %arg3[%c0_58, %c2_59, %c0_60] : memref<8x8x128xf32, #tpu.memory_space<vmem>>, vector<1x1x128xf32>
    %124 = vector.shape_cast %123 : vector<1x1x128xf32> to vector<128xf32>
    %125 = vector.shape_cast %124 : vector<128xf32> to vector<1x1x128xf32>
    %126 = vector.broadcast %125 : vector<1x1x128xf32> to vector<7x7x128xf32>
    %127 = arith.mulf %122, %126 : vector<7x7x128xf32>
    %128 = arith.addf %120, %127 : vector<7x7x128xf32>
    %129 = vector.extract_strided_slice %121 {offsets = [1, 0, 0], sizes = [7, 7, 128], strides = [1, 1, 1]} : vector<14x7x128xf32> to vector<7x7x128xf32>
    %c1_61 = arith.constant 1 : index
    %c2_62 = arith.constant 2 : index
    %c0_63 = arith.constant 0 : index
    %130 = vector.load %arg3[%c1_61, %c2_62, %c0_63] : memref<8x8x128xf32, #tpu.memory_space<vmem>>, vector<1x1x128xf32>
    %131 = vector.shape_cast %130 : vector<1x1x128xf32> to vector<128xf32>
    %132 = vector.shape_cast %131 : vector<128xf32> to vector<1x1x128xf32>
    %133 = vector.broadcast %132 : vector<1x1x128xf32> to vector<7x7x128xf32>
    %134 = arith.mulf %129, %133 : vector<7x7x128xf32>
    %135 = arith.addf %128, %134 : vector<7x7x128xf32>
    %136 = vector.extract_strided_slice %121 {offsets = [2, 0, 0], sizes = [7, 7, 128], strides = [1, 1, 1]} : vector<14x7x128xf32> to vector<7x7x128xf32>
    %c2_64 = arith.constant 2 : index
    %c2_65 = arith.constant 2 : index
    %c0_66 = arith.constant 0 : index
    %137 = vector.load %arg3[%c2_64, %c2_65, %c0_66] : memref<8x8x128xf32, #tpu.memory_space<vmem>>, vector<1x1x128xf32>
    %138 = vector.shape_cast %137 : vector<1x1x128xf32> to vector<128xf32>
    %139 = vector.shape_cast %138 : vector<128xf32> to vector<1x1x128xf32>
    %140 = vector.broadcast %139 : vector<1x1x128xf32> to vector<7x7x128xf32>
    %141 = arith.mulf %136, %140 : vector<7x7x128xf32>
    %142 = arith.addf %135, %141 : vector<7x7x128xf32>
    %143 = vector.extract_strided_slice %121 {offsets = [3, 0, 0], sizes = [7, 7, 128], strides = [1, 1, 1]} : vector<14x7x128xf32> to vector<7x7x128xf32>
    %c3_67 = arith.constant 3 : index
    %c2_68 = arith.constant 2 : index
    %c0_69 = arith.constant 0 : index
    %144 = vector.load %arg3[%c3_67, %c2_68, %c0_69] : memref<8x8x128xf32, #tpu.memory_space<vmem>>, vector<1x1x128xf32>
    %145 = vector.shape_cast %144 : vector<1x1x128xf32> to vector<128xf32>
    %146 = vector.shape_cast %145 : vector<128xf32> to vector<1x1x128xf32>
    %147 = vector.broadcast %146 : vector<1x1x128xf32> to vector<7x7x128xf32>
    %148 = arith.mulf %143, %147 : vector<7x7x128xf32>
    %149 = arith.addf %142, %148 : vector<7x7x128xf32>
    %150 = vector.extract_strided_slice %121 {offsets = [4, 0, 0], sizes = [7, 7, 128], strides = [1, 1, 1]} : vector<14x7x128xf32> to vector<7x7x128xf32>
    %c4_70 = arith.constant 4 : index
    %c2_71 = arith.constant 2 : index
    %c0_72 = arith.constant 0 : index
    %151 = vector.load %arg3[%c4_70, %c2_71, %c0_72] : memref<8x8x128xf32, #tpu.memory_space<vmem>>, vector<1x1x128xf32>
    %152 = vector.shape_cast %151 : vector<1x1x128xf32> to vector<128xf32>
    %153 = vector.shape_cast %152 : vector<128xf32> to vector<1x1x128xf32>
    %154 = vector.broadcast %153 : vector<1x1x128xf32> to vector<7x7x128xf32>
    %155 = arith.mulf %150, %154 : vector<7x7x128xf32>
    %156 = arith.addf %149, %155 : vector<7x7x128xf32>
    %157 = vector.extract_strided_slice %121 {offsets = [5, 0, 0], sizes = [7, 7, 128], strides = [1, 1, 1]} : vector<14x7x128xf32> to vector<7x7x128xf32>
    %c5_73 = arith.constant 5 : index
    %c2_74 = arith.constant 2 : index
    %c0_75 = arith.constant 0 : index
    %158 = vector.load %arg3[%c5_73, %c2_74, %c0_75] : memref<8x8x128xf32, #tpu.memory_space<vmem>>, vector<1x1x128xf32>
    %159 = vector.shape_cast %158 : vector<1x1x128xf32> to vector<128xf32>
    %160 = vector.shape_cast %159 : vector<128xf32> to vector<1x1x128xf32>
    %161 = vector.broadcast %160 : vector<1x1x128xf32> to vector<7x7x128xf32>
    %162 = arith.mulf %157, %161 : vector<7x7x128xf32>
    %163 = arith.addf %156, %162 : vector<7x7x128xf32>
    %164 = vector.extract_strided_slice %121 {offsets = [6, 0, 0], sizes = [7, 7, 128], strides = [1, 1, 1]} : vector<14x7x128xf32> to vector<7x7x128xf32>
    %c6_76 = arith.constant 6 : index
    %c2_77 = arith.constant 2 : index
    %c0_78 = arith.constant 0 : index
    %165 = vector.load %arg3[%c6_76, %c2_77, %c0_78] : memref<8x8x128xf32, #tpu.memory_space<vmem>>, vector<1x1x128xf32>
    %166 = vector.shape_cast %165 : vector<1x1x128xf32> to vector<128xf32>
    %167 = vector.shape_cast %166 : vector<128xf32> to vector<1x1x128xf32>
    %168 = vector.broadcast %167 : vector<1x1x128xf32> to vector<7x7x128xf32>
    %169 = arith.mulf %164, %168 : vector<7x7x128xf32>
    %170 = arith.addf %163, %169 : vector<7x7x128xf32>
    %171 = vector.extract_strided_slice %121 {offsets = [7, 0, 0], sizes = [7, 7, 128], strides = [1, 1, 1]} : vector<14x7x128xf32> to vector<7x7x128xf32>
    %c7_79 = arith.constant 7 : index
    %c2_80 = arith.constant 2 : index
    %c0_81 = arith.constant 0 : index
    %172 = vector.load %arg3[%c7_79, %c2_80, %c0_81] : memref<8x8x128xf32, #tpu.memory_space<vmem>>, vector<1x1x128xf32>
    %173 = vector.shape_cast %172 : vector<1x1x128xf32> to vector<128xf32>
    %174 = vector.shape_cast %173 : vector<128xf32> to vector<1x1x128xf32>
    %175 = vector.broadcast %174 : vector<1x1x128xf32> to vector<7x7x128xf32>
    %176 = arith.mulf %171, %175 : vector<7x7x128xf32>
    %177 = arith.addf %170, %176 : vector<7x7x128xf32>
    %c0_82 = arith.constant 0 : index
    %c3_83 = arith.constant 3 : index
    %c0_84 = arith.constant 0 : index
    %178 = vector.load %arg12[%c0_82, %c3_83, %c0_84] : memref<14x14x128xf32, #tpu.memory_space<vmem>>, vector<14x7x128xf32>
    %179 = vector.extract_strided_slice %178 {offsets = [0, 0, 0], sizes = [7, 7, 128], strides = [1, 1, 1]} : vector<14x7x128xf32> to vector<7x7x128xf32>
    %c0_85 = arith.constant 0 : index
    %c3_86 = arith.constant 3 : index
    %c0_87 = arith.constant 0 : index
    %180 = vector.load %arg3[%c0_85, %c3_86, %c0_87] : memref<8x8x128xf32, #tpu.memory_space<vmem>>, vector<1x1x128xf32>
    %181 = vector.shape_cast %180 : vector<1x1x128xf32> to vector<128xf32>
    %182 = vector.shape_cast %181 : vector<128xf32> to vector<1x1x128xf32>
    %183 = vector.broadcast %182 : vector<1x1x128xf32> to vector<7x7x128xf32>
    %184 = arith.mulf %179, %183 : vector<7x7x128xf32>
    %185 = arith.addf %177, %184 : vector<7x7x128xf32>
    %186 = vector.extract_strided_slice %178 {offsets = [1, 0, 0], sizes = [7, 7, 128], strides = [1, 1, 1]} : vector<14x7x128xf32> to vector<7x7x128xf32>
    %c1_88 = arith.constant 1 : index
    %c3_89 = arith.constant 3 : index
    %c0_90 = arith.constant 0 : index
    %187 = vector.load %arg3[%c1_88, %c3_89, %c0_90] : memref<8x8x128xf32, #tpu.memory_space<vmem>>, vector<1x1x128xf32>
    %188 = vector.shape_cast %187 : vector<1x1x128xf32> to vector<128xf32>
    %189 = vector.shape_cast %188 : vector<128xf32> to vector<1x1x128xf32>
    %190 = vector.broadcast %189 : vector<1x1x128xf32> to vector<7x7x128xf32>
    %191 = arith.mulf %186, %190 : vector<7x7x128xf32>
    %192 = arith.addf %185, %191 : vector<7x7x128xf32>
    %193 = vector.extract_strided_slice %178 {offsets = [2, 0, 0], sizes = [7, 7, 128], strides = [1, 1, 1]} : vector<14x7x128xf32> to vector<7x7x128xf32>
    %c2_91 = arith.constant 2 : index
    %c3_92 = arith.constant 3 : index
    %c0_93 = arith.constant 0 : index
    %194 = vector.load %arg3[%c2_91, %c3_92, %c0_93] : memref<8x8x128xf32, #tpu.memory_space<vmem>>, vector<1x1x128xf32>
    %195 = vector.shape_cast %194 : vector<1x1x128xf32> to vector<128xf32>
    %196 = vector.shape_cast %195 : vector<128xf32> to vector<1x1x128xf32>
    %197 = vector.broadcast %196 : vector<1x1x128xf32> to vector<7x7x128xf32>
    %198 = arith.mulf %193, %197 : vector<7x7x128xf32>
    %199 = arith.addf %192, %198 : vector<7x7x128xf32>
    %200 = vector.extract_strided_slice %178 {offsets = [3, 0, 0], sizes = [7, 7, 128], strides = [1, 1, 1]} : vector<14x7x128xf32> to vector<7x7x128xf32>
    %c3_94 = arith.constant 3 : index
    %c3_95 = arith.constant 3 : index
    %c0_96 = arith.constant 0 : index
    %201 = vector.load %arg3[%c3_94, %c3_95, %c0_96] : memref<8x8x128xf32, #tpu.memory_space<vmem>>, vector<1x1x128xf32>
    %202 = vector.shape_cast %201 : vector<1x1x128xf32> to vector<128xf32>
    %203 = vector.shape_cast %202 : vector<128xf32> to vector<1x1x128xf32>
    %204 = vector.broadcast %203 : vector<1x1x128xf32> to vector<7x7x128xf32>
    %205 = arith.mulf %200, %204 : vector<7x7x128xf32>
    %206 = arith.addf %199, %205 : vector<7x7x128xf32>
    %207 = vector.extract_strided_slice %178 {offsets = [4, 0, 0], sizes = [7, 7, 128], strides = [1, 1, 1]} : vector<14x7x128xf32> to vector<7x7x128xf32>
    %c4_97 = arith.constant 4 : index
    %c3_98 = arith.constant 3 : index
    %c0_99 = arith.constant 0 : index
    %208 = vector.load %arg3[%c4_97, %c3_98, %c0_99] : memref<8x8x128xf32, #tpu.memory_space<vmem>>, vector<1x1x128xf32>
    %209 = vector.shape_cast %208 : vector<1x1x128xf32> to vector<128xf32>
    %210 = vector.shape_cast %209 : vector<128xf32> to vector<1x1x128xf32>
    %211 = vector.broadcast %210 : vector<1x1x128xf32> to vector<7x7x128xf32>
    %212 = arith.mulf %207, %211 : vector<7x7x128xf32>
    %213 = arith.addf %206, %212 : vector<7x7x128xf32>
    %214 = vector.extract_strided_slice %178 {offsets = [5, 0, 0], sizes = [7, 7, 128], strides = [1, 1, 1]} : vector<14x7x128xf32> to vector<7x7x128xf32>
    %c5_100 = arith.constant 5 : index
    %c3_101 = arith.constant 3 : index
    %c0_102 = arith.constant 0 : index
    %215 = vector.load %arg3[%c5_100, %c3_101, %c0_102] : memref<8x8x128xf32, #tpu.memory_space<vmem>>, vector<1x1x128xf32>
    %216 = vector.shape_cast %215 : vector<1x1x128xf32> to vector<128xf32>
    %217 = vector.shape_cast %216 : vector<128xf32> to vector<1x1x128xf32>
    %218 = vector.broadcast %217 : vector<1x1x128xf32> to vector<7x7x128xf32>
    %219 = arith.mulf %214, %218 : vector<7x7x128xf32>
    %220 = arith.addf %213, %219 : vector<7x7x128xf32>
    %221 = vector.extract_strided_slice %178 {offsets = [6, 0, 0], sizes = [7, 7, 128], strides = [1, 1, 1]} : vector<14x7x128xf32> to vector<7x7x128xf32>
    %c6_103 = arith.constant 6 : index
    %c3_104 = arith.constant 3 : index
    %c0_105 = arith.constant 0 : index
    %222 = vector.load %arg3[%c6_103, %c3_104, %c0_105] : memref<8x8x128xf32, #tpu.memory_space<vmem>>, vector<1x1x128xf32>
    %223 = vector.shape_cast %222 : vector<1x1x128xf32> to vector<128xf32>
    %224 = vector.shape_cast %223 : vector<128xf32> to vector<1x1x128xf32>
    %225 = vector.broadcast %224 : vector<1x1x128xf32> to vector<7x7x128xf32>
    %226 = arith.mulf %221, %225 : vector<7x7x128xf32>
    %227 = arith.addf %220, %226 : vector<7x7x128xf32>
    %228 = vector.extract_strided_slice %178 {offsets = [7, 0, 0], sizes = [7, 7, 128], strides = [1, 1, 1]} : vector<14x7x128xf32> to vector<7x7x128xf32>
    %c7_106 = arith.constant 7 : index
    %c3_107 = arith.constant 3 : index
    %c0_108 = arith.constant 0 : index
    %229 = vector.load %arg3[%c7_106, %c3_107, %c0_108] : memref<8x8x128xf32, #tpu.memory_space<vmem>>, vector<1x1x128xf32>
    %230 = vector.shape_cast %229 : vector<1x1x128xf32> to vector<128xf32>
    %231 = vector.shape_cast %230 : vector<128xf32> to vector<1x1x128xf32>
    %232 = vector.broadcast %231 : vector<1x1x128xf32> to vector<7x7x128xf32>
    %233 = arith.mulf %228, %232 : vector<7x7x128xf32>
    %234 = arith.addf %227, %233 : vector<7x7x128xf32>
    %c0_109 = arith.constant 0 : index
    %c4_110 = arith.constant 4 : index
    %c0_111 = arith.constant 0 : index
    %235 = vector.load %arg12[%c0_109, %c4_110, %c0_111] : memref<14x14x128xf32, #tpu.memory_space<vmem>>, vector<14x7x128xf32>
    %236 = vector.extract_strided_slice %235 {offsets = [0, 0, 0], sizes = [7, 7, 128], strides = [1, 1, 1]} : vector<14x7x128xf32> to vector<7x7x128xf32>
    %c0_112 = arith.constant 0 : index
    %c4_113 = arith.constant 4 : index
    %c0_114 = arith.constant 0 : index
    %237 = vector.load %arg3[%c0_112, %c4_113, %c0_114] : memref<8x8x128xf32, #tpu.memory_space<vmem>>, vector<1x1x128xf32>
    %238 = vector.shape_cast %237 : vector<1x1x128xf32> to vector<128xf32>
    %239 = vector.shape_cast %238 : vector<128xf32> to vector<1x1x128xf32>
    %240 = vector.broadcast %239 : vector<1x1x128xf32> to vector<7x7x128xf32>
    %241 = arith.mulf %236, %240 : vector<7x7x128xf32>
    %242 = arith.addf %234, %241 : vector<7x7x128xf32>
    %243 = vector.extract_strided_slice %235 {offsets = [1, 0, 0], sizes = [7, 7, 128], strides = [1, 1, 1]} : vector<14x7x128xf32> to vector<7x7x128xf32>
    %c1_115 = arith.constant 1 : index
    %c4_116 = arith.constant 4 : index
    %c0_117 = arith.constant 0 : index
    %244 = vector.load %arg3[%c1_115, %c4_116, %c0_117] : memref<8x8x128xf32, #tpu.memory_space<vmem>>, vector<1x1x128xf32>
    %245 = vector.shape_cast %244 : vector<1x1x128xf32> to vector<128xf32>
    %246 = vector.shape_cast %245 : vector<128xf32> to vector<1x1x128xf32>
    %247 = vector.broadcast %246 : vector<1x1x128xf32> to vector<7x7x128xf32>
    %248 = arith.mulf %243, %247 : vector<7x7x128xf32>
    %249 = arith.addf %242, %248 : vector<7x7x128xf32>
    %250 = vector.extract_strided_slice %235 {offsets = [2, 0, 0], sizes = [7, 7, 128], strides = [1, 1, 1]} : vector<14x7x128xf32> to vector<7x7x128xf32>
    %c2_118 = arith.constant 2 : index
    %c4_119 = arith.constant 4 : index
    %c0_120 = arith.constant 0 : index
    %251 = vector.load %arg3[%c2_118, %c4_119, %c0_120] : memref<8x8x128xf32, #tpu.memory_space<vmem>>, vector<1x1x128xf32>
    %252 = vector.shape_cast %251 : vector<1x1x128xf32> to vector<128xf32>
    %253 = vector.shape_cast %252 : vector<128xf32> to vector<1x1x128xf32>
    %254 = vector.broadcast %253 : vector<1x1x128xf32> to vector<7x7x128xf32>
    %255 = arith.mulf %250, %254 : vector<7x7x128xf32>
    %256 = arith.addf %249, %255 : vector<7x7x128xf32>
    %257 = vector.extract_strided_slice %235 {offsets = [3, 0, 0], sizes = [7, 7, 128], strides = [1, 1, 1]} : vector<14x7x128xf32> to vector<7x7x128xf32>
    %c3_121 = arith.constant 3 : index
    %c4_122 = arith.constant 4 : index
    %c0_123 = arith.constant 0 : index
    %258 = vector.load %arg3[%c3_121, %c4_122, %c0_123] : memref<8x8x128xf32, #tpu.memory_space<vmem>>, vector<1x1x128xf32>
    %259 = vector.shape_cast %258 : vector<1x1x128xf32> to vector<128xf32>
    %260 = vector.shape_cast %259 : vector<128xf32> to vector<1x1x128xf32>
    %261 = vector.broadcast %260 : vector<1x1x128xf32> to vector<7x7x128xf32>
    %262 = arith.mulf %257, %261 : vector<7x7x128xf32>
    %263 = arith.addf %256, %262 : vector<7x7x128xf32>
    %264 = vector.extract_strided_slice %235 {offsets = [4, 0, 0], sizes = [7, 7, 128], strides = [1, 1, 1]} : vector<14x7x128xf32> to vector<7x7x128xf32>
    %c4_124 = arith.constant 4 : index
    %c4_125 = arith.constant 4 : index
    %c0_126 = arith.constant 0 : index
    %265 = vector.load %arg3[%c4_124, %c4_125, %c0_126] : memref<8x8x128xf32, #tpu.memory_space<vmem>>, vector<1x1x128xf32>
    %266 = vector.shape_cast %265 : vector<1x1x128xf32> to vector<128xf32>
    %267 = vector.shape_cast %266 : vector<128xf32> to vector<1x1x128xf32>
    %268 = vector.broadcast %267 : vector<1x1x128xf32> to vector<7x7x128xf32>
    %269 = arith.mulf %264, %268 : vector<7x7x128xf32>
    %270 = arith.addf %263, %269 : vector<7x7x128xf32>
    %271 = vector.extract_strided_slice %235 {offsets = [5, 0, 0], sizes = [7, 7, 128], strides = [1, 1, 1]} : vector<14x7x128xf32> to vector<7x7x128xf32>
    %c5_127 = arith.constant 5 : index
    %c4_128 = arith.constant 4 : index
    %c0_129 = arith.constant 0 : index
    %272 = vector.load %arg3[%c5_127, %c4_128, %c0_129] : memref<8x8x128xf32, #tpu.memory_space<vmem>>, vector<1x1x128xf32>
    %273 = vector.shape_cast %272 : vector<1x1x128xf32> to vector<128xf32>
    %274 = vector.shape_cast %273 : vector<128xf32> to vector<1x1x128xf32>
    %275 = vector.broadcast %274 : vector<1x1x128xf32> to vector<7x7x128xf32>
    %276 = arith.mulf %271, %275 : vector<7x7x128xf32>
    %277 = arith.addf %270, %276 : vector<7x7x128xf32>
    %278 = vector.extract_strided_slice %235 {offsets = [6, 0, 0], sizes = [7, 7, 128], strides = [1, 1, 1]} : vector<14x7x128xf32> to vector<7x7x128xf32>
    %c6_130 = arith.constant 6 : index
    %c4_131 = arith.constant 4 : index
    %c0_132 = arith.constant 0 : index
    %279 = vector.load %arg3[%c6_130, %c4_131, %c0_132] : memref<8x8x128xf32, #tpu.memory_space<vmem>>, vector<1x1x128xf32>
    %280 = vector.shape_cast %279 : vector<1x1x128xf32> to vector<128xf32>
    %281 = vector.shape_cast %280 : vector<128xf32> to vector<1x1x128xf32>
    %282 = vector.broadcast %281 : vector<1x1x128xf32> to vector<7x7x128xf32>
    %283 = arith.mulf %278, %282 : vector<7x7x128xf32>
    %284 = arith.addf %277, %283 : vector<7x7x128xf32>
    %285 = vector.extract_strided_slice %235 {offsets = [7, 0, 0], sizes = [7, 7, 128], strides = [1, 1, 1]} : vector<14x7x128xf32> to vector<7x7x128xf32>
    %c7_133 = arith.constant 7 : index
    %c4_134 = arith.constant 4 : index
    %c0_135 = arith.constant 0 : index
    %286 = vector.load %arg3[%c7_133, %c4_134, %c0_135] : memref<8x8x128xf32, #tpu.memory_space<vmem>>, vector<1x1x128xf32>
    %287 = vector.shape_cast %286 : vector<1x1x128xf32> to vector<128xf32>
    %288 = vector.shape_cast %287 : vector<128xf32> to vector<1x1x128xf32>
    %289 = vector.broadcast %288 : vector<1x1x128xf32> to vector<7x7x128xf32>
    %290 = arith.mulf %285, %289 : vector<7x7x128xf32>
    %291 = arith.addf %284, %290 : vector<7x7x128xf32>
    %c0_136 = arith.constant 0 : index
    %c5_137 = arith.constant 5 : index
    %c0_138 = arith.constant 0 : index
    %292 = vector.load %arg12[%c0_136, %c5_137, %c0_138] : memref<14x14x128xf32, #tpu.memory_space<vmem>>, vector<14x7x128xf32>
    %293 = vector.extract_strided_slice %292 {offsets = [0, 0, 0], sizes = [7, 7, 128], strides = [1, 1, 1]} : vector<14x7x128xf32> to vector<7x7x128xf32>
    %c0_139 = arith.constant 0 : index
    %c5_140 = arith.constant 5 : index
    %c0_141 = arith.constant 0 : index
    %294 = vector.load %arg3[%c0_139, %c5_140, %c0_141] : memref<8x8x128xf32, #tpu.memory_space<vmem>>, vector<1x1x128xf32>
    %295 = vector.shape_cast %294 : vector<1x1x128xf32> to vector<128xf32>
    %296 = vector.shape_cast %295 : vector<128xf32> to vector<1x1x128xf32>
    %297 = vector.broadcast %296 : vector<1x1x128xf32> to vector<7x7x128xf32>
    %298 = arith.mulf %293, %297 : vector<7x7x128xf32>
    %299 = arith.addf %291, %298 : vector<7x7x128xf32>
    %300 = vector.extract_strided_slice %292 {offsets = [1, 0, 0], sizes = [7, 7, 128], strides = [1, 1, 1]} : vector<14x7x128xf32> to vector<7x7x128xf32>
    %c1_142 = arith.constant 1 : index
    %c5_143 = arith.constant 5 : index
    %c0_144 = arith.constant 0 : index
    %301 = vector.load %arg3[%c1_142, %c5_143, %c0_144] : memref<8x8x128xf32, #tpu.memory_space<vmem>>, vector<1x1x128xf32>
    %302 = vector.shape_cast %301 : vector<1x1x128xf32> to vector<128xf32>
    %303 = vector.shape_cast %302 : vector<128xf32> to vector<1x1x128xf32>
    %304 = vector.broadcast %303 : vector<1x1x128xf32> to vector<7x7x128xf32>
    %305 = arith.mulf %300, %304 : vector<7x7x128xf32>
    %306 = arith.addf %299, %305 : vector<7x7x128xf32>
    %307 = vector.extract_strided_slice %292 {offsets = [2, 0, 0], sizes = [7, 7, 128], strides = [1, 1, 1]} : vector<14x7x128xf32> to vector<7x7x128xf32>
    %c2_145 = arith.constant 2 : index
    %c5_146 = arith.constant 5 : index
    %c0_147 = arith.constant 0 : index
    %308 = vector.load %arg3[%c2_145, %c5_146, %c0_147] : memref<8x8x128xf32, #tpu.memory_space<vmem>>, vector<1x1x128xf32>
    %309 = vector.shape_cast %308 : vector<1x1x128xf32> to vector<128xf32>
    %310 = vector.shape_cast %309 : vector<128xf32> to vector<1x1x128xf32>
    %311 = vector.broadcast %310 : vector<1x1x128xf32> to vector<7x7x128xf32>
    %312 = arith.mulf %307, %311 : vector<7x7x128xf32>
    %313 = arith.addf %306, %312 : vector<7x7x128xf32>
    %314 = vector.extract_strided_slice %292 {offsets = [3, 0, 0], sizes = [7, 7, 128], strides = [1, 1, 1]} : vector<14x7x128xf32> to vector<7x7x128xf32>
    %c3_148 = arith.constant 3 : index
    %c5_149 = arith.constant 5 : index
    %c0_150 = arith.constant 0 : index
    %315 = vector.load %arg3[%c3_148, %c5_149, %c0_150] : memref<8x8x128xf32, #tpu.memory_space<vmem>>, vector<1x1x128xf32>
    %316 = vector.shape_cast %315 : vector<1x1x128xf32> to vector<128xf32>
    %317 = vector.shape_cast %316 : vector<128xf32> to vector<1x1x128xf32>
    %318 = vector.broadcast %317 : vector<1x1x128xf32> to vector<7x7x128xf32>
    %319 = arith.mulf %314, %318 : vector<7x7x128xf32>
    %320 = arith.addf %313, %319 : vector<7x7x128xf32>
    %321 = vector.extract_strided_slice %292 {offsets = [4, 0, 0], sizes = [7, 7, 128], strides = [1, 1, 1]} : vector<14x7x128xf32> to vector<7x7x128xf32>
    %c4_151 = arith.constant 4 : index
    %c5_152 = arith.constant 5 : index
    %c0_153 = arith.constant 0 : index
    %322 = vector.load %arg3[%c4_151, %c5_152, %c0_153] : memref<8x8x128xf32, #tpu.memory_space<vmem>>, vector<1x1x128xf32>
    %323 = vector.shape_cast %322 : vector<1x1x128xf32> to vector<128xf32>
    %324 = vector.shape_cast %323 : vector<128xf32> to vector<1x1x128xf32>
    %325 = vector.broadcast %324 : vector<1x1x128xf32> to vector<7x7x128xf32>
    %326 = arith.mulf %321, %325 : vector<7x7x128xf32>
    %327 = arith.addf %320, %326 : vector<7x7x128xf32>
    %328 = vector.extract_strided_slice %292 {offsets = [5, 0, 0], sizes = [7, 7, 128], strides = [1, 1, 1]} : vector<14x7x128xf32> to vector<7x7x128xf32>
    %c5_154 = arith.constant 5 : index
    %c5_155 = arith.constant 5 : index
    %c0_156 = arith.constant 0 : index
    %329 = vector.load %arg3[%c5_154, %c5_155, %c0_156] : memref<8x8x128xf32, #tpu.memory_space<vmem>>, vector<1x1x128xf32>
    %330 = vector.shape_cast %329 : vector<1x1x128xf32> to vector<128xf32>
    %331 = vector.shape_cast %330 : vector<128xf32> to vector<1x1x128xf32>
    %332 = vector.broadcast %331 : vector<1x1x128xf32> to vector<7x7x128xf32>
    %333 = arith.mulf %328, %332 : vector<7x7x128xf32>
    %334 = arith.addf %327, %333 : vector<7x7x128xf32>
    %335 = vector.extract_strided_slice %292 {offsets = [6, 0, 0], sizes = [7, 7, 128], strides = [1, 1, 1]} : vector<14x7x128xf32> to vector<7x7x128xf32>
    %c6_157 = arith.constant 6 : index
    %c5_158 = arith.constant 5 : index
    %c0_159 = arith.constant 0 : index
    %336 = vector.load %arg3[%c6_157, %c5_158, %c0_159] : memref<8x8x128xf32, #tpu.memory_space<vmem>>, vector<1x1x128xf32>
    %337 = vector.shape_cast %336 : vector<1x1x128xf32> to vector<128xf32>
    %338 = vector.shape_cast %337 : vector<128xf32> to vector<1x1x128xf32>
    %339 = vector.broadcast %338 : vector<1x1x128xf32> to vector<7x7x128xf32>
    %340 = arith.mulf %335, %339 : vector<7x7x128xf32>
    %341 = arith.addf %334, %340 : vector<7x7x128xf32>
    %342 = vector.extract_strided_slice %292 {offsets = [7, 0, 0], sizes = [7, 7, 128], strides = [1, 1, 1]} : vector<14x7x128xf32> to vector<7x7x128xf32>
    %c7_160 = arith.constant 7 : index
    %c5_161 = arith.constant 5 : index
    %c0_162 = arith.constant 0 : index
    %343 = vector.load %arg3[%c7_160, %c5_161, %c0_162] : memref<8x8x128xf32, #tpu.memory_space<vmem>>, vector<1x1x128xf32>
    %344 = vector.shape_cast %343 : vector<1x1x128xf32> to vector<128xf32>
    %345 = vector.shape_cast %344 : vector<128xf32> to vector<1x1x128xf32>
    %346 = vector.broadcast %345 : vector<1x1x128xf32> to vector<7x7x128xf32>
    %347 = arith.mulf %342, %346 : vector<7x7x128xf32>
    %348 = arith.addf %341, %347 : vector<7x7x128xf32>
    %c0_163 = arith.constant 0 : index
    %c6_164 = arith.constant 6 : index
    %c0_165 = arith.constant 0 : index
    %349 = vector.load %arg12[%c0_163, %c6_164, %c0_165] : memref<14x14x128xf32, #tpu.memory_space<vmem>>, vector<14x7x128xf32>
    %350 = vector.extract_strided_slice %349 {offsets = [0, 0, 0], sizes = [7, 7, 128], strides = [1, 1, 1]} : vector<14x7x128xf32> to vector<7x7x128xf32>
    %c0_166 = arith.constant 0 : index
    %c6_167 = arith.constant 6 : index
    %c0_168 = arith.constant 0 : index
    %351 = vector.load %arg3[%c0_166, %c6_167, %c0_168] : memref<8x8x128xf32, #tpu.memory_space<vmem>>, vector<1x1x128xf32>
    %352 = vector.shape_cast %351 : vector<1x1x128xf32> to vector<128xf32>
    %353 = vector.shape_cast %352 : vector<128xf32> to vector<1x1x128xf32>
    %354 = vector.broadcast %353 : vector<1x1x128xf32> to vector<7x7x128xf32>
    %355 = arith.mulf %350, %354 : vector<7x7x128xf32>
    %356 = arith.addf %348, %355 : vector<7x7x128xf32>
    %357 = vector.extract_strided_slice %349 {offsets = [1, 0, 0], sizes = [7, 7, 128], strides = [1, 1, 1]} : vector<14x7x128xf32> to vector<7x7x128xf32>
    %c1_169 = arith.constant 1 : index
    %c6_170 = arith.constant 6 : index
    %c0_171 = arith.constant 0 : index
    %358 = vector.load %arg3[%c1_169, %c6_170, %c0_171] : memref<8x8x128xf32, #tpu.memory_space<vmem>>, vector<1x1x128xf32>
    %359 = vector.shape_cast %358 : vector<1x1x128xf32> to vector<128xf32>
    %360 = vector.shape_cast %359 : vector<128xf32> to vector<1x1x128xf32>
    %361 = vector.broadcast %360 : vector<1x1x128xf32> to vector<7x7x128xf32>
    %362 = arith.mulf %357, %361 : vector<7x7x128xf32>
    %363 = arith.addf %356, %362 : vector<7x7x128xf32>
    %364 = vector.extract_strided_slice %349 {offsets = [2, 0, 0], sizes = [7, 7, 128], strides = [1, 1, 1]} : vector<14x7x128xf32> to vector<7x7x128xf32>
    %c2_172 = arith.constant 2 : index
    %c6_173 = arith.constant 6 : index
    %c0_174 = arith.constant 0 : index
    %365 = vector.load %arg3[%c2_172, %c6_173, %c0_174] : memref<8x8x128xf32, #tpu.memory_space<vmem>>, vector<1x1x128xf32>
    %366 = vector.shape_cast %365 : vector<1x1x128xf32> to vector<128xf32>
    %367 = vector.shape_cast %366 : vector<128xf32> to vector<1x1x128xf32>
    %368 = vector.broadcast %367 : vector<1x1x128xf32> to vector<7x7x128xf32>
    %369 = arith.mulf %364, %368 : vector<7x7x128xf32>
    %370 = arith.addf %363, %369 : vector<7x7x128xf32>
    %371 = vector.extract_strided_slice %349 {offsets = [3, 0, 0], sizes = [7, 7, 128], strides = [1, 1, 1]} : vector<14x7x128xf32> to vector<7x7x128xf32>
    %c3_175 = arith.constant 3 : index
    %c6_176 = arith.constant 6 : index
    %c0_177 = arith.constant 0 : index
    %372 = vector.load %arg3[%c3_175, %c6_176, %c0_177] : memref<8x8x128xf32, #tpu.memory_space<vmem>>, vector<1x1x128xf32>
    %373 = vector.shape_cast %372 : vector<1x1x128xf32> to vector<128xf32>
    %374 = vector.shape_cast %373 : vector<128xf32> to vector<1x1x128xf32>
    %375 = vector.broadcast %374 : vector<1x1x128xf32> to vector<7x7x128xf32>
    %376 = arith.mulf %371, %375 : vector<7x7x128xf32>
    %377 = arith.addf %370, %376 : vector<7x7x128xf32>
    %378 = vector.extract_strided_slice %349 {offsets = [4, 0, 0], sizes = [7, 7, 128], strides = [1, 1, 1]} : vector<14x7x128xf32> to vector<7x7x128xf32>
    %c4_178 = arith.constant 4 : index
    %c6_179 = arith.constant 6 : index
    %c0_180 = arith.constant 0 : index
    %379 = vector.load %arg3[%c4_178, %c6_179, %c0_180] : memref<8x8x128xf32, #tpu.memory_space<vmem>>, vector<1x1x128xf32>
    %380 = vector.shape_cast %379 : vector<1x1x128xf32> to vector<128xf32>
    %381 = vector.shape_cast %380 : vector<128xf32> to vector<1x1x128xf32>
    %382 = vector.broadcast %381 : vector<1x1x128xf32> to vector<7x7x128xf32>
    %383 = arith.mulf %378, %382 : vector<7x7x128xf32>
    %384 = arith.addf %377, %383 : vector<7x7x128xf32>
    %385 = vector.extract_strided_slice %349 {offsets = [5, 0, 0], sizes = [7, 7, 128], strides = [1, 1, 1]} : vector<14x7x128xf32> to vector<7x7x128xf32>
    %c5_181 = arith.constant 5 : index
    %c6_182 = arith.constant 6 : index
    %c0_183 = arith.constant 0 : index
    %386 = vector.load %arg3[%c5_181, %c6_182, %c0_183] : memref<8x8x128xf32, #tpu.memory_space<vmem>>, vector<1x1x128xf32>
    %387 = vector.shape_cast %386 : vector<1x1x128xf32> to vector<128xf32>
    %388 = vector.shape_cast %387 : vector<128xf32> to vector<1x1x128xf32>
    %389 = vector.broadcast %388 : vector<1x1x128xf32> to vector<7x7x128xf32>
    %390 = arith.mulf %385, %389 : vector<7x7x128xf32>
    %391 = arith.addf %384, %390 : vector<7x7x128xf32>
    %392 = vector.extract_strided_slice %349 {offsets = [6, 0, 0], sizes = [7, 7, 128], strides = [1, 1, 1]} : vector<14x7x128xf32> to vector<7x7x128xf32>
    %c6_184 = arith.constant 6 : index
    %c6_185 = arith.constant 6 : index
    %c0_186 = arith.constant 0 : index
    %393 = vector.load %arg3[%c6_184, %c6_185, %c0_186] : memref<8x8x128xf32, #tpu.memory_space<vmem>>, vector<1x1x128xf32>
    %394 = vector.shape_cast %393 : vector<1x1x128xf32> to vector<128xf32>
    %395 = vector.shape_cast %394 : vector<128xf32> to vector<1x1x128xf32>
    %396 = vector.broadcast %395 : vector<1x1x128xf32> to vector<7x7x128xf32>
    %397 = arith.mulf %392, %396 : vector<7x7x128xf32>
    %398 = arith.addf %391, %397 : vector<7x7x128xf32>
    %399 = vector.extract_strided_slice %349 {offsets = [7, 0, 0], sizes = [7, 7, 128], strides = [1, 1, 1]} : vector<14x7x128xf32> to vector<7x7x128xf32>
    %c7_187 = arith.constant 7 : index
    %c6_188 = arith.constant 6 : index
    %c0_189 = arith.constant 0 : index
    %400 = vector.load %arg3[%c7_187, %c6_188, %c0_189] : memref<8x8x128xf32, #tpu.memory_space<vmem>>, vector<1x1x128xf32>
    %401 = vector.shape_cast %400 : vector<1x1x128xf32> to vector<128xf32>
    %402 = vector.shape_cast %401 : vector<128xf32> to vector<1x1x128xf32>
    %403 = vector.broadcast %402 : vector<1x1x128xf32> to vector<7x7x128xf32>
    %404 = arith.mulf %399, %403 : vector<7x7x128xf32>
    %405 = arith.addf %398, %404 : vector<7x7x128xf32>
    %c0_190 = arith.constant 0 : index
    %c7_191 = arith.constant 7 : index
    %c0_192 = arith.constant 0 : index
    %406 = vector.load %arg12[%c0_190, %c7_191, %c0_192] : memref<14x14x128xf32, #tpu.memory_space<vmem>>, vector<14x7x128xf32>
    %407 = vector.extract_strided_slice %406 {offsets = [0, 0, 0], sizes = [7, 7, 128], strides = [1, 1, 1]} : vector<14x7x128xf32> to vector<7x7x128xf32>
    %c0_193 = arith.constant 0 : index
    %c7_194 = arith.constant 7 : index
    %c0_195 = arith.constant 0 : index
    %408 = vector.load %arg3[%c0_193, %c7_194, %c0_195] : memref<8x8x128xf32, #tpu.memory_space<vmem>>, vector<1x1x128xf32>
    %409 = vector.shape_cast %408 : vector<1x1x128xf32> to vector<128xf32>
    %410 = vector.shape_cast %409 : vector<128xf32> to vector<1x1x128xf32>
    %411 = vector.broadcast %410 : vector<1x1x128xf32> to vector<7x7x128xf32>
    %412 = arith.mulf %407, %411 : vector<7x7x128xf32>
    %413 = arith.addf %405, %412 : vector<7x7x128xf32>
    %414 = vector.extract_strided_slice %406 {offsets = [1, 0, 0], sizes = [7, 7, 128], strides = [1, 1, 1]} : vector<14x7x128xf32> to vector<7x7x128xf32>
    %c1_196 = arith.constant 1 : index
    %c7_197 = arith.constant 7 : index
    %c0_198 = arith.constant 0 : index
    %415 = vector.load %arg3[%c1_196, %c7_197, %c0_198] : memref<8x8x128xf32, #tpu.memory_space<vmem>>, vector<1x1x128xf32>
    %416 = vector.shape_cast %415 : vector<1x1x128xf32> to vector<128xf32>
    %417 = vector.shape_cast %416 : vector<128xf32> to vector<1x1x128xf32>
    %418 = vector.broadcast %417 : vector<1x1x128xf32> to vector<7x7x128xf32>
    %419 = arith.mulf %414, %418 : vector<7x7x128xf32>
    %420 = arith.addf %413, %419 : vector<7x7x128xf32>
    %421 = vector.extract_strided_slice %406 {offsets = [2, 0, 0], sizes = [7, 7, 128], strides = [1, 1, 1]} : vector<14x7x128xf32> to vector<7x7x128xf32>
    %c2_199 = arith.constant 2 : index
    %c7_200 = arith.constant 7 : index
    %c0_201 = arith.constant 0 : index
    %422 = vector.load %arg3[%c2_199, %c7_200, %c0_201] : memref<8x8x128xf32, #tpu.memory_space<vmem>>, vector<1x1x128xf32>
    %423 = vector.shape_cast %422 : vector<1x1x128xf32> to vector<128xf32>
    %424 = vector.shape_cast %423 : vector<128xf32> to vector<1x1x128xf32>
    %425 = vector.broadcast %424 : vector<1x1x128xf32> to vector<7x7x128xf32>
    %426 = arith.mulf %421, %425 : vector<7x7x128xf32>
    %427 = arith.addf %420, %426 : vector<7x7x128xf32>
    %428 = vector.extract_strided_slice %406 {offsets = [3, 0, 0], sizes = [7, 7, 128], strides = [1, 1, 1]} : vector<14x7x128xf32> to vector<7x7x128xf32>
    %c3_202 = arith.constant 3 : index
    %c7_203 = arith.constant 7 : index
    %c0_204 = arith.constant 0 : index
    %429 = vector.load %arg3[%c3_202, %c7_203, %c0_204] : memref<8x8x128xf32, #tpu.memory_space<vmem>>, vector<1x1x128xf32>
    %430 = vector.shape_cast %429 : vector<1x1x128xf32> to vector<128xf32>
    %431 = vector.shape_cast %430 : vector<128xf32> to vector<1x1x128xf32>
    %432 = vector.broadcast %431 : vector<1x1x128xf32> to vector<7x7x128xf32>
    %433 = arith.mulf %428, %432 : vector<7x7x128xf32>
    %434 = arith.addf %427, %433 : vector<7x7x128xf32>
    %435 = vector.extract_strided_slice %406 {offsets = [4, 0, 0], sizes = [7, 7, 128], strides = [1, 1, 1]} : vector<14x7x128xf32> to vector<7x7x128xf32>
    %c4_205 = arith.constant 4 : index
    %c7_206 = arith.constant 7 : index
    %c0_207 = arith.constant 0 : index
    %436 = vector.load %arg3[%c4_205, %c7_206, %c0_207] : memref<8x8x128xf32, #tpu.memory_space<vmem>>, vector<1x1x128xf32>
    %437 = vector.shape_cast %436 : vector<1x1x128xf32> to vector<128xf32>
    %438 = vector.shape_cast %437 : vector<128xf32> to vector<1x1x128xf32>
    %439 = vector.broadcast %438 : vector<1x1x128xf32> to vector<7x7x128xf32>
    %440 = arith.mulf %435, %439 : vector<7x7x128xf32>
    %441 = arith.addf %434, %440 : vector<7x7x128xf32>
    %442 = vector.extract_strided_slice %406 {offsets = [5, 0, 0], sizes = [7, 7, 128], strides = [1, 1, 1]} : vector<14x7x128xf32> to vector<7x7x128xf32>
    %c5_208 = arith.constant 5 : index
    %c7_209 = arith.constant 7 : index
    %c0_210 = arith.constant 0 : index
    %443 = vector.load %arg3[%c5_208, %c7_209, %c0_210] : memref<8x8x128xf32, #tpu.memory_space<vmem>>, vector<1x1x128xf32>
    %444 = vector.shape_cast %443 : vector<1x1x128xf32> to vector<128xf32>
    %445 = vector.shape_cast %444 : vector<128xf32> to vector<1x1x128xf32>
    %446 = vector.broadcast %445 : vector<1x1x128xf32> to vector<7x7x128xf32>
    %447 = arith.mulf %442, %446 : vector<7x7x128xf32>
    %448 = arith.addf %441, %447 : vector<7x7x128xf32>
    %449 = vector.extract_strided_slice %406 {offsets = [6, 0, 0], sizes = [7, 7, 128], strides = [1, 1, 1]} : vector<14x7x128xf32> to vector<7x7x128xf32>
    %c6_211 = arith.constant 6 : index
    %c7_212 = arith.constant 7 : index
    %c0_213 = arith.constant 0 : index
    %450 = vector.load %arg3[%c6_211, %c7_212, %c0_213] : memref<8x8x128xf32, #tpu.memory_space<vmem>>, vector<1x1x128xf32>
    %451 = vector.shape_cast %450 : vector<1x1x128xf32> to vector<128xf32>
    %452 = vector.shape_cast %451 : vector<128xf32> to vector<1x1x128xf32>
    %453 = vector.broadcast %452 : vector<1x1x128xf32> to vector<7x7x128xf32>
    %454 = arith.mulf %449, %453 : vector<7x7x128xf32>
    %455 = arith.addf %448, %454 : vector<7x7x128xf32>
    %456 = vector.extract_strided_slice %406 {offsets = [7, 0, 0], sizes = [7, 7, 128], strides = [1, 1, 1]} : vector<14x7x128xf32> to vector<7x7x128xf32>
    %c7_214 = arith.constant 7 : index
    %c7_215 = arith.constant 7 : index
    %c0_216 = arith.constant 0 : index
    %457 = vector.load %arg3[%c7_214, %c7_215, %c0_216] : memref<8x8x128xf32, #tpu.memory_space<vmem>>, vector<1x1x128xf32>
    %458 = vector.shape_cast %457 : vector<1x1x128xf32> to vector<128xf32>
    %459 = vector.shape_cast %458 : vector<128xf32> to vector<1x1x128xf32>
    %460 = vector.broadcast %459 : vector<1x1x128xf32> to vector<7x7x128xf32>
    %461 = arith.mulf %456, %460 : vector<7x7x128xf32>
    %462 = arith.addf %455, %461 : vector<7x7x128xf32>
    %c0_217 = arith.constant 0 : index
    %c0_218 = arith.constant 0 : index
    %463 = vector.load %arg4[%c0_217, %c0_218] : memref<1x128xf32, #tpu.memory_space<vmem>>, vector<1x128xf32>
    %464 = vector.shape_cast %463 : vector<1x128xf32> to vector<128xf32>
    %465 = vector.shape_cast %464 : vector<128xf32> to vector<1x1x128xf32>
    %466 = vector.broadcast %465 : vector<1x1x128xf32> to vector<7x7x128xf32>
    %467 = arith.addf %462, %466 : vector<7x7x128xf32>
    %cst_219 = arith.constant dense<0.000000e+00> : vector<7x7xf32>
    %468 = vector.multi_reduction <add>, %467, %cst_219 [2] : vector<7x7x128xf32> to vector<7x7xf32>
    %469 = vector.shape_cast %468 : vector<7x7xf32> to vector<7x7x1xf32>
    %cst_220 = arith.constant 1.280000e+02 : f32
    %470 = vector.broadcast %cst_220 : f32 to vector<7x7x1xf32>
    %471 = arith.divf %469, %470 : vector<7x7x1xf32>
    %472 = vector.broadcast %471 : vector<7x7x1xf32> to vector<7x7x128xf32>
    %473 = arith.subf %467, %472 : vector<7x7x128xf32>
    %474 = math.absf %473 : vector<7x7x128xf32>
    %cst_221 = arith.constant 3.000000e-05 : f32
    %475 = vector.broadcast %cst_221 : f32 to vector<7x7x128xf32>
    %476 = arith.addf %474, %475 : vector<7x7x128xf32>
    %c1_i32 = arith.constant 1 : i32
    %477 = tpu.dynamic_rotate %467 by %c1_i32 dim 2 : vector<7x7x128xf32>, i32 -> vector<7x7x128xf32>
    %478 = vector.broadcast %471 : vector<7x7x1xf32> to vector<7x7x128xf32>
    %479 = arith.subf %477, %478 : vector<7x7x128xf32>
    %480 = math.absf %479 : vector<7x7x128xf32>
    %481 = arith.addf %476, %480 : vector<7x7x128xf32>
    %c127_i32 = arith.constant 127 : i32
    %482 = tpu.dynamic_rotate %467 by %c127_i32 dim 2 : vector<7x7x128xf32>, i32 -> vector<7x7x128xf32>
    %483 = vector.broadcast %471 : vector<7x7x1xf32> to vector<7x7x128xf32>
    %484 = arith.subf %482, %483 : vector<7x7x128xf32>
    %485 = math.absf %484 : vector<7x7x128xf32>
    %486 = arith.addf %481, %485 : vector<7x7x128xf32>
    %487 = tpu.reciprocal %486 {approx = true} : vector<7x7x128xf32> -> vector<7x7x128xf32>
    %488 = arith.mulf %467, %487 : vector<7x7x128xf32>
    %489 = vector.shape_cast %488 : vector<7x7x128xf32> to vector<49x128xf32>
    %c0_222 = arith.constant 0 : index
    %c0_223 = arith.constant 0 : index
    %490 = vector.load %arg5[%c0_222, %c0_223] : memref<128x128xf32, #tpu.memory_space<vmem>>, vector<128x128xf32>
    %491 = arith.mulf %489, %489 : vector<49x128xf32>
    %cst_224 = arith.constant dense<0.000000e+00> : vector<49x128xf32>
    %492 = tpu.matmul %491, %490, %cst_224 {dimension_numbers = #tpu.dot_dimension_numbers<[1], [0], [0], [1], [0, 0, 1, 1], [], []>} : vector<49x128xf32>, vector<128x128xf32>, vector<49x128xf32> -> vector<49x128xf32>
    %cst_225 = arith.constant 9.99999996E-13 : f32
    %493 = vector.broadcast %cst_225 : f32 to vector<49x128xf32>
    %494 = arith.addf %492, %493 : vector<49x128xf32>
    %495 = math.rsqrt %494 : vector<49x128xf32>
    %496 = arith.mulf %492, %495 : vector<49x128xf32>
    %cst_226 = arith.constant 0.000000e+00 : f32
    %497 = vector.broadcast %cst_226 : f32 to vector<49x128xf32>
    %498 = arith.subf %497, %496 : vector<49x128xf32>
    %499 = math.exp %498 : vector<49x128xf32>
    %cst_227 = arith.constant 1.000000e+00 : f32
    %500 = vector.broadcast %cst_227 : f32 to vector<49x128xf32>
    %501 = arith.subf %500, %499 : vector<49x128xf32>
    %502 = arith.mulf %501, %495 : vector<49x128xf32>
    %503 = arith.mulf %502, %489 : vector<49x128xf32>
    %cst_228 = arith.constant dense<0.000000e+00> : vector<49x128xf32>
    %504 = tpu.matmul %503, %490, %cst_228 {dimension_numbers = #tpu.dot_dimension_numbers<[1], [0], [0], [1], [0, 0, 1, 1], [], []>} : vector<49x128xf32>, vector<128x128xf32>, vector<49x128xf32> -> vector<49x128xf32>
    %505 = vector.shape_cast %504 : vector<49x128xf32> to vector<7x7x128xf32>
    %c0_229 = arith.constant 0 : index
    %c0_230 = arith.constant 0 : index
    %c0_231 = arith.constant 0 : index
    %506 = vector.load %arg13[%c0_229, %c0_230, %c0_231] : memref<7x7x128xf32, #tpu.memory_space<vmem>>, vector<7x7x128xf32>
    tpu.vector_store %arg13[%c0_229, %c0_230, %c0_231], %505 {strides = array<i32>} : memref<7x7x128xf32, #tpu.memory_space<vmem>>, vector<7x7x128xf32>,
    %c0_232 = arith.constant 0 : index
    %c0_233 = arith.constant 0 : index
    %507 = vector.load %arg6[%c0_232, %c0_233] : memref<32x128xf32, #tpu.memory_space<vmem>>, vector<32x128xf32>
    %c0_234 = arith.constant 0 : index
    %c0_235 = arith.constant 0 : index
    %508 = vector.load %arg7[%c0_234, %c0_235] : memref<32x128xf32, #tpu.memory_space<vmem>>, vector<32x128xf32>
    %c0_236 = arith.constant 0 : index
    %c0_237 = arith.constant 0 : index
    %509 = vector.load %arg8[%c0_236, %c0_237] : memref<128x128xf32, #tpu.memory_space<vmem>>, vector<128x128xf32>
    %c0_238 = arith.constant 0 : index
    %c0_239 = arith.constant 0 : index
    %510 = vector.load %arg9[%c0_238, %c0_239] : memref<32x32xf32, #tpu.memory_space<vmem>>, vector<32x32xf32>
    %cst_240 = arith.constant 0.000000e+00 : f32
    %cst_241 = arith.constant 0.000000e+00 : f32
    %c0_i32 = arith.constant 0 : i32
    %c7_i32 = arith.constant 7 : i32
    %511 = arith.addi %c0_i32, %c7_i32 : i32
    %c1_i32_242 = arith.constant 1 : i32
    %512:2 = scf.for %arg14 = %c0_i32 to %511 step %c1_i32_242 iter_args(%arg15 = %cst_240, %arg16 = %cst_241) -> (f32, f32)  : i32 {
      %525 = arith.index_cast %arg14 : i32 to index
      %c0_249 = arith.constant 0 : index
      %c0_250 = arith.constant 0 : index
      %526 = vector.load %arg13[%525, %c0_249, %c0_250] : memref<7x7x128xf32, #tpu.memory_space<vmem>>, vector<1x7x128xf32>
      %527 = vector.shape_cast %526 : vector<1x7x128xf32> to vector<7x128xf32>
      %528 = vector.shape_cast %527 : vector<7x128xf32> to vector<7x1x128xf32>
      %529 = vector.shape_cast %507 : vector<32x128xf32> to vector<1x32x128xf32>
      %530 = vector.broadcast %528 : vector<7x1x128xf32> to vector<7x32x128xf32>
      %531 = vector.broadcast %529 : vector<1x32x128xf32> to vector<7x32x128xf32>
      %532 = arith.mulf %530, %531 : vector<7x32x128xf32>
      %533 = arith.mulf %532, %532 : vector<7x32x128xf32>
      %534 = vector.shape_cast %533 : vector<7x32x128xf32> to vector<224x128xf32>
      %cst_251 = arith.constant dense<0.000000e+00> : vector<224x128xf32>
      %535 = tpu.matmul %534, %509, %cst_251 {dimension_numbers = #tpu.dot_dimension_numbers<[1], [0], [0], [1], [0, 0, 1, 1], [], []>} : vector<224x128xf32>, vector<128x128xf32>, vector<224x128xf32> -> vector<224x128xf32>
      %536 = vector.shape_cast %535 : vector<224x128xf32> to vector<7x32x128xf32>
      %537 = vector.shape_cast %508 : vector<32x128xf32> to vector<1x32x128xf32>
      %538 = vector.broadcast %537 : vector<1x32x128xf32> to vector<7x32x128xf32>
      %539 = arith.mulf %536, %538 : vector<7x32x128xf32>
      %540 = math.exp %539 : vector<7x32x128xf32>
      %541 = vector.shape_cast %540 : vector<7x32x128xf32> to vector<224x128xf32>
      %cst_252 = arith.constant dense<0.000000e+00> : vector<224x128xf32>
      %542 = tpu.matmul %541, %509, %cst_252 {dimension_numbers = #tpu.dot_dimension_numbers<[1], [0], [0], [1], [0, 0, 1, 1], [], []>} : vector<224x128xf32>, vector<128x128xf32>, vector<224x128xf32> -> vector<224x128xf32>
      %543 = vector.shape_cast %542 : vector<224x128xf32> to vector<7x32x128xf32>
      %544 = arith.mulf %532, %540 : vector<7x32x128xf32>
      %545 = tpu.reciprocal %543 {approx = true} : vector<7x32x128xf32> -> vector<7x32x128xf32>
      %546 = arith.mulf %544, %545 : vector<7x32x128xf32>
      %cst_253 = arith.constant dense<0.000000e+00> : vector<7x32xf32>
      %547 = vector.multi_reduction <add>, %546, %cst_253 [2] : vector<7x32x128xf32> to vector<7x32xf32>
      %cst_254 = arith.constant 9.99999974E-5 : f32
      %548 = vector.broadcast %cst_254 : f32 to vector<7x32xf32>
      %549 = arith.addf %547, %548 : vector<7x32xf32>
      %550 = arith.mulf %549, %549 : vector<7x32xf32>
      %cst_255 = arith.constant dense<0.000000e+00> : vector<7x32xf32>
      %551 = tpu.matmul %550, %510, %cst_255 {dimension_numbers = #tpu.dot_dimension_numbers<[1], [0], [0], [1], [0, 0, 1, 1], [], []>} : vector<7x32xf32>, vector<32x32xf32>, vector<7x32xf32> -> vector<7x32xf32>
      %cst_256 = arith.constant 1.000000e+00 : f32
      %552 = vector.broadcast %cst_256 : f32 to vector<7x32xf32>
      %553 = arith.addf %552, %551 : vector<7x32xf32>
      %554 = tpu.reciprocal %553 {approx = true} : vector<7x32xf32> -> vector<7x32xf32>
      %555 = arith.mulf %551, %554 : vector<7x32xf32>
      %556 = arith.mulf %555, %549 : vector<7x32xf32>
      %cst_257 = arith.constant 9.99999996E-13 : f32
      %557 = vector.broadcast %cst_257 : f32 to vector<7x32xf32>
      %558 = arith.addf %551, %557 : vector<7x32xf32>
      %559 = math.rsqrt %558 : vector<7x32xf32>
      %560 = arith.mulf %556, %559 : vector<7x32xf32>
      %c0_258 = arith.constant 0 : index
      %561 = arith.index_cast %arg14 : i32 to index
      %c0_259 = arith.constant 0 : index
      %c0_260 = arith.constant 0 : index
      %562 = vector.load %arg10[%c0_258, %561, %c0_259, %c0_260] : memref<1x7x7x32xf32, #tpu.memory_space<vmem>>, vector<1x1x7x32xf32>
      %563 = vector.shape_cast %562 : vector<1x1x7x32xf32> to vector<7x32xf32>
      %564 = vector.shape_cast %560 : vector<7x32xf32> to vector<1x1x7x32xf32>
      tpu.vector_store %arg10[%c0_258, %561, %c0_259, %c0_260], %564 {strides = array<i32>} : memref<1x7x7x32xf32, #tpu.memory_space<vmem>>, vector<1x1x7x32xf32>,
      %565 = tpu.iota {dimensions = array<i32: 0>} : vector<7x32xi32>
      %566 = tpu.iota {dimensions = array<i32: 1>} : vector<7x32xi32>
      %c7_i32_261 = arith.constant 7 : i32
      %567 = arith.muli %arg14, %c7_i32_261 : i32
      %568 = vector.broadcast %567 : i32 to vector<7x32xi32>
      %569 = arith.addi %568, %565 : vector<7x32xi32>
      %c32_i32 = arith.constant 32 : i32
      %570 = vector.broadcast %c32_i32 : i32 to vector<7x32xi32>
      %571 = arith.muli %569, %570 : vector<7x32xi32>
      %572 = arith.addi %571, %566 : vector<7x32xi32>
      %573 = arith.mulf %560, %560 : vector<7x32xf32>
      %c784_i32 = arith.constant 784 : i32
      %574 = vector.broadcast %c784_i32 : i32 to vector<7x32xi32>
      %575 = arith.cmpi slt, %572, %574 : vector<7x32xi32>
      %cst_262 = arith.constant 0.000000e+00 : f32
      %576 = vector.broadcast %cst_262 : f32 to vector<7x32xf32>
      %577 = arith.select %575, %573, %576 : vector<7x32xi1>, vector<7x32xf32>
      %578 = vector.shape_cast %577 : vector<7x32xf32> to vector<1x7x32xf32>
      %cst_263 = arith.constant dense<0.000000e+00> : vector<1xf32>
      %579 = vector.multi_reduction <add>, %578, %cst_263 [1, 2] : vector<1x7x32xf32> to vector<1xf32>
      %580 = vector.shape_cast %579 : vector<1xf32> to vector<1x1x1xf32>
      %581 = vector.extract %580[0, 0, 0] : f32 from vector<1x1x1xf32>
      %582 = arith.addf %arg15, %581 : f32
      %c784_i32_264 = arith.constant 784 : i32
      %583 = vector.broadcast %c784_i32_264 : i32 to vector<7x32xi32>
      %584 = arith.cmpi sge, %572, %583 : vector<7x32xi32>
      %cst_265 = arith.constant 0.000000e+00 : f32
      %585 = vector.broadcast %cst_265 : f32 to vector<7x32xf32>
      %586 = arith.select %584, %573, %585 : vector<7x32xi1>, vector<7x32xf32>
      %587 = vector.shape_cast %586 : vector<7x32xf32> to vector<1x7x32xf32>
      %cst_266 = arith.constant dense<0.000000e+00> : vector<1xf32>
      %588 = vector.multi_reduction <add>, %587, %cst_266 [1, 2] : vector<1x7x32xf32> to vector<1xf32>
      %589 = vector.shape_cast %588 : vector<1xf32> to vector<1x1x1xf32>
      %590 = vector.extract %589[0, 0, 0] : f32 from vector<1x1x1xf32>
      %591 = arith.addf %arg16, %590 : f32
      scf.yield %582, %591 : f32, f32
    }
    %c7_i32_243 = arith.constant 7 : i32
    %513 = tpu.iota {dimensions = array<i32: 1>} : vector<1x2xi32>
    %c0_i32_244 = arith.constant 0 : i32
    %514 = vector.broadcast %c0_i32_244 : i32 to vector<1x2xi32>
    %515 = arith.cmpi eq, %513, %514 : vector<1x2xi32>
    %516 = vector.broadcast %512#0 : f32 to vector<1x2xf32>
    %517 = vector.broadcast %512#1 : f32 to vector<1x2xf32>
    %518 = arith.select %515, %516, %517 : vector<1x2xi1>, vector<1x2xf32>
    %cst_245 = arith.constant 1.000000e-10 : f32
    %519 = vector.broadcast %cst_245 : f32 to vector<1x2xf32>
    %520 = arith.addf %518, %519 : vector<1x2xf32>
    %521 = math.sqrt %520 : vector<1x2xf32>
    %c0_246 = arith.constant 0 : index
    %c0_247 = arith.constant 0 : index
    %c0_248 = arith.constant 0 : index
    %522 = vector.load %arg11[%c0_246, %c0_247, %c0_248] : memref<1x1x2xf32, #tpu.memory_space<vmem>>, vector<1x1x2xf32>
    %523 = vector.shape_cast %522 : vector<1x1x2xf32> to vector<1x2xf32>
    %524 = vector.shape_cast %521 : vector<1x2xf32> to vector<1x1x2xf32>
    tpu.vector_store %arg11[%c0_246, %c0_247, %c0_248], %524 {strides = array<i32>} : memref<1x1x2xf32, #tpu.memory_space<vmem>>, vector<1x1x2xf32>,
    return
  }
  func.func @transform_0(%arg0: i32) -> (i32, i32, i32) {
    %c0_i32 = arith.constant 0 : i32
    %c0_i32_0 = arith.constant 0 : i32
    %c0_i32_1 = arith.constant 0 : i32
    return %arg0, %c0_i32, %c0_i32_0 : i32, i32, i32
  }
  func.func @transform_1(%arg0: i32) -> (i32, i32) {
    %c0_i32 = arith.constant 0 : i32
    %c0_i32_0 = arith.constant 0 : i32
    %c0_i32_1 = arith.constant 0 : i32
    return %c0_i32, %c0_i32_0 : i32, i32
  }
  func.func @transform_2(%arg0: i32) -> (i32, i32, i32) {
    %c0_i32 = arith.constant 0 : i32
    %c0_i32_0 = arith.constant 0 : i32
    %c0_i32_1 = arith.constant 0 : i32
    %c0_i32_2 = arith.constant 0 : i32
    return %c0_i32, %c0_i32_0, %c0_i32_1 : i32, i32, i32
  }
  func.func @transform_3(%arg0: i32) -> (i32, i32) {
    %c0_i32 = arith.constant 0 : i32
    %c0_i32_0 = arith.constant 0 : i32
    %c0_i32_1 = arith.constant 0 : i32
    return %c0_i32, %c0_i32_0 : i32, i32
  }
  func.func @transform_4(%arg0: i32) -> (i32, i32) {
    %c0_i32 = arith.constant 0 : i32
    %c0_i32_0 = arith.constant 0 : i32
    %c0_i32_1 = arith.constant 0 : i32
    return %c0_i32, %c0_i32_0 : i32, i32
  }
  func.func @transform_5(%arg0: i32) -> (i32, i32) {
    %c0_i32 = arith.constant 0 : i32
    %c0_i32_0 = arith.constant 0 : i32
    %c0_i32_1 = arith.constant 0 : i32
    return %c0_i32, %c0_i32_0 : i32, i32
  }
  func.func @transform_6(%arg0: i32) -> (i32, i32) {
    %c0_i32 = arith.constant 0 : i32
    %c0_i32_0 = arith.constant 0 : i32
    %c0_i32_1 = arith.constant 0 : i32
    return %c0_i32, %c0_i32_0 : i32, i32
  }
  func.func @transform_7(%arg0: i32) -> (i32, i32) {
    %c0_i32 = arith.constant 0 : i32
    %c0_i32_0 = arith.constant 0 : i32
    %c0_i32_1 = arith.constant 0 : i32
    return %c0_i32, %c0_i32_0 : i32, i32
  }
  func.func @transform_8(%arg0: i32) -> (i32, i32) {
    %c0_i32 = arith.constant 0 : i32
    %c0_i32_0 = arith.constant 0 : i32
    %c0_i32_1 = arith.constant 0 : i32
    return %c0_i32, %c0_i32_0 : i32, i32
  }
  func.func @transform_9(%arg0: i32) -> (i32, i32, i32, i32) {
    %c0_i32 = arith.constant 0 : i32
    %c0_i32_0 = arith.constant 0 : i32
    %c0_i32_1 = arith.constant 0 : i32
    %c0_i32_2 = arith.constant 0 : i32
    return %arg0, %c0_i32, %c0_i32_0, %c0_i32_1 : i32, i32, i32, i32
  }
  func.func @transform_10(%arg0: i32) -> (i32, i32, i32) {
    %c0_i32 = arith.constant 0 : i32
    %c0_i32_0 = arith.constant 0 : i32
    %c0_i32_1 = arith.constant 0 : i32
    return %arg0, %c0_i32, %c0_i32_0 : i32, i32, i32
  }
}

</mosaic_0001>

<llo_original>
// kernel: final_capsnet_forward.1
$region0: #{final_capsnet_forward.1}
  #allocation0 [shape = 'u32[]', space=smem, size = 0x4, offset = 0x4, fixed_abs, tag = 'smem constant byte address 0x4 - core index']
  #allocation1 [shape = 'u32[72,128]{1,0:T(1,128)}', space=vmem, size = 0x9000, scoped, tag = 'internal scratch']
  #allocation2 [shape = 'f32[14,14,128]{2,1,0:T(8,128)}', space=vmem, size = 0x1c000, scoped, tag = 'scratch operand']
  #allocation3 [shape = 'f32[7,7,128]{2,1,0:T(8,128)}', space=vmem, size = 0x7000, scoped, tag = 'scratch operand']
  %s0 = inlined_call_operand.vmem [shape: f32[2,196,36], index: 0, kind: input, shape index: {}]
  %s1 = inlined_call_operand.vmem [shape: f32[36,128], index: 1, kind: input, shape index: {}]
  %s2 = inlined_call_operand.vmem [shape: f32[8,8,128], index: 2, kind: input, shape index: {}]
  %s3 = inlined_call_operand.vmem [shape: f32[1,128], index: 3, kind: input, shape index: {}]
  %s4 = inlined_call_operand.vmem [shape: f32[128,128], index: 4, kind: input, shape index: {}]
  %s5 = inlined_call_operand.vmem [shape: f32[32,128], index: 5, kind: input, shape index: {}]
  %s6 = inlined_call_operand.vmem [shape: f32[32,128], index: 6, kind: input, shape index: {}]
  %s7 = inlined_call_operand.vmem [shape: f32[128,128], index: 7, kind: input, shape index: {}]
  %s8 = inlined_call_operand.vmem [shape: f32[32,32], index: 8, kind: input, shape index: {}]
  %s9 = inlined_call_operand.vmem [shape: f32[2,7,7,32], index: 9, kind: output, shape index: {0}]
  %s10 = inlined_call_operand.hbm [shape: f32[2,1,2], index: 10, kind: output, shape index: {1}]
  %11 = xla_tuple %s9, %s10
  %s12 = sld [smem:[#allocation0]]
  $region84: #{final_capsnet_forward.1} parent=0
    _
  %s14 = ssub.s32 1, %s12
  %s15 = scalar_select 0, %s14, %s12
  $region1: #{final_capsnet_forward.1} parent=0
    #allocation4 [shape = 'u8[1024]{0}', space=vmem, size = 0x400, scoped, tag = 'output window, operand 1']
    #allocation5 [shape = 's32[2]{0}', space=sflag, size = 0x8, scoped, tag = 'scoped memory for final_capsnet_forward.1']
    %16 = vsyncpa [#allocation5], 0
    %s17 = scalar_lea.sflag [#allocation5], 1
    %18 = vsyncpa %s17, 0
    loop: start=0, step=1, limit=4
    $region2: #{final_capsnet_forward.1} parent=1 // loop_pre_header
      _
    $region3: #{final_capsnet_forward.1} parent=1 // loop_header
      %s20 = sphi 0, %s24
      %p21 = scmp.ge.s32.totalorder %s20, 4
      %s30 = sphi 0, %s32
      %s33 = sphi 0, %s30
      %s34 = sphi 0, %s33
      %s50 = sphi 0, %s34
      %s54 = sphi 0, %s54
      %s56 = sphi 0, %s54
      %s57 = sphi 0, %s56
      %s71 = sphi 0, %s57
      %s75 = sphi 0, %s75
      %s77 = sphi 0, %s75
      %s78 = sphi 0, %s77
      %s92 = sphi 0, %s78
      %s96 = sphi 0, %s96
      %s98 = sphi 0, %s96
      %s99 = sphi 0, %s98
      %s113 = sphi 0, %s99
      %s117 = sphi 0, %s117
      %s119 = sphi 0, %s117
      %s120 = sphi 0, %s119
      %s134 = sphi 0, %s120
      %s138 = sphi 0, %s138
      %s140 = sphi 0, %s138
      %s141 = sphi 0, %s140
      %s155 = sphi 0, %s141
      %s159 = sphi 0, %s159
      %s161 = sphi 0, %s159
      %s162 = sphi 0, %s161
      %s176 = sphi 0, %s162
      %s180 = sphi 0, %s180
      %s182 = sphi 0, %s180
      %s183 = sphi 0, %s182
      %s197 = sphi 0, %s183
      %s201 = sphi 0, %s201
      %s203 = sphi 0, %s201
      %s204 = sphi 0, %s203
      %s218 = sphi 0, %s204
      %s224 = sphi 0, %s226
      %s227 = sphi 0, %s224
      %s228 = sphi 0, %s227
      %s244 = sphi 0, %s228
      %s250 = sphi 0, %s252
      %s253 = sphi 0, %s250
      %s254 = sphi 0, %s253
      %s270 = sphi 0, %s254
    $region4: #{final_capsnet_forward.1} parent=1 // loop_header_branch
      %23 = sbr.rel (%p21) target = $region8
    $region5: #{final_capsnet_forward.1} parent=1 // loop_body
      %s25 = ssub.s32 %s20, 1
      %s26 = ssub.s32 %s20, 2
      %s27 = sadd.s32 %s20, 1
      %s28 = ssub.s32 %s20, %s27
      %p29 = scmp.eq.s32.totalorder %s28, 0
      %s31 = sadd.s32 %s30, 1
      %s32 = scalar_select %p29, %s30, %s31
      %p35 = pneg %p29
      %p36 = scmp.eq.s32.totalorder %s20, 1
      %p37 = por %p35, %p36
      %p38 = scmp.ne.s32.totalorder %s30, %s33
      %p39 = scmp.eq.s32.totalorder %s20, 0
      %p40 = por %p38, %p39
      %p41 = scmp.ne.s32.totalorder %s30, %s33
      %p42 = scmp.eq.s32.totalorder %s25, 1
      %p43 = por %p41, %p42
      %p44 = scmp.ne.s32.totalorder %s33, %s34
      %p45 = scmp.eq.s32.totalorder %s25, 0
      %p46 = por %p44, %p45
      %p47 = scmp.ne.s32.totalorder %s33, %s34
      %p48 = scmp.eq.s32.totalorder %s26, 1
      %p49 = por %p47, %p48
      %p51 = scmp.ne.s32.totalorder %s34, %s50
      %p52 = scmp.eq.s32.totalorder %s26, 0
      %p53 = por %p51, %p52
      %s55 = sadd.s32 %s54, 1
      %p58 = scmp.eq.s32.totalorder %s20, 1
      %p59 = scmp.ne.s32.totalorder %s54, %s56
      %p60 = scmp.eq.s32.totalorder %s20, 0
      %p61 = por %p59, %p60
      %p62 = scmp.ne.s32.totalorder %s54, %s56
      %p63 = scmp.eq.s32.totalorder %s25, 1
      %p64 = por %p62, %p63
      %p65 = scmp.ne.s32.totalorder %s56, %s57
      %p66 = scmp.eq.s32.totalorder %s25, 0
      %p67 = por %p65, %p66
      %p68 = scmp.ne.s32.totalorder %s56, %s57
      %p69 = scmp.eq.s32.totalorder %s26, 1
      %p70 = por %p68, %p69
      %p72 = scmp.ne.s32.totalorder %s57, %s71
      %p73 = scmp.eq.s32.totalorder %s26, 0
      %p74 = por %p72, %p73
      %s76 = sadd.s32 %s75, 1
      %p79 = scmp.eq.s32.totalorder %s20, 1
      %p80 = scmp.ne.s32.totalorder %s75, %s77
      %p81 = scmp.eq.s32.totalorder %s20, 0
      %p82 = por %p80, %p81
      %p83 = scmp.ne.s32.totalorder %s75, %s77
      %p84 = scmp.eq.s32.totalorder %s25, 1
      %p85 = por %p83, %p84
      %p86 = scmp.ne.s32.totalorder %s77, %s78
      %p87 = scmp.eq.s32.totalorder %s25, 0
      %p88 = por %p86, %p87
      %p89 = scmp.ne.s32.totalorder %s77, %s78
      %p90 = scmp.eq.s32.totalorder %s26, 1
      %p91 = por %p89, %p90
      %p93 = scmp.ne.s32.totalorder %s78, %s92
      %p94 = scmp.eq.s32.totalorder %s26, 0
      %p95 = por %p93, %p94
      %s97 = sadd.s32 %s96, 1
      %p100 = scmp.eq.s32.totalorder %s20, 1
      %p101 = scmp.ne.s32.totalorder %s96, %s98
      %p102 = scmp.eq.s32.totalorder %s20, 0
      %p103 = por %p101, %p102
      %p104 = scmp.ne.s32.totalorder %s96, %s98
      %p105 = scmp.eq.s32.totalorder %s25, 1
      %p106 = por %p104, %p105
      %p107 = scmp.ne.s32.totalorder %s98, %s99
      %p108 = scmp.eq.s32.totalorder %s25, 0
      %p109 = por %p107, %p108
      %p110 = scmp.ne.s32.totalorder %s98, %s99
      %p111 = scmp.eq.s32.totalorder %s26, 1
      %p112 = por %p110, %p111
      %p114 = scmp.ne.s32.totalorder %s99, %s113
      %p115 = scmp.eq.s32.totalorder %s26, 0
      %p116 = por %p114, %p115
      %s118 = sadd.s32 %s117, 1
      %p121 = scmp.eq.s32.totalorder %s20, 1
      %p122 = scmp.ne.s32.totalorder %s117, %s119
      %p123 = scmp.eq.s32.totalorder %s20, 0
      %p124 = por %p122, %p123
      %p125 = scmp.ne.s32.totalorder %s117, %s119
      %p126 = scmp.eq.s32.totalorder %s25, 1
      %p127 = por %p125, %p126
      %p128 = scmp.ne.s32.totalorder %s119, %s120
      %p129 = scmp.eq.s32.totalorder %s25, 0
      %p130 = por %p128, %p129
      %p131 = scmp.ne.s32.totalorder %s119, %s120
      %p132 = scmp.eq.s32.totalorder %s26, 1
      %p133 = por %p131, %p132
      %p135 = scmp.ne.s32.totalorder %s120, %s134
      %p136 = scmp.eq.s32.totalorder %s26, 0
      %p137 = por %p135, %p136
      %s139 = sadd.s32 %s138, 1
      %p142 = scmp.eq.s32.totalorder %s20, 1
      %p143 = scmp.ne.s32.totalorder %s138, %s140
      %p144 = scmp.eq.s32.totalorder %s20, 0
      %p145 = por %p143, %p144
      %p146 = scmp.ne.s32.totalorder %s138, %s140
      %p147 = scmp.eq.s32.totalorder %s25, 1
      %p148 = por %p146, %p147
      %p149 = scmp.ne.s32.totalorder %s140, %s141
      %p150 = scmp.eq.s32.totalorder %s25, 0
      %p151 = por %p149, %p150
      %p152 = scmp.ne.s32.totalorder %s140, %s141
      %p153 = scmp.eq.s32.totalorder %s26, 1
      %p154 = por %p152, %p153
      %p156 = scmp.ne.s32.totalorder %s141, %s155
      %p157 = scmp.eq.s32.totalorder %s26, 0
      %p158 = por %p156, %p157
      %s160 = sadd.s32 %s159, 1
      %p163 = scmp.eq.s32.totalorder %s20, 1
      %p164 = scmp.ne.s32.totalorder %s159, %s161
      %p165 = scmp.eq.s32.totalorder %s20, 0
      %p166 = por %p164, %p165
      %p167 = scmp.ne.s32.totalorder %s159, %s161
      %p168 = scmp.eq.s32.totalorder %s25, 1
      %p169 = por %p167, %p168
      %p170 = scmp.ne.s32.totalorder %s161, %s162
      %p171 = scmp.eq.s32.totalorder %s25, 0
      %p172 = por %p170, %p171
      %p173 = scmp.ne.s32.totalorder %s161, %s162
      %p174 = scmp.eq.s32.totalorder %s26, 1
      %p175 = por %p173, %p174
      %p177 = scmp.ne.s32.totalorder %s162, %s176
      %p178 = scmp.eq.s32.totalorder %s26, 0
      %p179 = por %p177, %p178
      %s181 = sadd.s32 %s180, 1
      %p184 = scmp.eq.s32.totalorder %s20, 1
      %p185 = scmp.ne.s32.totalorder %s180, %s182
      %p186 = scmp.eq.s32.totalorder %s20, 0
      %p187 = por %p185, %p186
      %p188 = scmp.ne.s32.totalorder %s180, %s182
      %p189 = scmp.eq.s32.totalorder %s25, 1
      %p190 = por %p188, %p189
      %p191 = scmp.ne.s32.totalorder %s182, %s183
      %p192 = scmp.eq.s32.totalorder %s25, 0
      %p193 = por %p191, %p192
      %p194 = scmp.ne.s32.totalorder %s182, %s183
      %p195 = scmp.eq.s32.totalorder %s26, 1
      %p196 = por %p194, %p195
      %p198 = scmp.ne.s32.totalorder %s183, %s197
      %p199 = scmp.eq.s32.totalorder %s26, 0
      %p200 = por %p198, %p199
      %s202 = sadd.s32 %s201, 1
      %p205 = scmp.eq.s32.totalorder %s20, 1
      %p206 = scmp.ne.s32.totalorder %s201, %s203
      %p207 = scmp.eq.s32.totalorder %s20, 0
      %p208 = por %p206, %p207
      %p209 = scmp.ne.s32.totalorder %s201, %s203
      %p210 = scmp.eq.s32.totalorder %s25, 1
      %p211 = por %p209, %p210
      %p212 = scmp.ne.s32.totalorder %s203, %s204
      %p213 = scmp.eq.s32.totalorder %s25, 0
      %p214 = por %p212, %p213
      %p215 = scmp.ne.s32.totalorder %s203, %s204
      %p216 = scmp.eq.s32.totalorder %s26, 1
      %p217 = por %p215, %p216
      %p219 = scmp.ne.s32.totalorder %s204, %s218
      %p220 = scmp.eq.s32.totalorder %s26, 0
      %p221 = por %p219, %p220
      %s222 = ssub.s32 %s20, %s27
      %p223 = scmp.eq.s32.totalorder %s222, 0
      %s225 = sadd.s32 %s224, 1
      %s226 = scalar_select %p223, %s224, %s225
      %p229 = pneg %p223
      %p230 = scmp.eq.s32.totalorder %s20, 1
      %p231 = por %p229, %p230
      %p232 = scmp.ne.s32.totalorder %s224, %s227
      %p233 = scmp.eq.s32.totalorder %s20, 0
      %p234 = por %p232, %p233
      %p235 = scmp.ne.s32.totalorder %s224, %s227
      %p236 = scmp.eq.s32.totalorder %s25, 1
      %p237 = por %p235, %p236
      %p238 = scmp.ne.s32.totalorder %s227, %s228
      %p239 = scmp.eq.s32.totalorder %s25, 0
      %p240 = por %p238, %p239
      %p241 = scmp.ne.s32.totalorder %s227, %s228
      %p242 = scmp.eq.s32.totalorder %s26, 1
      %p243 = por %p241, %p242
      %p245 = scmp.ne.s32.totalorder %s228, %s244
      %p246 = scmp.eq.s32.totalorder %s26, 0
      %p247 = por %p245, %p246
      %s248 = ssub.s32 %s20, %s27
      %p249 = scmp.eq.s32.totalorder %s248, 0
      %s251 = sadd.s32 %s250, 1
      %s252 = scalar_select %p249, %s250, %s251
      %p255 = pneg %p249
      %p256 = scmp.eq.s32.totalorder %s20, 1
      %p257 = por %p255, %p256
      %p258 = scmp.ne.s32.totalorder %s250, %s253
      %p259 = scmp.eq.s32.totalorder %s20, 0
      %p260 = por %p258, %p259
      %p261 = scmp.ne.s32.totalorder %s250, %s253
      %p262 = scmp.eq.s32.totalorder %s25, 1
      %p263 = por %p261, %p262
      %p264 = scmp.ne.s32.totalorder %s253, %s254
      %p265 = scmp.eq.s32.totalorder %s25, 0
      %p266 = por %p264, %p265
      %p267 = scmp.ne.s32.totalorder %s253, %s254
      %p268 = scmp.eq.s32.totalorder %s26, 1
      %p269 = por %p267, %p268
      %p271 = scmp.ne.s32.totalorder %s254, %s270
      %p272 = scmp.eq.s32.totalorder %s26, 0
      %p273 = por %p271, %p272
      %p274 = scmp.le.s32.totalorder 1, %s20
      %p275 = scmp.lt.s32.totalorder %s20, 3
      %p276 = pnand %p274, %p275
      %p277 = pneg %p276
      // Predicated region
      $region9: #{final_capsnet_forward.1} parent=5 // pred_check
        _
      $region10: #{final_capsnet_forward.1} parent=5 // pred_check_branch
        %279 = sbr.rel (%p276) target = $region12
      $region11: #{final_capsnet_forward.1} parent=5 // pred_region
        %s280 = ssub.s32 %s20, 1
        // Predicated region
        $region13: #{final_capsnet_forward.1} parent=11 // pred_check
          %p281 = pneg %p67
        $region14: #{final_capsnet_forward.1} parent=11 // pred_check_branch
          %283 = sbr.rel (%p281) target = $region16
        $region15: #{final_capsnet_forward.1} parent=11 // pred_region
          _
        $region16: #{final_capsnet_forward.1} parent=11 // pred_fallthru
          _
        // Predicated region
        $region17: #{final_capsnet_forward.1} parent=11 // pred_check
          %p284 = pneg %p88
        $region18: #{final_capsnet_forward.1} parent=11 // pred_check_branch
          %286 = sbr.rel (%p284) target = $region20
        $region19: #{final_capsnet_forward.1} parent=11 // pred_region
          _
        $region20: #{final_capsnet_forward.1} parent=11 // pred_fallthru
          _
        // Predicated region
        $region21: #{final_capsnet_forward.1} parent=11 // pred_check
          %p287 = pneg %p109
        $region22: #{final_capsnet_forward.1} parent=11 // pred_check_branch
          %289 = sbr.rel (%p287) target = $region24
        $region23: #{final_capsnet_forward.1} parent=11 // pred_region
          _
        $region24: #{final_capsnet_forward.1} parent=11 // pred_fallthru
          _
        // Predicated region
        $region25: #{final_capsnet_forward.1} parent=11 // pred_check
          %p290 = pneg %p130
        $region26: #{final_capsnet_forward.1} parent=11 // pred_check_branch
          %292 = sbr.rel (%p290) target = $region28
        $region27: #{final_capsnet_forward.1} parent=11 // pred_region
          _
        $region28: #{final_capsnet_forward.1} parent=11 // pred_fallthru
          _
        // Predicated region
        $region29: #{final_capsnet_forward.1} parent=11 // pred_check
          %p293 = pneg %p151
        $region30: #{final_capsnet_forward.1} parent=11 // pred_check_branch
          %295 = sbr.rel (%p293) target = $region32
        $region31: #{final_capsnet_forward.1} parent=11 // pred_region
          _
        $region32: #{final_capsnet_forward.1} parent=11 // pred_fallthru
          _
        // Predicated region
        $region33: #{final_capsnet_forward.1} parent=11 // pred_check
          %p296 = pneg %p172
        $region34: #{final_capsnet_forward.1} parent=11 // pred_check_branch
          %298 = sbr.rel (%p296) target = $region36
        $region35: #{final_capsnet_forward.1} parent=11 // pred_region
          _
        $region36: #{final_capsnet_forward.1} parent=11 // pred_fallthru
          _
        // Predicated region
        $region37: #{final_capsnet_forward.1} parent=11 // pred_check
          %p299 = pneg %p193
        $region38: #{final_capsnet_forward.1} parent=11 // pred_check_branch
          %301 = sbr.rel (%p299) target = $region40
        $region39: #{final_capsnet_forward.1} parent=11 // pred_region
          _
        $region40: #{final_capsnet_forward.1} parent=11 // pred_fallthru
          _
        // Predicated region
        $region41: #{final_capsnet_forward.1} parent=11 // pred_check
          %p302 = pneg %p214
        $region42: #{final_capsnet_forward.1} parent=11 // pred_check_branch
          %304 = sbr.rel (%p302) target = $region44
        $region43: #{final_capsnet_forward.1} parent=11 // pred_region
          _
        $region44: #{final_capsnet_forward.1} parent=11 // pred_fallthru
          _
      $region12: #{final_capsnet_forward.1} parent=5 // pred_fallthru
        _
      %p305 = scmp.lt.s32.totalorder %s20, 2
      // Predicated region
      $region45: #{final_capsnet_forward.1} parent=5 // pred_check
        %p306 = pneg %p305
      $region46: #{final_capsnet_forward.1} parent=5 // pred_check_branch
        %308 = sbr.rel (%p306) target = $region48
      $region47: #{final_capsnet_forward.1} parent=5 // pred_region
        // Predicated region
        $region49: #{final_capsnet_forward.1} parent=47 // pred_check
          %p309 = pneg %p40
        $region50: #{final_capsnet_forward.1} parent=47 // pred_check_branch
          %311 = sbr.rel (%p309) target = $region52
        $region51: #{final_capsnet_forward.1} parent=47 // pred_region
          %p312 = scmp.lt.s32.totalorder %s20, 1
          %s313 = scalar_select %p312, %s20, 1
          %s314 = smul.addr %s313, 25
          %s315 = smul.addr %s314, 8
          %s316 = scalar_lea.vmem %s0, %s315
        $region52: #{final_capsnet_forward.1} parent=47 // pred_fallthru
          _
      $region48: #{final_capsnet_forward.1} parent=5 // pred_fallthru
        _
      %p317 = scmp.le.s32.totalorder 1, %s20
      %p318 = scmp.lt.s32.totalorder %s20, 3
      %p319 = pnand %p317, %p318
      %p320 = pneg %p319
      // Predicated region
      $region53: #{final_capsnet_forward.1} parent=5 // pred_check
        _
      $region54: #{final_capsnet_forward.1} parent=5 // pred_check_branch
        %322 = sbr.rel (%p319) target = $region56
      $region55: #{final_capsnet_forward.1} parent=5 // pred_region
        %s323 = ssub.s32 %s20, 1
        %p324 = scmp.lt.s32.totalorder %s25, 1
        %s325 = scalar_select %p324, %s25, 1
        %s326 = smul.addr %s325, 25
        %s327 = smul.addr %s326, 8
        %s328 = scalar_lea.vmem %s0, %s327
        %p329 = pneg %p46
        %p330 = pneg %p43
        %p331 = pneg %p67
        %p332 = pneg %p64
        %p333 = pneg %p88
        %p334 = pneg %p85
        %p335 = pneg %p109
        %p336 = pneg %p106
        %p337 = pneg %p130
        %p338 = pneg %p127
        %p339 = pneg %p151
        %p340 = pneg %p148
        %p341 = pneg %p172
        %p342 = pneg %p169
        %p343 = pneg %p193
        %p344 = pneg %p190
        %p345 = pneg %p214
        %p346 = pneg %p211
        %p347 = pneg %p240
        %p348 = pneg %p237
        %p349 = scmp.lt.s32.totalorder %s25, 1
        %s350 = scalar_select %p349, %s25, 1
        %s351 = smul.addr %s350, 7
        %s352 = smul.addr %s351, 8
        %s353 = scalar_lea.vmem %s9, %s352
        %p354 = pneg %p266
        %p355 = pneg %p263
        %s356 = sand.u32 %s253, 1
        %s357 = scalar_lea.sflag [#allocation5], %s356
        %s358 = sand.u32 %s253, 1
        %s359 = scalar_lea.vmem [#allocation4], %s358
        %p360 = scmp.lt.s32.totalorder %s25, 1
        %s361 = scalar_select %p360, %s25, 1
        %s362 = smul.addr %s361, 25
        %s363 = smul.addr %s362, 8
        %s364 = scalar_lea.vmem %s0, %s363
        %p365 = scmp.lt.s32.totalorder %s25, 1
        %s366 = scalar_select %p365, %s25, 1
        %s367 = smul.addr %s366, 7
        %s368 = smul.addr %s367, 8
        %s369 = scalar_lea.vmem %s9, %s368
        %v370 = vld [vmem:[%s364] sm:$0xff]
        %v371 = vld [vmem:[%s364 + $0x8] sm:$0xff]
        %v372 = vld [vmem:[%s364 + $0x10] sm:$0xff]
        %v373 = vld [vmem:[%s364 + $0x18] sm:$0xff]
        %v374 = vld [vmem:[%s364 + $0x20] sm:$0xff]
        %v375 = vld [vmem:[%s364 + $0x28] sm:$0xff]
        %v376 = vld [vmem:[%s364 + $0x30] sm:$0xff]
        %v377 = vld [vmem:[%s364 + $0x38] sm:$0xff]
        %v378 = vld [vmem:[%s364 + $0x40] sm:$0xff]
        %v379 = vld [vmem:[%s364 + $0x48] sm:$0xff]
        %v380 = vld [vmem:[%s364 + $0x50] sm:$0xff]
        %v381 = vld [vmem:[%s364 + $0x58] sm:$0xff]
        %v382 = vld [vmem:[%s364 + $0x60] sm:$0xff]
        %v383 = vld [vmem:[%s364 + $0x68] sm:$0xff]
        %v384 = vld [vmem:[%s364 + $0x70] sm:$0xff]
        %v385 = vld [vmem:[%s364 + $0x78] sm:$0xff]
        %v386 = vld [vmem:[%s364 + $0x80] sm:$0xff]
        %v387 = vld [vmem:[%s364 + $0x88] sm:$0xff]
        %v388 = vld [vmem:[%s364 + $0x90] sm:$0xff]
        %v389 = vld [vmem:[%s364 + $0x98] sm:$0xff]
        %v390 = vld [vmem:[%s364 + $0xa0] sm:$0xff]
        %v391 = vld [vmem:[%s364 + $0xa8] sm:$0xff]
        %v392 = vld [vmem:[%s364 + $0xb0] sm:$0xff]
        %v393 = vld [vmem:[%s364 + $0xb8] sm:$0xff]
        %v394 = vld [vmem:[%s364 + $0xc0] sm:$0xf]
        %v395 = vld [vmem:[%s1] sm:$0xff]
        %v396 = vld [vmem:[%s1 + $0x8] sm:$0xff]
        %v397 = vld [vmem:[%s1 + $0x10] sm:$0xff]
        %v398 = vld [vmem:[%s1 + $0x18] sm:$0xff]
        %v399 = vld [vmem:[%s1 + $0x20] sm:$0xf]
        %vm400 = vcmask 293888
        %v402 = vsel %vm400, %v370, 0
        %v405 = vsel %vm400, %v371, 0
        %v408 = vsel %vm400, %v372, 0
        %v411 = vsel %vm400, %v373, 0
        %v414 = vsel %vm400, %v374, 0
        %v417 = vsel %vm400, %v375, 0
        %v420 = vsel %vm400, %v376, 0
        %v423 = vsel %vm400, %v377, 0
        %v426 = vsel %vm400, %v378, 0
        %v429 = vsel %vm400, %v379, 0
        %v432 = vsel %vm400, %v380, 0
        %v435 = vsel %vm400, %v381, 0
        %v438 = vsel %vm400, %v382, 0
        %v441 = vsel %vm400, %v383, 0
        %v444 = vsel %vm400, %v384, 0
        %v447 = vsel %vm400, %v385, 0
        %v450 = vsel %vm400, %v386, 0
        %v453 = vsel %vm400, %v387, 0
        %v456 = vsel %vm400, %v388, 0
        %v459 = vsel %vm400, %v389, 0
        %v462 = vsel %vm400, %v390, 0
        %v465 = vsel %vm400, %v391, 0
        %v468 = vsel %vm400, %v392, 0
        %v471 = vsel %vm400, %v393, 0
        %v474 = vsel %vm400, %v394, 0
        %vm476 = vcmask 1043456
        %v478 = vsel %vm476, %v399, 0
        %480 = vmatpush.msra.mxu0 0.0
        %481 = vmatpush.msra.mxu0 0.0
        %482 = vmatpush.msra.mxu0 0.0
        %483 = vmatpush.msra.mxu0 0.0
        %484 = vmatpush.msra.mxu0 0.0
        %485 = vmatpush.msra.mxu0 0.0
        %486 = vmatpush.msra.mxu0 0.0
        %487 = vmatpush.msra.mxu0 0.0
        %488 = vmatpush.msra.mxu0 0.0
        %489 = vmatpush.msra.mxu0 0.0
        %490 = vmatpush.msra.mxu0 0.0
        %491 = vmatpush.msra.mxu0 %v478
        %492 = vmatpush.msra.mxu0 %v398
        %493 = vmatpush.msra.mxu0 %v397
        %494 = vmatpush.msra.mxu0 %v396
        %495 = vmatpush.msra.mxu0 %v395
        %496 = vmatmul.f32.gmra.mxu0 %v402
        %v497 = vpop.f32.mrf.mxu0
        %v498 = vadd.f32 0.0, %v497
        %499 = vmatmul.f32.gmra.mxu0 %v405
        %v500 = vpop.f32.mrf.mxu0
        %v501 = vadd.f32 0.0, %v500
        %502 = vmatmul.f32.gmra.mxu0 %v408
        %v503 = vpop.f32.mrf.mxu0
        %v504 = vadd.f32 0.0, %v503
        %505 = vmatmul.f32.gmra.mxu0 %v411
        %v506 = vpop.f32.mrf.mxu0
        %v507 = vadd.f32 0.0, %v506
        %508 = vmatmul.f32.gmra.mxu0 %v414
        %v509 = vpop.f32.mrf.mxu0
        %v510 = vadd.f32 0.0, %v509
        %511 = vmatmul.f32.gmra.mxu0 %v417
        %v512 = vpop.f32.mrf.mxu0
        %v513 = vadd.f32 0.0, %v512
        %514 = vmatmul.f32.gmra.mxu0 %v420
        %v515 = vpop.f32.mrf.mxu0
        %v516 = vadd.f32 0.0, %v515
        %517 = vmatmul.f32.gmra.mxu0 %v423
        %v518 = vpop.f32.mrf.mxu0
        %v519 = vadd.f32 0.0, %v518
        %520 = vmatmul.f32.gmra.mxu0 %v426
        %v521 = vpop.f32.mrf.mxu0
        %v522 = vadd.f32 0.0, %v521
        %523 = vmatmul.f32.gmra.mxu0 %v429
        %v524 = vpop.f32.mrf.mxu0
        %v525 = vadd.f32 0.0, %v524
        %526 = vmatmul.f32.gmra.mxu0 %v432
        %v527 = vpop.f32.mrf.mxu0
        %v528 = vadd.f32 0.0, %v527
        %529 = vmatmul.f32.gmra.mxu0 %v435
        %v530 = vpop.f32.mrf.mxu0
        %v531 = vadd.f32 0.0, %v530
        %532 = vmatmul.f32.gmra.mxu0 %v438
        %v533 = vpop.f32.mrf.mxu0
        %v534 = vadd.f32 0.0, %v533
        %535 = vmatmul.f32.gmra.mxu0 %v441
        %v536 = vpop.f32.mrf.mxu0
        %v537 = vadd.f32 0.0, %v536
        %538 = vmatmul.f32.gmra.mxu0 %v444
        %v539 = vpop.f32.mrf.mxu0
        %v540 = vadd.f32 0.0, %v539
        %541 = vmatmul.f32.gmra.mxu0 %v447
        %v542 = vpop.f32.mrf.mxu0
        %v543 = vadd.f32 0.0, %v542
        %544 = vmatmul.f32.gmra.mxu0 %v450
        %v545 = vpop.f32.mrf.mxu0
        %v546 = vadd.f32 0.0, %v545
        %547 = vmatmul.f32.gmra.mxu0 %v453
        %v548 = vpop.f32.mrf.mxu0
        %v549 = vadd.f32 0.0, %v548
        %550 = vmatmul.f32.gmra.mxu0 %v456
        %v551 = vpop.f32.mrf.mxu0
        %v552 = vadd.f32 0.0, %v551
        %553 = vmatmul.f32.gmra.mxu0 %v459
        %v554 = vpop.f32.mrf.mxu0
        %v555 = vadd.f32 0.0, %v554
        %556 = vmatmul.f32.gmra.mxu0 %v462
        %v557 = vpop.f32.mrf.mxu0
        %v558 = vadd.f32 0.0, %v557
        %559 = vmatmul.f32.gmra.mxu0 %v465
        %v560 = vpop.f32.mrf.mxu0
        %v561 = vadd.f32 0.0, %v560
        %562 = vmatmul.f32.gmra.mxu0 %v468
        %v563 = vpop.f32.mrf.mxu0
        %v564 = vadd.f32 0.0, %v563
        %565 = vmatmul.f32.gmra.mxu0 %v471
        %v566 = vpop.f32.mrf.mxu0
        %v567 = vadd.f32 0.0, %v566
        %568 = vmatmul.f32.gmra.mxu0 %v474
        %v569 = vpop.f32.mrf.mxu0
        %v570 = vadd.f32 0.0, %v569
        %571 = vdwg.mxu0
        %v597 = vrot.slane %v498, 2
        %v598 = vrot.slane %v498, 4
        %v599 = vrot.slane %v498, 6
        %v600 = vrot.slane %v501, 2
        %v601 = vrot.slane %v501, 4
        %v602 = vrot.slane %v501, 6
        %v603 = vrot.slane %v504, 2
        %v604 = vrot.slane %v504, 4
        %v605 = vrot.slane %v504, 6
        %v606 = vrot.slane %v507, 2
        %v607 = vrot.slane %v507, 4
        %v608 = vrot.slane %v507, 6
        %v609 = vrot.slane %v510, 2
        %v610 = vrot.slane %v510, 4
        %v611 = vrot.slane %v510, 6
        %v612 = vrot.slane %v513, 2
        %v613 = vrot.slane %v513, 4
        %v614 = vrot.slane %v513, 6
        %v615 = vrot.slane %v516, 2
        %v616 = vrot.slane %v516, 4
        %v617 = vrot.slane %v516, 6
        %v618 = vrot.slane %v519, 2
        %v619 = vrot.slane %v519, 4
        %v620 = vrot.slane %v519, 6
        %v621 = vrot.slane %v522, 2
        %v622 = vrot.slane %v522, 4
        %v623 = vrot.slane %v522, 6
        %v624 = vrot.slane %v525, 2
        %v625 = vrot.slane %v525, 4
        %v626 = vrot.slane %v525, 6
        %v627 = vrot.slane %v528, 2
        %v628 = vrot.slane %v528, 4
        %v629 = vrot.slane %v528, 6
        %v630 = vrot.slane %v531, 2
        %v631 = vrot.slane %v531, 4
        %v632 = vrot.slane %v531, 6
        %v633 = vrot.slane %v534, 2
        %v634 = vrot.slane %v534, 4
        %v635 = vrot.slane %v534, 6
        %v636 = vrot.slane %v537, 2
        %v637 = vrot.slane %v537, 4
        %v638 = vrot.slane %v537, 6
        %v639 = vrot.slane %v540, 2
        %v640 = vrot.slane %v540, 4
        %v641 = vrot.slane %v540, 6
        %v642 = vrot.slane %v543, 2
        %v643 = vrot.slane %v543, 4
        %v644 = vrot.slane %v543, 6
        %v645 = vrot.slane %v546, 2
        %v646 = vrot.slane %v546, 4
        %v647 = vrot.slane %v546, 6
        %v648 = vrot.slane %v549, 2
        %v649 = vrot.slane %v549, 4
        %v650 = vrot.slane %v549, 6
        %v651 = vrot.slane %v552, 2
        %v652 = vrot.slane %v552, 4
        %v653 = vrot.slane %v552, 6
        %v654 = vrot.slane %v555, 2
        %v655 = vrot.slane %v555, 4
        %v656 = vrot.slane %v555, 6
        %v657 = vrot.slane %v558, 2
        %v658 = vrot.slane %v558, 4
        %v659 = vrot.slane %v558, 6
        %v660 = vrot.slane %v561, 2
        %v661 = vrot.slane %v561, 4
        %v662 = vrot.slane %v561, 6
        %v663 = vrot.slane %v564, 2
        %v664 = vrot.slane %v564, 4
        %v665 = vrot.slane %v564, 6
        %v666 = vrot.slane %v567, 2
        %v667 = vrot.slane %v567, 4
        %v668 = vrot.slane %v567, 6
        %v669 = vrot.slane %v570, 2
        %670 = vst [vmem:[#allocation1] ss:$4 sm:$0xff] %v498
        %s671 = scalar_lea.vmem [#allocation1], 1
        %672 = vst [vmem:[%s671] ss:$4 sm:$0xff] %v597
        %s673 = scalar_lea.vmem [#allocation1], 2
        %674 = vst [vmem:[%s673] ss:$4 sm:$0xff] %v598
        %s675 = scalar_lea.vmem [#allocation1], 3
        %676 = vst [vmem:[%s675] ss:$4 sm:$0xff] %v599
        %s677 = scalar_lea.vmem [#allocation1], 32
        %678 = vst [vmem:[%s677] ss:$4 sm:$0xff] %v501
        %s679 = scalar_lea.vmem [#allocation1], 33
        %680 = vst [vmem:[%s679] ss:$4 sm:$0xff] %v600
        %s681 = scalar_lea.vmem [#allocation1], 34
        %682 = vst [vmem:[%s681] ss:$4 sm:$0xff] %v601
        %v683 = vld.sshfl [vmem:[#allocation1] sm:$0xff pattern:$0x73625140]
        %v684 = vld.sshfl [vmem:[#allocation1 + $0x20] sm:$0xff pattern:$0x73625140]
        %685 = vst [vmem:[#allocation1] ss:$4 sm:$0xff] %v602
        %686 = vst [vmem:[%s671] ss:$4 sm:$0xff] %v504
        %687 = vst [vmem:[%s673] ss:$4 sm:$0xff] %v603
        %688 = vst [vmem:[%s675] ss:$4 sm:$0xff] %v604
        %689 = vst [vmem:[%s677] ss:$4 sm:$0xff] %v605
        %690 = vst [vmem:[%s679] ss:$4 sm:$0xff] %v507
        %691 = vst [vmem:[%s681] ss:$4 sm:$0xff] %v606
        %v692 = vld.sshfl [vmem:[#allocation1] sm:$0xff pattern:$0x73625140]
        %v693 = vld.sshfl [vmem:[#allocation1 + $0x20] sm:$0xff pattern:$0x73625140]
        %694 = vst [vmem:[#allocation1] ss:$4 sm:$0xff] %v607
        %695 = vst [vmem:[%s671] ss:$4 sm:$0xff] %v608
        %696 = vst [vmem:[%s673] ss:$4 sm:$0xff] %v510
        %697 = vst [vmem:[%s675] ss:$4 sm:$0xff] %v609
        %698 = vst [vmem:[%s677] ss:$4 sm:$0xff] %v610
        %699 = vst [vmem:[%s679] ss:$4 sm:$0xff] %v611
        %700 = vst [vmem:[%s681] ss:$4 sm:$0xff] %v513
        %v701 = vld.sshfl [vmem:[#allocation1] sm:$0xff pattern:$0x73625140]
        %v702 = vld.sshfl [vmem:[#allocation1 + $0x20] sm:$0xff pattern:$0x73625140]
        %703 = vst [vmem:[#allocation1] ss:$4 sm:$0xff] %v612
        %704 = vst [vmem:[%s671] ss:$4 sm:$0xff] %v613
        %705 = vst [vmem:[%s673] ss:$4 sm:$0xff] %v614
        %706 = vst [vmem:[%s675] ss:$4 sm:$0xff] %v516
        %707 = vst [vmem:[%s677] ss:$4 sm:$0xff] %v615
        %708 = vst [vmem:[%s679] ss:$4 sm:$0xff] %v616
        %709 = vst [vmem:[%s681] ss:$4 sm:$0xff] %v617
        %v710 = vld.sshfl [vmem:[#allocation1] sm:$0xff pattern:$0x73625140]
        %v711 = vld.sshfl [vmem:[#allocation1 + $0x20] sm:$0xff pattern:$0x73625140]
        %712 = vst [vmem:[#allocation1] ss:$4 sm:$0xff] %v519
        %713 = vst [vmem:[%s671] ss:$4 sm:$0xff] %v618
        %714 = vst [vmem:[%s673] ss:$4 sm:$0xff] %v619
        %715 = vst [vmem:[%s675] ss:$4 sm:$0xff] %v620
        %716 = vst [vmem:[%s677] ss:$4 sm:$0xff] %v522
        %717 = vst [vmem:[%s679] ss:$4 sm:$0xff] %v621
        %718 = vst [vmem:[%s681] ss:$4 sm:$0xff] %v622
        %v719 = vld.sshfl [vmem:[#allocation1] sm:$0xff pattern:$0x73625140]
        %v720 = vld.sshfl [vmem:[#allocation1 + $0x20] sm:$0xff pattern:$0x73625140]
        %721 = vst [vmem:[#allocation1] ss:$4 sm:$0xff] %v623
        %722 = vst [vmem:[%s671] ss:$4 sm:$0xff] %v525
        %723 = vst [vmem:[%s673] ss:$4 sm:$0xff] %v624
        %724 = vst [vmem:[%s675] ss:$4 sm:$0xff] %v625
        %725 = vst [vmem:[%s677] ss:$4 sm:$0xff] %v626
        %726 = vst [vmem:[%s679] ss:$4 sm:$0xff] %v528
        %727 = vst [vmem:[%s681] ss:$4 sm:$0xff] %v627
        %v728 = vld.sshfl [vmem:[#allocation1] sm:$0xff pattern:$0x73625140]
        %v729 = vld.sshfl [vmem:[#allocation1 + $0x20] sm:$0xff pattern:$0x73625140]
        %730 = vst [vmem:[#allocation1] ss:$4 sm:$0xff] %v628
        %731 = vst [vmem:[%s671] ss:$4 sm:$0xff] %v629
        %732 = vst [vmem:[%s673] ss:$4 sm:$0xff] %v531
        %733 = vst [vmem:[%s675] ss:$4 sm:$0xff] %v630
        %734 = vst [vmem:[%s677] ss:$4 sm:$0xff] %v631
        %735 = vst [vmem:[%s679] ss:$4 sm:$0xff] %v632
        %736 = vst [vmem:[%s681] ss:$4 sm:$0xff] %v534
        %v737 = vld.sshfl [vmem:[#allocation1] sm:$0xff pattern:$0x73625140]
        %v738 = vld.sshfl [vmem:[#allocation1 + $0x20] sm:$0xff pattern:$0x73625140]
        %739 = vst [vmem:[#allocation1] ss:$4 sm:$0xff] %v633
        %740 = vst [vmem:[%s671] ss:$4 sm:$0xff] %v634
        %741 = vst [vmem:[%s673] ss:$4 sm:$0xff] %v635
        %742 = vst [vmem:[%s675] ss:$4 sm:$0xff] %v537
        %743 = vst [vmem:[%s677] ss:$4 sm:$0xff] %v636
        %744 = vst [vmem:[%s679] ss:$4 sm:$0xff] %v637
        %745 = vst [vmem:[%s681] ss:$4 sm:$0xff] %v638
        %v746 = vld.sshfl [vmem:[#allocation1] sm:$0xff pattern:$0x73625140]
        %v747 = vld.sshfl [vmem:[#allocation1 + $0x20] sm:$0xff pattern:$0x73625140]
        %748 = vst [vmem:[#allocation1] ss:$4 sm:$0xff] %v540
        %749 = vst [vmem:[%s671] ss:$4 sm:$0xff] %v639
        %750 = vst [vmem:[%s673] ss:$4 sm:$0xff] %v640
        %751 = vst [vmem:[%s675] ss:$4 sm:$0xff] %v641
        %752 = vst [vmem:[%s677] ss:$4 sm:$0xff] %v543
        %753 = vst [vmem:[%s679] ss:$4 sm:$0xff] %v642
        %754 = vst [vmem:[%s681] ss:$4 sm:$0xff] %v643
        %v755 = vld.sshfl [vmem:[#allocation1] sm:$0xff pattern:$0x73625140]
        %v756 = vld.sshfl [vmem:[#allocation1 + $0x20] sm:$0xff pattern:$0x73625140]
        %757 = vst [vmem:[#allocation1] ss:$4 sm:$0xff] %v644
        %758 = vst [vmem:[%s671] ss:$4 sm:$0xff] %v546
        %759 = vst [vmem:[%s673] ss:$4 sm:$0xff] %v645
        %760 = vst [vmem:[%s675] ss:$4 sm:$0xff] %v646
        %761 = vst [vmem:[%s677] ss:$4 sm:$0xff] %v647
        %762 = vst [vmem:[%s679] ss:$4 sm:$0xff] %v549
        %763 = vst [vmem:[%s681] ss:$4 sm:$0xff] %v648
        %v764 = vld.sshfl [vmem:[#allocation1] sm:$0xff pattern:$0x73625140]
        %v765 = vld.sshfl [vmem:[#allocation1 + $0x20] sm:$0xff pattern:$0x73625140]
        %766 = vst [vmem:[#allocation1] ss:$4 sm:$0xff] %v649
        %767 = vst [vmem:[%s671] ss:$4 sm:$0xff] %v650
        %768 = vst [vmem:[%s673] ss:$4 sm:$0xff] %v552
        %769 = vst [vmem:[%s675] ss:$4 sm:$0xff] %v651
        %770 = vst [vmem:[%s677] ss:$4 sm:$0xff] %v652
        %771 = vst [vmem:[%s679] ss:$4 sm:$0xff] %v653
        %772 = vst [vmem:[%s681] ss:$4 sm:$0xff] %v555
        %v773 = vld.sshfl [vmem:[#allocation1] sm:$0xff pattern:$0x73625140]
        %v774 = vld.sshfl [vmem:[#allocation1 + $0x20] sm:$0xff pattern:$0x73625140]
        %775 = vst [vmem:[#allocation1] ss:$4 sm:$0xff] %v654
        %776 = vst [vmem:[%s671] ss:$4 sm:$0xff] %v655
        %777 = vst [vmem:[%s673] ss:$4 sm:$0xff] %v656
        %778 = vst [vmem:[%s675] ss:$4 sm:$0xff] %v558
        %779 = vst [vmem:[%s677] ss:$4 sm:$0xff] %v657
        %780 = vst [vmem:[%s679] ss:$4 sm:$0xff] %v658
        %781 = vst [vmem:[%s681] ss:$4 sm:$0xff] %v659
        %v782 = vld.sshfl [vmem:[#allocation1] sm:$0xff pattern:$0x73625140]
        %v783 = vld.sshfl [vmem:[#allocation1 + $0x20] sm:$0xff pattern:$0x73625140]
        %784 = vst [vmem:[#allocation1] ss:$4 sm:$0xff] %v561
        %785 = vst [vmem:[%s671] ss:$4 sm:$0xff] %v660
        %786 = vst [vmem:[%s673] ss:$4 sm:$0xff] %v661
        %787 = vst [vmem:[%s675] ss:$4 sm:$0xff] %v662
        %788 = vst [vmem:[%s677] ss:$4 sm:$0xff] %v564
        %789 = vst [vmem:[%s679] ss:$4 sm:$0xff] %v663
        %790 = vst [vmem:[%s681] ss:$4 sm:$0xff] %v664
        %v791 = vld.sshfl [vmem:[#allocation1] sm:$0xff pattern:$0x73625140]
        %v792 = vld.sshfl [vmem:[#allocation1 + $0x20] sm:$0xff pattern:$0x73625140]
        %793 = vst [vmem:[#allocation1] ss:$4 sm:$0xff] %v665
        %794 = vst [vmem:[%s671] ss:$4 sm:$0xff] %v567
        %795 = vst [vmem:[%s673] ss:$4 sm:$0xff] %v666
        %796 = vst [vmem:[%s675] ss:$4 sm:$0xff] %v667
        %797 = vst [vmem:[%s677] ss:$4 sm:$0xff] %v668
        %798 = vst [vmem:[%s679] ss:$4 sm:$0xff] %v570
        %799 = vst [vmem:[%s681] ss:$4 sm:$0xff] %v669
        %v800 = vld.sshfl [vmem:[#allocation1] sm:$0xff pattern:$0x73625140]
        %v801 = vld.sshfl [vmem:[#allocation1 + $0x20] sm:$0xff pattern:$0x73625140]
        %830 = vst [vmem:[#allocation2] sm:$0xff] %v683
        %831 = vst [vmem:[#allocation2 + $0x8] sm:$0x3f] %v684
        %832 = vst [vmem:[#allocation2 + $0x10] sm:$0xff] %v692
        %833 = vst [vmem:[#allocation2 + $0x18] sm:$0x3f] %v693
        %834 = vst [vmem:[#allocation2 + $0x20] sm:$0xff] %v701
        %835 = vst [vmem:[#allocation2 + $0x28] sm:$0x3f] %v702
        %836 = vst [vmem:[#allocation2 + $0x30] sm:$0xff] %v710
        %837 = vst [vmem:[#allocation2 + $0x38] sm:$0x3f] %v711
        %838 = vst [vmem:[#allocation2 + $0x40] sm:$0xff] %v719
        %839 = vst [vmem:[#allocation2 + $0x48] sm:$0x3f] %v720
        %840 = vst [vmem:[#allocation2 + $0x50] sm:$0xff] %v728
        %841 = vst [vmem:[#allocation2 + $0x58] sm:$0x3f] %v729
        %842 = vst [vmem:[#allocation2 + $0x60] sm:$0xff] %v737
        %843 = vst [vmem:[#allocation2 + $0x68] sm:$0x3f] %v738
        %844 = vst [vmem:[#allocation2 + $0x70] sm:$0xff] %v746
        %845 = vst [vmem:[#allocation2 + $0x78] sm:$0x3f] %v747
        %846 = vst [vmem:[#allocation2 + $0x80] sm:$0xff] %v755
        %847 = vst [vmem:[#allocation2 + $0x88] sm:$0x3f] %v756
        %848 = vst [vmem:[#allocation2 + $0x90] sm:$0xff] %v764
        %849 = vst [vmem:[#allocation2 + $0x98] sm:$0x3f] %v765
        %850 = vst [vmem:[#allocation2 + $0xa0] sm:$0xff] %v773
        %851 = vst [vmem:[#allocation2 + $0xa8] sm:$0x3f] %v774
        %852 = vst [vmem:[#allocation2 + $0xb0] sm:$0xff] %v782
        %853 = vst [vmem:[#allocation2 + $0xb8] sm:$0x3f] %v783
        %854 = vst [vmem:[#allocation2 + $0xc0] sm:$0xff] %v791
        %855 = vst [vmem:[#allocation2 + $0xc8] sm:$0x3f] %v792
        %856 = vst [vmem:[#allocation2 + $0xd0] sm:$0xff] %v800
        %857 = vst [vmem:[#allocation2 + $0xd8] sm:$0x3f] %v801
        %v858 = vld [vmem:[#allocation2] sm:$0x7f]
        %v859 = vld [vmem:[#allocation2 + $0x10] sm:$0x7f]
        %v860 = vld [vmem:[#allocation2 + $0x20] sm:$0x7f]
        %v861 = vld [vmem:[#allocation2 + $0x30] sm:$0x7f]
        %v862 = vld [vmem:[#allocation2 + $0x40] sm:$0x7f]
        %v863 = vld [vmem:[#allocation2 + $0x50] sm:$0x7f]
        %v864 = vld [vmem:[#allocation2 + $0x60] sm:$0x7f]
        %v865 = vld [vmem:[#allocation2 + $0x70] sm:$0x7f]
        %v866 = vld [vmem:[#allocation2 + $0x80] sm:$0x7f]
        %v867 = vld [vmem:[#allocation2 + $0x90] sm:$0x7f]
        %v868 = vld [vmem:[#allocation2 + $0xa0] sm:$0x7f]
        %v869 = vld [vmem:[#allocation2 + $0xb0] sm:$0x7f]
        %v870 = vld [vmem:[#allocation2 + $0xc0] sm:$0x7f]
        %v871 = vld [vmem:[#allocation2 + $0xd0] sm:$0x7f]
        %v872 = vld [vmem:[%s2] sm:$0x1]
        %v873 = vperm.slane %v872, 0
        %v874 = vmul.f32 %v858, %v873
        %v875 = vmul.f32 %v859, %v873
        %v876 = vmul.f32 %v860, %v873
        %v877 = vmul.f32 %v861, %v873
        %v878 = vmul.f32 %v862, %v873
        %v879 = vmul.f32 %v863, %v873
        %v880 = vmul.f32 %v864, %v873
        %v881 = vadd.f32 %v874, 0.0
        %v882 = vadd.f32 %v875, 0.0
        %v883 = vadd.f32 %v876, 0.0
        %v884 = vadd.f32 %v877, 0.0
        %v885 = vadd.f32 %v878, 0.0
        %v886 = vadd.f32 %v879, 0.0
        %v887 = vadd.f32 %v880, 0.0
        %s888 = scalar_lea.vmem %s2, 8
        %v889 = vld [vmem:[%s888] sm:$0x1]
        %v890 = vperm.slane %v889, 0
        %v891 = vmul.f32 %v859, %v890
        %v892 = vmul.f32 %v860, %v890
        %v893 = vmul.f32 %v861, %v890
        %v894 = vmul.f32 %v862, %v890
        %v895 = vmul.f32 %v863, %v890
        %v896 = vmul.f32 %v864, %v890
        %v897 = vmul.f32 %v865, %v890
        %v898 = vadd.f32 %v881, %v891
        %v899 = vadd.f32 %v882, %v892
        %v900 = vadd.f32 %v883, %v893
        %v901 = vadd.f32 %v884, %v894
        %v902 = vadd.f32 %v885, %v895
        %v903 = vadd.f32 %v886, %v896
        %v904 = vadd.f32 %v887, %v897
        %s905 = scalar_lea.vmem %s2, 16
        %v906 = vld [vmem:[%s905] sm:$0x1]
        %v907 = vperm.slane %v906, 0
        %v908 = vmul.f32 %v860, %v907
        %v909 = vmul.f32 %v861, %v907
        %v910 = vmul.f32 %v862, %v907
        %v911 = vmul.f32 %v863, %v907
        %v912 = vmul.f32 %v864, %v907
        %v913 = vmul.f32 %v865, %v907
        %v914 = vmul.f32 %v866, %v907
        %v915 = vadd.f32 %v898, %v908
        %v916 = vadd.f32 %v899, %v909
        %v917 = vadd.f32 %v900, %v910
        %v918 = vadd.f32 %v901, %v911
        %v919 = vadd.f32 %v902, %v912
        %v920 = vadd.f32 %v903, %v913
        %v921 = vadd.f32 %v904, %v914
        %s922 = scalar_lea.vmem %s2, 24
        %v923 = vld [vmem:[%s922] sm:$0x1]
        %v924 = vperm.slane %v923, 0
        %v925 = vmul.f32 %v861, %v924
        %v926 = vmul.f32 %v862, %v924
        %v927 = vmul.f32 %v863, %v924
        %v928 = vmul.f32 %v864, %v924
        %v929 = vmul.f32 %v865, %v924
        %v930 = vmul.f32 %v866, %v924
        %v931 = vmul.f32 %v867, %v924
        %v932 = vadd.f32 %v915, %v925
        %v933 = vadd.f32 %v916, %v926
        %v934 = vadd.f32 %v917, %v927
        %v935 = vadd.f32 %v918, %v928
        %v936 = vadd.f32 %v919, %v929
        %v937 = vadd.f32 %v920, %v930
        %v938 = vadd.f32 %v921, %v931
        %s939 = scalar_lea.vmem %s2, 32
        %v940 = vld [vmem:[%s939] sm:$0x1]
        %v941 = vperm.slane %v940, 0
        %v942 = vmul.f32 %v862, %v941
        %v943 = vmul.f32 %v863, %v941
        %v944 = vmul.f32 %v864, %v941
        %v945 = vmul.f32 %v865, %v941
        %v946 = vmul.f32 %v866, %v941
        %v947 = vmul.f32 %v867, %v941
        %v948 = vmul.f32 %v868, %v941
        %v949 = vadd.f32 %v932, %v942
        %v950 = vadd.f32 %v933, %v943
        %v951 = vadd.f32 %v934, %v944
        %v952 = vadd.f32 %v935, %v945
        %v953 = vadd.f32 %v936, %v946
        %v954 = vadd.f32 %v937, %v947
        %v955 = vadd.f32 %v938, %v948
        %s956 = scalar_lea.vmem %s2, 40
        %v957 = vld [vmem:[%s956] sm:$0x1]
        %v958 = vperm.slane %v957, 0
        %v959 = vmul.f32 %v863, %v958
        %v960 = vmul.f32 %v864, %v958
        %v961 = vmul.f32 %v865, %v958
        %v962 = vmul.f32 %v866, %v958
        %v963 = vmul.f32 %v867, %v958
        %v964 = vmul.f32 %v868, %v958
        %v965 = vmul.f32 %v869, %v958
        %v966 = vadd.f32 %v949, %v959
        %v967 = vadd.f32 %v950, %v960
        %v968 = vadd.f32 %v951, %v961
        %v969 = vadd.f32 %v952, %v962
        %v970 = vadd.f32 %v953, %v963
        %v971 = vadd.f32 %v954, %v964
        %v972 = vadd.f32 %v955, %v965
        %s973 = scalar_lea.vmem %s2, 48
        %v974 = vld [vmem:[%s973] sm:$0x1]
        %v975 = vperm.slane %v974, 0
        %v976 = vmul.f32 %v864, %v975
        %v977 = vmul.f32 %v865, %v975
        %v978 = vmul.f32 %v866, %v975
        %v979 = vmul.f32 %v867, %v975
        %v980 = vmul.f32 %v868, %v975
        %v981 = vmul.f32 %v869, %v975
        %v982 = vmul.f32 %v870, %v975
        %v983 = vadd.f32 %v966, %v976
        %v984 = vadd.f32 %v967, %v977
        %v985 = vadd.f32 %v968, %v978
        %v986 = vadd.f32 %v969, %v979
        %v987 = vadd.f32 %v970, %v980
        %v988 = vadd.f32 %v971, %v981
        %v989 = vadd.f32 %v972, %v982
        %s990 = scalar_lea.vmem %s2, 56
        %v991 = vld [vmem:[%s990] sm:$0x1]
        %v992 = vperm.slane %v991, 0
        %v993 = vmul.f32 %v865, %v992
        %v994 = vmul.f32 %v866, %v992
        %v995 = vmul.f32 %v867, %v992
        %v996 = vmul.f32 %v868, %v992
        %v997 = vmul.f32 %v869, %v992
        %v998 = vmul.f32 %v870, %v992
        %v999 = vmul.f32 %v871, %v992
        %v1000 = vadd.f32 %v983, %v993
        %v1001 = vadd.f32 %v984, %v994
        %v1002 = vadd.f32 %v985, %v995
        %v1003 = vadd.f32 %v986, %v996
        %v1004 = vadd.f32 %v987, %v997
        %v1005 = vadd.f32 %v988, %v998
        %v1006 = vadd.f32 %v989, %v999
        %v1007 = vld [vmem:[#allocation2 + $0x1] sm:$0x7f]
        %v1008 = vld [vmem:[#allocation2 + $0x11] sm:$0x7f]
        %v1009 = vld [vmem:[#allocation2 + $0x21] sm:$0x7f]
        %v1010 = vld [vmem:[#allocation2 + $0x31] sm:$0x7f]
        %v1011 = vld [vmem:[#allocation2 + $0x41] sm:$0x7f]
        %v1012 = vld [vmem:[#allocation2 + $0x51] sm:$0x7f]
        %v1013 = vld [vmem:[#allocation2 + $0x61] sm:$0x7f]
        %v1014 = vld [vmem:[#allocation2 + $0x71] sm:$0x7f]
        %v1015 = vld [vmem:[#allocation2 + $0x81] sm:$0x7f]
        %v1016 = vld [vmem:[#allocation2 + $0x91] sm:$0x7f]
        %v1017 = vld [vmem:[#allocation2 + $0xa1] sm:$0x7f]
        %v1018 = vld [vmem:[#allocation2 + $0xb1] sm:$0x7f]
        %v1019 = vld [vmem:[#allocation2 + $0xc1] sm:$0x7f]
        %v1020 = vld [vmem:[#allocation2 + $0xd1] sm:$0x7f]
        %v1021 = vld [vmem:[%s2 + $0x1] sm:$0x1]
        %v1022 = vperm.slane %v1021, 0
        %v1023 = vmul.f32 %v1007, %v1022
        %v1024 = vmul.f32 %v1008, %v1022
        %v1025 = vmul.f32 %v1009, %v1022
        %v1026 = vmul.f32 %v1010, %v1022
        %v1027 = vmul.f32 %v1011, %v1022
        %v1028 = vmul.f32 %v1012, %v1022
        %v1029 = vmul.f32 %v1013, %v1022
        %v1030 = vadd.f32 %v1000, %v1023
        %v1031 = vadd.f32 %v1001, %v1024
        %v1032 = vadd.f32 %v1002, %v1025
        %v1033 = vadd.f32 %v1003, %v1026
        %v1034 = vadd.f32 %v1004, %v1027
        %v1035 = vadd.f32 %v1005, %v1028
        %v1036 = vadd.f32 %v1006, %v1029
        %v1037 = vld [vmem:[%s888 + $0x1] sm:$0x1]
        %v1038 = vperm.slane %v1037, 0
        %v1039 = vmul.f32 %v1008, %v1038
        %v1040 = vmul.f32 %v1009, %v1038
        %v1041 = vmul.f32 %v1010, %v1038
        %v1042 = vmul.f32 %v1011, %v1038
        %v1043 = vmul.f32 %v1012, %v1038
        %v1044 = vmul.f32 %v1013, %v1038
        %v1045 = vmul.f32 %v1014, %v1038
        %v1046 = vadd.f32 %v1030, %v1039
        %v1047 = vadd.f32 %v1031, %v1040
        %v1048 = vadd.f32 %v1032, %v1041
        %v1049 = vadd.f32 %v1033, %v1042
        %v1050 = vadd.f32 %v1034, %v1043
        %v1051 = vadd.f32 %v1035, %v1044
        %v1052 = vadd.f32 %v1036, %v1045
        %v1053 = vld [vmem:[%s905 + $0x1] sm:$0x1]
        %v1054 = vperm.slane %v1053, 0
        %v1055 = vmul.f32 %v1009, %v1054
        %v1056 = vmul.f32 %v1010, %v1054
        %v1057 = vmul.f32 %v1011, %v1054
        %v1058 = vmul.f32 %v1012, %v1054
        %v1059 = vmul.f32 %v1013, %v1054
        %v1060 = vmul.f32 %v1014, %v1054
        %v1061 = vmul.f32 %v1015, %v1054
        %v1062 = vadd.f32 %v1046, %v1055
        %v1063 = vadd.f32 %v1047, %v1056
        %v1064 = vadd.f32 %v1048, %v1057
        %v1065 = vadd.f32 %v1049, %v1058
        %v1066 = vadd.f32 %v1050, %v1059
        %v1067 = vadd.f32 %v1051, %v1060
        %v1068 = vadd.f32 %v1052, %v1061
        %v1069 = vld [vmem:[%s922 + $0x1] sm:$0x1]
        %v1070 = vperm.slane %v1069, 0
        %v1071 = vmul.f32 %v1010, %v1070
        %v1072 = vmul.f32 %v1011, %v1070
        %v1073 = vmul.f32 %v1012, %v1070
        %v1074 = vmul.f32 %v1013, %v1070
        %v1075 = vmul.f32 %v1014, %v1070
        %v1076 = vmul.f32 %v1015, %v1070
        %v1077 = vmul.f32 %v1016, %v1070
        %v1078 = vadd.f32 %v1062, %v1071
        %v1079 = vadd.f32 %v1063, %v1072
        %v1080 = vadd.f32 %v1064, %v1073
        %v1081 = vadd.f32 %v1065, %v1074
        %v1082 = vadd.f32 %v1066, %v1075
        %v1083 = vadd.f32 %v1067, %v1076
        %v1084 = vadd.f32 %v1068, %v1077
        %v1085 = vld [vmem:[%s939 + $0x1] sm:$0x1]
        %v1086 = vperm.slane %v1085, 0
        %v1087 = vmul.f32 %v1011, %v1086
        %v1088 = vmul.f32 %v1012, %v1086
        %v1089 = vmul.f32 %v1013, %v1086
        %v1090 = vmul.f32 %v1014, %v1086
        %v1091 = vmul.f32 %v1015, %v1086
        %v1092 = vmul.f32 %v1016, %v1086
        %v1093 = vmul.f32 %v1017, %v1086
        %v1094 = vadd.f32 %v1078, %v1087
        %v1095 = vadd.f32 %v1079, %v1088
        %v1096 = vadd.f32 %v1080, %v1089
        %v1097 = vadd.f32 %v1081, %v1090
        %v1098 = vadd.f32 %v1082, %v1091
        %v1099 = vadd.f32 %v1083, %v1092
        %v1100 = vadd.f32 %v1084, %v1093
        %v1101 = vld [vmem:[%s956 + $0x1] sm:$0x1]
        %v1102 = vperm.slane %v1101, 0
        %v1103 = vmul.f32 %v1012, %v1102
        %v1104 = vmul.f32 %v1013, %v1102
        %v1105 = vmul.f32 %v1014, %v1102
        %v1106 = vmul.f32 %v1015, %v1102
        %v1107 = vmul.f32 %v1016, %v1102
        %v1108 = vmul.f32 %v1017, %v1102
        %v1109 = vmul.f32 %v1018, %v1102
        %v1110 = vadd.f32 %v1094, %v1103
        %v1111 = vadd.f32 %v1095, %v1104
        %v1112 = vadd.f32 %v1096, %v1105
        %v1113 = vadd.f32 %v1097, %v1106
        %v1114 = vadd.f32 %v1098, %v1107
        %v1115 = vadd.f32 %v1099, %v1108
        %v1116 = vadd.f32 %v1100, %v1109
        %v1117 = vld [vmem:[%s973 + $0x1] sm:$0x1]
        %v1118 = vperm.slane %v1117, 0
        %v1119 = vmul.f32 %v1013, %v1118
        %v1120 = vmul.f32 %v1014, %v1118
        %v1121 = vmul.f32 %v1015, %v1118
        %v1122 = vmul.f32 %v1016, %v1118
        %v1123 = vmul.f32 %v1017, %v1118
        %v1124 = vmul.f32 %v1018, %v1118
        %v1125 = vmul.f32 %v1019, %v1118
        %v1126 = vadd.f32 %v1110, %v1119
        %v1127 = vadd.f32 %v1111, %v1120
        %v1128 = vadd.f32 %v1112, %v1121
        %v1129 = vadd.f32 %v1113, %v1122
        %v1130 = vadd.f32 %v1114, %v1123
        %v1131 = vadd.f32 %v1115, %v1124
        %v1132 = vadd.f32 %v1116, %v1125
        %v1133 = vld [vmem:[%s990 + $0x1] sm:$0x1]
        %v1134 = vperm.slane %v1133, 0
        %v1135 = vmul.f32 %v1014, %v1134
        %v1136 = vmul.f32 %v1015, %v1134
        %v1137 = vmul.f32 %v1016, %v1134
        %v1138 = vmul.f32 %v1017, %v1134
        %v1139 = vmul.f32 %v1018, %v1134
        %v1140 = vmul.f32 %v1019, %v1134
        %v1141 = vmul.f32 %v1020, %v1134
        %v1142 = vadd.f32 %v1126, %v1135
        %v1143 = vadd.f32 %v1127, %v1136
        %v1144 = vadd.f32 %v1128, %v1137
        %v1145 = vadd.f32 %v1129, %v1138
        %v1146 = vadd.f32 %v1130, %v1139
        %v1147 = vadd.f32 %v1131, %v1140
        %v1148 = vadd.f32 %v1132, %v1141
        %v1149 = vld [vmem:[#allocation2 + $0x2] sm:$0x7f]
        %v1150 = vld [vmem:[#allocation2 + $0x12] sm:$0x7f]
        %v1151 = vld [vmem:[#allocation2 + $0x22] sm:$0x7f]
        %v1152 = vld [vmem:[#allocation2 + $0x32] sm:$0x7f]
        %v1153 = vld [vmem:[#allocation2 + $0x42] sm:$0x7f]
        %v1154 = vld [vmem:[#allocation2 + $0x52] sm:$0x7f]
        %v1155 = vld [vmem:[#allocation2 + $0x62] sm:$0x7f]
        %v1156 = vld [vmem:[#allocation2 + $0x72] sm:$0x7f]
        %v1157 = vld [vmem:[#allocation2 + $0x82] sm:$0x7f]
        %v1158 = vld [vmem:[#allocation2 + $0x92] sm:$0x7f]
        %v1159 = vld [vmem:[#allocation2 + $0xa2] sm:$0x7f]
        %v1160 = vld [vmem:[#allocation2 + $0xb2] sm:$0x7f]
        %v1161 = vld [vmem:[#allocation2 + $0xc2] sm:$0x7f]
        %v1162 = vld [vmem:[#allocation2 + $0xd2] sm:$0x7f]
        %v1163 = vld [vmem:[%s2 + $0x2] sm:$0x1]
        %v1164 = vperm.slane %v1163, 0
        %v1165 = vmul.f32 %v1149, %v1164
        %v1166 = vmul.f32 %v1150, %v1164
        %v1167 = vmul.f32 %v1151, %v1164
        %v1168 = vmul.f32 %v1152, %v1164
        %v1169 = vmul.f32 %v1153, %v1164
        %v1170 = vmul.f32 %v1154, %v1164
        %v1171 = vmul.f32 %v1155, %v1164
        %v1172 = vadd.f32 %v1142, %v1165
        %v1173 = vadd.f32 %v1143, %v1166
        %v1174 = vadd.f32 %v1144, %v1167
        %v1175 = vadd.f32 %v1145, %v1168
        %v1176 = vadd.f32 %v1146, %v1169
        %v1177 = vadd.f32 %v1147, %v1170
        %v1178 = vadd.f32 %v1148, %v1171
        %v1179 = vld [vmem:[%s888 + $0x2] sm:$0x1]
        %v1180 = vperm.slane %v1179, 0
        %v1181 = vmul.f32 %v1150, %v1180
        %v1182 = vmul.f32 %v1151, %v1180
        %v1183 = vmul.f32 %v1152, %v1180
        %v1184 = vmul.f32 %v1153, %v1180
        %v1185 = vmul.f32 %v1154, %v1180
        %v1186 = vmul.f32 %v1155, %v1180
        %v1187 = vmul.f32 %v1156, %v1180
        %v1188 = vadd.f32 %v1172, %v1181
        %v1189 = vadd.f32 %v1173, %v1182
        %v1190 = vadd.f32 %v1174, %v1183
        %v1191 = vadd.f32 %v1175, %v1184
        %v1192 = vadd.f32 %v1176, %v1185
        %v1193 = vadd.f32 %v1177, %v1186
        %v1194 = vadd.f32 %v1178, %v1187
        %v1195 = vld [vmem:[%s905 + $0x2] sm:$0x1]
        %v1196 = vperm.slane %v1195, 0
        %v1197 = vmul.f32 %v1151, %v1196
        %v1198 = vmul.f32 %v1152, %v1196
        %v1199 = vmul.f32 %v1153, %v1196
        %v1200 = vmul.f32 %v1154, %v1196
        %v1201 = vmul.f32 %v1155, %v1196
        %v1202 = vmul.f32 %v1156, %v1196
        %v1203 = vmul.f32 %v1157, %v1196
        %v1204 = vadd.f32 %v1188, %v1197
        %v1205 = vadd.f32 %v1189, %v1198
        %v1206 = vadd.f32 %v1190, %v1199
        %v1207 = vadd.f32 %v1191, %v1200
        %v1208 = vadd.f32 %v1192, %v1201
        %v1209 = vadd.f32 %v1193, %v1202
        %v1210 = vadd.f32 %v1194, %v1203
        %v1211 = vld [vmem:[%s922 + $0x2] sm:$0x1]
        %v1212 = vperm.slane %v1211, 0
        %v1213 = vmul.f32 %v1152, %v1212
        %v1214 = vmul.f32 %v1153, %v1212
        %v1215 = vmul.f32 %v1154, %v1212
        %v1216 = vmul.f32 %v1155, %v1212
        %v1217 = vmul.f32 %v1156, %v1212
        %v1218 = vmul.f32 %v1157, %v1212
        %v1219 = vmul.f32 %v1158, %v1212
        %v1220 = vadd.f32 %v1204, %v1213
        %v1221 = vadd.f32 %v1205, %v1214
        %v1222 = vadd.f32 %v1206, %v1215
        %v1223 = vadd.f32 %v1207, %v1216
        %v1224 = vadd.f32 %v1208, %v1217
        %v1225 = vadd.f32 %v1209, %v1218
        %v1226 = vadd.f32 %v1210, %v1219
        %v1227 = vld [vmem:[%s939 + $0x2] sm:$0x1]
        %v1228 = vperm.slane %v1227, 0
        %v1229 = vmul.f32 %v1153, %v1228
        %v1230 = vmul.f32 %v1154, %v1228
        %v1231 = vmul.f32 %v1155, %v1228
        %v1232 = vmul.f32 %v1156, %v1228
        %v1233 = vmul.f32 %v1157, %v1228
        %v1234 = vmul.f32 %v1158, %v1228
        %v1235 = vmul.f32 %v1159, %v1228
        %v1236 = vadd.f32 %v1220, %v1229
        %v1237 = vadd.f32 %v1221, %v1230
        %v1238 = vadd.f32 %v1222, %v1231
        %v1239 = vadd.f32 %v1223, %v1232
        %v1240 = vadd.f32 %v1224, %v1233
        %v1241 = vadd.f32 %v1225, %v1234
        %v1242 = vadd.f32 %v1226, %v1235
        %v1243 = vld [vmem:[%s956 + $0x2] sm:$0x1]
        %v1244 = vperm.slane %v1243, 0
        %v1245 = vmul.f32 %v1154, %v1244
        %v1246 = vmul.f32 %v1155, %v1244
        %v1247 = vmul.f32 %v1156, %v1244
        %v1248 = vmul.f32 %v1157, %v1244
        %v1249 = vmul.f32 %v1158, %v1244
        %v1250 = vmul.f32 %v1159, %v1244
        %v1251 = vmul.f32 %v1160, %v1244
        %v1252 = vadd.f32 %v1236, %v1245
        %v1253 = vadd.f32 %v1237, %v1246
        %v1254 = vadd.f32 %v1238, %v1247
        %v1255 = vadd.f32 %v1239, %v1248
        %v1256 = vadd.f32 %v1240, %v1249
        %v1257 = vadd.f32 %v1241, %v1250
        %v1258 = vadd.f32 %v1242, %v1251
        %v1259 = vld [vmem:[%s973 + $0x2] sm:$0x1]
        %v1260 = vperm.slane %v1259, 0
        %v1261 = vmul.f32 %v1155, %v1260
        %v1262 = vmul.f32 %v1156, %v1260
        %v1263 = vmul.f32 %v1157, %v1260
        %v1264 = vmul.f32 %v1158, %v1260
        %v1265 = vmul.f32 %v1159, %v1260
        %v1266 = vmul.f32 %v1160, %v1260
        %v1267 = vmul.f32 %v1161, %v1260
        %v1268 = vadd.f32 %v1252, %v1261
        %v1269 = vadd.f32 %v1253, %v1262
        %v1270 = vadd.f32 %v1254, %v1263
        %v1271 = vadd.f32 %v1255, %v1264
        %v1272 = vadd.f32 %v1256, %v1265
        %v1273 = vadd.f32 %v1257, %v1266
        %v1274 = vadd.f32 %v1258, %v1267
        %v1275 = vld [vmem:[%s990 + $0x2] sm:$0x1]
        %v1276 = vperm.slane %v1275, 0
        %v1277 = vmul.f32 %v1156, %v1276
        %v1278 = vmul.f32 %v1157, %v1276
        %v1279 = vmul.f32 %v1158, %v1276
        %v1280 = vmul.f32 %v1159, %v1276
        %v1281 = vmul.f32 %v1160, %v1276
        %v1282 = vmul.f32 %v1161, %v1276
        %v1283 = vmul.f32 %v1162, %v1276
        %v1284 = vadd.f32 %v1268, %v1277
        %v1285 = vadd.f32 %v1269, %v1278
        %v1286 = vadd.f32 %v1270, %v1279
        %v1287 = vadd.f32 %v1271, %v1280
        %v1288 = vadd.f32 %v1272, %v1281
        %v1289 = vadd.f32 %v1273, %v1282
        %v1290 = vadd.f32 %v1274, %v1283
        %v1291 = vld [vmem:[#allocation2 + $0x3] sm:$0x7f]
        %v1292 = vld [vmem:[#allocation2 + $0x13] sm:$0x7f]
        %v1293 = vld [vmem:[#allocation2 + $0x23] sm:$0x7f]
        %v1294 = vld [vmem:[#allocation2 + $0x33] sm:$0x7f]
        %v1295 = vld [vmem:[#allocation2 + $0x43] sm:$0x7f]
        %v1296 = vld [vmem:[#allocation2 + $0x53] sm:$0x7f]
        %v1297 = vld [vmem:[#allocation2 + $0x63] sm:$0x7f]
        %v1298 = vld [vmem:[#allocation2 + $0x73] sm:$0x7f]
        %v1299 = vld [vmem:[#allocation2 + $0x83] sm:$0x7f]
        %v1300 = vld [vmem:[#allocation2 + $0x93] sm:$0x7f]
        %v1301 = vld [vmem:[#allocation2 + $0xa3] sm:$0x7f]
        %v1302 = vld [vmem:[#allocation2 + $0xb3] sm:$0x7f]
        %v1303 = vld [vmem:[#allocation2 + $0xc3] sm:$0x7f]
        %v1304 = vld [vmem:[#allocation2 + $0xd3] sm:$0x7f]
        %v1305 = vld [vmem:[%s2 + $0x3] sm:$0x1]
        %v1306 = vperm.slane %v1305, 0
        %v1307 = vmul.f32 %v1291, %v1306
        %v1308 = vmul.f32 %v1292, %v1306
        %v1309 = vmul.f32 %v1293, %v1306
        %v1310 = vmul.f32 %v1294, %v1306
        %v1311 = vmul.f32 %v1295, %v1306
        %v1312 = vmul.f32 %v1296, %v1306
        %v1313 = vmul.f32 %v1297, %v1306
        %v1314 = vadd.f32 %v1284, %v1307
        %v1315 = vadd.f32 %v1285, %v1308
        %v1316 = vadd.f32 %v1286, %v1309
        %v1317 = vadd.f32 %v1287, %v1310
        %v1318 = vadd.f32 %v1288, %v1311
        %v1319 = vadd.f32 %v1289, %v1312
        %v1320 = vadd.f32 %v1290, %v1313
        %v1321 = vld [vmem:[%s888 + $0x3] sm:$0x1]
        %v1322 = vperm.slane %v1321, 0
        %v1323 = vmul.f32 %v1292, %v1322
        %v1324 = vmul.f32 %v1293, %v1322
        %v1325 = vmul.f32 %v1294, %v1322
        %v1326 = vmul.f32 %v1295, %v1322
        %v1327 = vmul.f32 %v1296, %v1322
        %v1328 = vmul.f32 %v1297, %v1322
        %v1329 = vmul.f32 %v1298, %v1322
        %v1330 = vadd.f32 %v1314, %v1323
        %v1331 = vadd.f32 %v1315, %v1324
        %v1332 = vadd.f32 %v1316, %v1325
        %v1333 = vadd.f32 %v1317, %v1326
        %v1334 = vadd.f32 %v1318, %v1327
        %v1335 = vadd.f32 %v1319, %v1328
        %v1336 = vadd.f32 %v1320, %v1329
        %v1337 = vld [vmem:[%s905 + $0x3] sm:$0x1]
        %v1338 = vperm.slane %v1337, 0
        %v1339 = vmul.f32 %v1293, %v1338
        %v1340 = vmul.f32 %v1294, %v1338
        %v1341 = vmul.f32 %v1295, %v1338
        %v1342 = vmul.f32 %v1296, %v1338
        %v1343 = vmul.f32 %v1297, %v1338
        %v1344 = vmul.f32 %v1298, %v1338
        %v1345 = vmul.f32 %v1299, %v1338
        %v1346 = vadd.f32 %v1330, %v1339
        %v1347 = vadd.f32 %v1331, %v1340
        %v1348 = vadd.f32 %v1332, %v1341
        %v1349 = vadd.f32 %v1333, %v1342
        %v1350 = vadd.f32 %v1334, %v1343
        %v1351 = vadd.f32 %v1335, %v1344
        %v1352 = vadd.f32 %v1336, %v1345
        %v1353 = vld [vmem:[%s922 + $0x3] sm:$0x1]
        %v1354 = vperm.slane %v1353, 0
        %v1355 = vmul.f32 %v1294, %v1354
        %v1356 = vmul.f32 %v1295, %v1354
        %v1357 = vmul.f32 %v1296, %v1354
        %v1358 = vmul.f32 %v1297, %v1354
        %v1359 = vmul.f32 %v1298, %v1354
        %v1360 = vmul.f32 %v1299, %v1354
        %v1361 = vmul.f32 %v1300, %v1354
        %v1362 = vadd.f32 %v1346, %v1355
        %v1363 = vadd.f32 %v1347, %v1356
        %v1364 = vadd.f32 %v1348, %v1357
        %v1365 = vadd.f32 %v1349, %v1358
        %v1366 = vadd.f32 %v1350, %v1359
        %v1367 = vadd.f32 %v1351, %v1360
        %v1368 = vadd.f32 %v1352, %v1361
        %v1369 = vld [vmem:[%s939 + $0x3] sm:$0x1]
        %v1370 = vperm.slane %v1369, 0
        %v1371 = vmul.f32 %v1295, %v1370
        %v1372 = vmul.f32 %v1296, %v1370
        %v1373 = vmul.f32 %v1297, %v1370
        %v1374 = vmul.f32 %v1298, %v1370
        %v1375 = vmul.f32 %v1299, %v1370
        %v1376 = vmul.f32 %v1300, %v1370
        %v1377 = vmul.f32 %v1301, %v1370
        %v1378 = vadd.f32 %v1362, %v1371
        %v1379 = vadd.f32 %v1363, %v1372
        %v1380 = vadd.f32 %v1364, %v1373
        %v1381 = vadd.f32 %v1365, %v1374
        %v1382 = vadd.f32 %v1366, %v1375
        %v1383 = vadd.f32 %v1367, %v1376
        %v1384 = vadd.f32 %v1368, %v1377
        %v1385 = vld [vmem:[%s956 + $0x3] sm:$0x1]
        %v1386 = vperm.slane %v1385, 0
        %v1387 = vmul.f32 %v1296, %v1386
        %v1388 = vmul.f32 %v1297, %v1386
        %v1389 = vmul.f32 %v1298, %v1386
        %v1390 = vmul.f32 %v1299, %v1386
        %v1391 = vmul.f32 %v1300, %v1386
        %v1392 = vmul.f32 %v1301, %v1386
        %v1393 = vmul.f32 %v1302, %v1386
        %v1394 = vadd.f32 %v1378, %v1387
        %v1395 = vadd.f32 %v1379, %v1388
        %v1396 = vadd.f32 %v1380, %v1389
        %v1397 = vadd.f32 %v1381, %v1390
        %v1398 = vadd.f32 %v1382, %v1391
        %v1399 = vadd.f32 %v1383, %v1392
        %v1400 = vadd.f32 %v1384, %v1393
        %v1401 = vld [vmem:[%s973 + $0x3] sm:$0x1]
        %v1402 = vperm.slane %v1401, 0
        %v1403 = vmul.f32 %v1297, %v1402
        %v1404 = vmul.f32 %v1298, %v1402
        %v1405 = vmul.f32 %v1299, %v1402
        %v1406 = vmul.f32 %v1300, %v1402
        %v1407 = vmul.f32 %v1301, %v1402
        %v1408 = vmul.f32 %v1302, %v1402
        %v1409 = vmul.f32 %v1303, %v1402
        %v1410 = vadd.f32 %v1394, %v1403
        %v1411 = vadd.f32 %v1395, %v1404
        %v1412 = vadd.f32 %v1396, %v1405
        %v1413 = vadd.f32 %v1397, %v1406
        %v1414 = vadd.f32 %v1398, %v1407
        %v1415 = vadd.f32 %v1399, %v1408
        %v1416 = vadd.f32 %v1400, %v1409
        %v1417 = vld [vmem:[%s990 + $0x3] sm:$0x1]
        %v1418 = vperm.slane %v1417, 0
        %v1419 = vmul.f32 %v1298, %v1418
        %v1420 = vmul.f32 %v1299, %v1418
        %v1421 = vmul.f32 %v1300, %v1418
        %v1422 = vmul.f32 %v1301, %v1418
        %v1423 = vmul.f32 %v1302, %v1418
        %v1424 = vmul.f32 %v1303, %v1418
        %v1425 = vmul.f32 %v1304, %v1418
        %v1426 = vadd.f32 %v1410, %v1419
        %v1427 = vadd.f32 %v1411, %v1420
        %v1428 = vadd.f32 %v1412, %v1421
        %v1429 = vadd.f32 %v1413, %v1422
        %v1430 = vadd.f32 %v1414, %v1423
        %v1431 = vadd.f32 %v1415, %v1424
        %v1432 = vadd.f32 %v1416, %v1425
        %v1433 = vld [vmem:[#allocation2 + $0x4] sm:$0x7f]
        %v1434 = vld [vmem:[#allocation2 + $0x14] sm:$0x7f]
        %v1435 = vld [vmem:[#allocation2 + $0x24] sm:$0x7f]
        %v1436 = vld [vmem:[#allocation2 + $0x34] sm:$0x7f]
        %v1437 = vld [vmem:[#allocation2 + $0x44] sm:$0x7f]
        %v1438 = vld [vmem:[#allocation2 + $0x54] sm:$0x7f]
        %v1439 = vld [vmem:[#allocation2 + $0x64] sm:$0x7f]
        %v1440 = vld [vmem:[#allocation2 + $0x74] sm:$0x7f]
        %v1441 = vld [vmem:[#allocation2 + $0x84] sm:$0x7f]
        %v1442 = vld [vmem:[#allocation2 + $0x94] sm:$0x7f]
        %v1443 = vld [vmem:[#allocation2 + $0xa4] sm:$0x7f]
        %v1444 = vld [vmem:[#allocation2 + $0xb4] sm:$0x7f]
        %v1445 = vld [vmem:[#allocation2 + $0xc4] sm:$0x7f]
        %v1446 = vld [vmem:[#allocation2 + $0xd4] sm:$0x7f]
        %v1447 = vld [vmem:[%s2 + $0x4] sm:$0x1]
        %v1448 = vperm.slane %v1447, 0
        %v1449 = vmul.f32 %v1433, %v1448
        %v1450 = vmul.f32 %v1434, %v1448
        %v1451 = vmul.f32 %v1435, %v1448
        %v1452 = vmul.f32 %v1436, %v1448
        %v1453 = vmul.f32 %v1437, %v1448
        %v1454 = vmul.f32 %v1438, %v1448
        %v1455 = vmul.f32 %v1439, %v1448
        %v1456 = vadd.f32 %v1426, %v1449
        %v1457 = vadd.f32 %v1427, %v1450
        %v1458 = vadd.f32 %v1428, %v1451
        %v1459 = vadd.f32 %v1429, %v1452
        %v1460 = vadd.f32 %v1430, %v1453
        %v1461 = vadd.f32 %v1431, %v1454
        %v1462 = vadd.f32 %v1432, %v1455
        %v1463 = vld [vmem:[%s888 + $0x4] sm:$0x1]
        %v1464 = vperm.slane %v1463, 0
        %v1465 = vmul.f32 %v1434, %v1464
        %v1466 = vmul.f32 %v1435, %v1464
        %v1467 = vmul.f32 %v1436, %v1464
        %v1468 = vmul.f32 %v1437, %v1464
        %v1469 = vmul.f32 %v1438, %v1464
        %v1470 = vmul.f32 %v1439, %v1464
        %v1471 = vmul.f32 %v1440, %v1464
        %v1472 = vadd.f32 %v1456, %v1465
        %v1473 = vadd.f32 %v1457, %v1466
        %v1474 = vadd.f32 %v1458, %v1467
        %v1475 = vadd.f32 %v1459, %v1468
        %v1476 = vadd.f32 %v1460, %v1469
        %v1477 = vadd.f32 %v1461, %v1470
        %v1478 = vadd.f32 %v1462, %v1471
        %v1479 = vld [vmem:[%s905 + $0x4] sm:$0x1]
        %v1480 = vperm.slane %v1479, 0
        %v1481 = vmul.f32 %v1435, %v1480
        %v1482 = vmul.f32 %v1436, %v1480
        %v1483 = vmul.f32 %v1437, %v1480
        %v1484 = vmul.f32 %v1438, %v1480
        %v1485 = vmul.f32 %v1439, %v1480
        %v1486 = vmul.f32 %v1440, %v1480
        %v1487 = vmul.f32 %v1441, %v1480
        %v1488 = vadd.f32 %v1472, %v1481
        %v1489 = vadd.f32 %v1473, %v1482
        %v1490 = vadd.f32 %v1474, %v1483
        %v1491 = vadd.f32 %v1475, %v1484
        %v1492 = vadd.f32 %v1476, %v1485
        %v1493 = vadd.f32 %v1477, %v1486
        %v1494 = vadd.f32 %v1478, %v1487
        %v1495 = vld [vmem:[%s922 + $0x4] sm:$0x1]
        %v1496 = vperm.slane %v1495, 0
        %v1497 = vmul.f32 %v1436, %v1496
        %v1498 = vmul.f32 %v1437, %v1496
        %v1499 = vmul.f32 %v1438, %v1496
        %v1500 = vmul.f32 %v1439, %v1496
        %v1501 = vmul.f32 %v1440, %v1496
        %v1502 = vmul.f32 %v1441, %v1496
        %v1503 = vmul.f32 %v1442, %v1496
        %v1504 = vadd.f32 %v1488, %v1497
        %v1505 = vadd.f32 %v1489, %v1498
        %v1506 = vadd.f32 %v1490, %v1499
        %v1507 = vadd.f32 %v1491, %v1500
        %v1508 = vadd.f32 %v1492, %v1501
        %v1509 = vadd.f32 %v1493, %v1502
        %v1510 = vadd.f32 %v1494, %v1503
        %v1511 = vld [vmem:[%s939 + $0x4] sm:$0x1]
        %v1512 = vperm.slane %v1511, 0
        %v1513 = vmul.f32 %v1437, %v1512
        %v1514 = vmul.f32 %v1438, %v1512
        %v1515 = vmul.f32 %v1439, %v1512
        %v1516 = vmul.f32 %v1440, %v1512
        %v1517 = vmul.f32 %v1441, %v1512
        %v1518 = vmul.f32 %v1442, %v1512
        %v1519 = vmul.f32 %v1443, %v1512
        %v1520 = vadd.f32 %v1504, %v1513
        %v1521 = vadd.f32 %v1505, %v1514
        %v1522 = vadd.f32 %v1506, %v1515
        %v1523 = vadd.f32 %v1507, %v1516
        %v1524 = vadd.f32 %v1508, %v1517
        %v1525 = vadd.f32 %v1509, %v1518
        %v1526 = vadd.f32 %v1510, %v1519
        %v1527 = vld [vmem:[%s956 + $0x4] sm:$0x1]
        %v1528 = vperm.slane %v1527, 0
        %v1529 = vmul.f32 %v1438, %v1528
        %v1530 = vmul.f32 %v1439, %v1528
        %v1531 = vmul.f32 %v1440, %v1528
        %v1532 = vmul.f32 %v1441, %v1528
        %v1533 = vmul.f32 %v1442, %v1528
        %v1534 = vmul.f32 %v1443, %v1528
        %v1535 = vmul.f32 %v1444, %v1528
        %v1536 = vadd.f32 %v1520, %v1529
        %v1537 = vadd.f32 %v1521, %v1530
        %v1538 = vadd.f32 %v1522, %v1531
        %v1539 = vadd.f32 %v1523, %v1532
        %v1540 = vadd.f32 %v1524, %v1533
        %v1541 = vadd.f32 %v1525, %v1534
        %v1542 = vadd.f32 %v1526, %v1535
        %v1543 = vld [vmem:[%s973 + $0x4] sm:$0x1]
        %v1544 = vperm.slane %v1543, 0
        %v1545 = vmul.f32 %v1439, %v1544
        %v1546 = vmul.f32 %v1440, %v1544
        %v1547 = vmul.f32 %v1441, %v1544
        %v1548 = vmul.f32 %v1442, %v1544
        %v1549 = vmul.f32 %v1443, %v1544
        %v1550 = vmul.f32 %v1444, %v1544
        %v1551 = vmul.f32 %v1445, %v1544
        %v1552 = vadd.f32 %v1536, %v1545
        %v1553 = vadd.f32 %v1537, %v1546
        %v1554 = vadd.f32 %v1538, %v1547
        %v1555 = vadd.f32 %v1539, %v1548
        %v1556 = vadd.f32 %v1540, %v1549
        %v1557 = vadd.f32 %v1541, %v1550
        %v1558 = vadd.f32 %v1542, %v1551
        %v1559 = vld [vmem:[%s990 + $0x4] sm:$0x1]
        %v1560 = vperm.slane %v1559, 0
        %v1561 = vmul.f32 %v1440, %v1560
        %v1562 = vmul.f32 %v1441, %v1560
        %v1563 = vmul.f32 %v1442, %v1560
        %v1564 = vmul.f32 %v1443, %v1560
        %v1565 = vmul.f32 %v1444, %v1560
        %v1566 = vmul.f32 %v1445, %v1560
        %v1567 = vmul.f32 %v1446, %v1560
        %v1568 = vadd.f32 %v1552, %v1561
        %v1569 = vadd.f32 %v1553, %v1562
        %v1570 = vadd.f32 %v1554, %v1563
        %v1571 = vadd.f32 %v1555, %v1564
        %v1572 = vadd.f32 %v1556, %v1565
        %v1573 = vadd.f32 %v1557, %v1566
        %v1574 = vadd.f32 %v1558, %v1567
        %v1575 = vld [vmem:[#allocation2 + $0x5] sm:$0x7f]
        %v1576 = vld [vmem:[#allocation2 + $0x15] sm:$0x7f]
        %v1577 = vld [vmem:[#allocation2 + $0x25] sm:$0x7f]
        %v1578 = vld [vmem:[#allocation2 + $0x35] sm:$0x7f]
        %v1579 = vld [vmem:[#allocation2 + $0x45] sm:$0x7f]
        %v1580 = vld [vmem:[#allocation2 + $0x55] sm:$0x7f]
        %v1581 = vld [vmem:[#allocation2 + $0x65] sm:$0x7f]
        %v1582 = vld [vmem:[#allocation2 + $0x75] sm:$0x7f]
        %v1583 = vld [vmem:[#allocation2 + $0x85] sm:$0x7f]
        %v1584 = vld [vmem:[#allocation2 + $0x95] sm:$0x7f]
        %v1585 = vld [vmem:[#allocation2 + $0xa5] sm:$0x7f]
        %v1586 = vld [vmem:[#allocation2 + $0xb5] sm:$0x7f]
        %v1587 = vld [vmem:[#allocation2 + $0xc5] sm:$0x7f]
        %v1588 = vld [vmem:[#allocation2 + $0xd5] sm:$0x7f]
        %v1589 = vld [vmem:[%s2 + $0x5] sm:$0x1]
        %v1590 = vperm.slane %v1589, 0
        %v1591 = vmul.f32 %v1575, %v1590
        %v1592 = vmul.f32 %v1576, %v1590
        %v1593 = vmul.f32 %v1577, %v1590
        %v1594 = vmul.f32 %v1578, %v1590
        %v1595 = vmul.f32 %v1579, %v1590
        %v1596 = vmul.f32 %v1580, %v1590
        %v1597 = vmul.f32 %v1581, %v1590
        %v1598 = vadd.f32 %v1568, %v1591
        %v1599 = vadd.f32 %v1569, %v1592
        %v1600 = vadd.f32 %v1570, %v1593
        %v1601 = vadd.f32 %v1571, %v1594
        %v1602 = vadd.f32 %v1572, %v1595
        %v1603 = vadd.f32 %v1573, %v1596
        %v1604 = vadd.f32 %v1574, %v1597
        %v1605 = vld [vmem:[%s888 + $0x5] sm:$0x1]
        %v1606 = vperm.slane %v1605, 0
        %v1607 = vmul.f32 %v1576, %v1606
        %v1608 = vmul.f32 %v1577, %v1606
        %v1609 = vmul.f32 %v1578, %v1606
        %v1610 = vmul.f32 %v1579, %v1606
        %v1611 = vmul.f32 %v1580, %v1606
        %v1612 = vmul.f32 %v1581, %v1606
        %v1613 = vmul.f32 %v1582, %v1606
        %v1614 = vadd.f32 %v1598, %v1607
        %v1615 = vadd.f32 %v1599, %v1608
        %v1616 = vadd.f32 %v1600, %v1609
        %v1617 = vadd.f32 %v1601, %v1610
        %v1618 = vadd.f32 %v1602, %v1611
        %v1619 = vadd.f32 %v1603, %v1612
        %v1620 = vadd.f32 %v1604, %v1613
        %v1621 = vld [vmem:[%s905 + $0x5] sm:$0x1]
        %v1622 = vperm.slane %v1621, 0
        %v1623 = vmul.f32 %v1577, %v1622
        %v1624 = vmul.f32 %v1578, %v1622
        %v1625 = vmul.f32 %v1579, %v1622
        %v1626 = vmul.f32 %v1580, %v1622
        %v1627 = vmul.f32 %v1581, %v1622
        %v1628 = vmul.f32 %v1582, %v1622
        %v1629 = vmul.f32 %v1583, %v1622
        %v1630 = vadd.f32 %v1614, %v1623
        %v1631 = vadd.f32 %v1615, %v1624
        %v1632 = vadd.f32 %v1616, %v1625
        %v1633 = vadd.f32 %v1617, %v1626
        %v1634 = vadd.f32 %v1618, %v1627
        %v1635 = vadd.f32 %v1619, %v1628
        %v1636 = vadd.f32 %v1620, %v1629
        %v1637 = vld [vmem:[%s922 + $0x5] sm:$0x1]
        %v1638 = vperm.slane %v1637, 0
        %v1639 = vmul.f32 %v1578, %v1638
        %v1640 = vmul.f32 %v1579, %v1638
        %v1641 = vmul.f32 %v1580, %v1638
        %v1642 = vmul.f32 %v1581, %v1638
        %v1643 = vmul.f32 %v1582, %v1638
        %v1644 = vmul.f32 %v1583, %v1638
        %v1645 = vmul.f32 %v1584, %v1638
        %v1646 = vadd.f32 %v1630, %v1639
        %v1647 = vadd.f32 %v1631, %v1640
        %v1648 = vadd.f32 %v1632, %v1641
        %v1649 = vadd.f32 %v1633, %v1642
        %v1650 = vadd.f32 %v1634, %v1643
        %v1651 = vadd.f32 %v1635, %v1644
        %v1652 = vadd.f32 %v1636, %v1645
        %v1653 = vld [vmem:[%s939 + $0x5] sm:$0x1]
        %v1654 = vperm.slane %v1653, 0
        %v1655 = vmul.f32 %v1579, %v1654
        %v1656 = vmul.f32 %v1580, %v1654
        %v1657 = vmul.f32 %v1581, %v1654
        %v1658 = vmul.f32 %v1582, %v1654
        %v1659 = vmul.f32 %v1583, %v1654
        %v1660 = vmul.f32 %v1584, %v1654
        %v1661 = vmul.f32 %v1585, %v1654
        %v1662 = vadd.f32 %v1646, %v1655
        %v1663 = vadd.f32 %v1647, %v1656
        %v1664 = vadd.f32 %v1648, %v1657
        %v1665 = vadd.f32 %v1649, %v1658
        %v1666 = vadd.f32 %v1650, %v1659
        %v1667 = vadd.f32 %v1651, %v1660
        %v1668 = vadd.f32 %v1652, %v1661
        %v1669 = vld [vmem:[%s956 + $0x5] sm:$0x1]
        %v1670 = vperm.slane %v1669, 0
        %v1671 = vmul.f32 %v1580, %v1670
        %v1672 = vmul.f32 %v1581, %v1670
        %v1673 = vmul.f32 %v1582, %v1670
        %v1674 = vmul.f32 %v1583, %v1670
        %v1675 = vmul.f32 %v1584, %v1670
        %v1676 = vmul.f32 %v1585, %v1670
        %v1677 = vmul.f32 %v1586, %v1670
        %v1678 = vadd.f32 %v1662, %v1671
        %v1679 = vadd.f32 %v1663, %v1672
        %v1680 = vadd.f32 %v1664, %v1673
        %v1681 = vadd.f32 %v1665, %v1674
        %v1682 = vadd.f32 %v1666, %v1675
        %v1683 = vadd.f32 %v1667, %v1676
        %v1684 = vadd.f32 %v1668, %v1677
        %v1685 = vld [vmem:[%s973 + $0x5] sm:$0x1]
        %v1686 = vperm.slane %v1685, 0
        %v1687 = vmul.f32 %v1581, %v1686
        %v1688 = vmul.f32 %v1582, %v1686
        %v1689 = vmul.f32 %v1583, %v1686
        %v1690 = vmul.f32 %v1584, %v1686
        %v1691 = vmul.f32 %v1585, %v1686
        %v1692 = vmul.f32 %v1586, %v1686
        %v1693 = vmul.f32 %v1587, %v1686
        %v1694 = vadd.f32 %v1678, %v1687
        %v1695 = vadd.f32 %v1679, %v1688
        %v1696 = vadd.f32 %v1680, %v1689
        %v1697 = vadd.f32 %v1681, %v1690
        %v1698 = vadd.f32 %v1682, %v1691
        %v1699 = vadd.f32 %v1683, %v1692
        %v1700 = vadd.f32 %v1684, %v1693
        %v1701 = vld [vmem:[%s990 + $0x5] sm:$0x1]
        %v1702 = vperm.slane %v1701, 0
        %v1703 = vmul.f32 %v1582, %v1702
        %v1704 = vmul.f32 %v1583, %v1702
        %v1705 = vmul.f32 %v1584, %v1702
        %v1706 = vmul.f32 %v1585, %v1702
        %v1707 = vmul.f32 %v1586, %v1702
        %v1708 = vmul.f32 %v1587, %v1702
        %v1709 = vmul.f32 %v1588, %v1702
        %v1710 = vadd.f32 %v1694, %v1703
        %v1711 = vadd.f32 %v1695, %v1704
        %v1712 = vadd.f32 %v1696, %v1705
        %v1713 = vadd.f32 %v1697, %v1706
        %v1714 = vadd.f32 %v1698, %v1707
        %v1715 = vadd.f32 %v1699, %v1708
        %v1716 = vadd.f32 %v1700, %v1709
        %v1717 = vld [vmem:[#allocation2 + $0x6] sm:$0x7f]
        %v1718 = vld [vmem:[#allocation2 + $0x16] sm:$0x7f]
        %v1719 = vld [vmem:[#allocation2 + $0x26] sm:$0x7f]
        %v1720 = vld [vmem:[#allocation2 + $0x36] sm:$0x7f]
        %v1721 = vld [vmem:[#allocation2 + $0x46] sm:$0x7f]
        %v1722 = vld [vmem:[#allocation2 + $0x56] sm:$0x7f]
        %v1723 = vld [vmem:[#allocation2 + $0x66] sm:$0x7f]
        %v1724 = vld [vmem:[#allocation2 + $0x76] sm:$0x7f]
        %v1725 = vld [vmem:[#allocation2 + $0x86] sm:$0x7f]
        %v1726 = vld [vmem:[#allocation2 + $0x96] sm:$0x7f]
        %v1727 = vld [vmem:[#allocation2 + $0xa6] sm:$0x7f]
        %v1728 = vld [vmem:[#allocation2 + $0xb6] sm:$0x7f]
        %v1729 = vld [vmem:[#allocation2 + $0xc6] sm:$0x7f]
        %v1730 = vld [vmem:[#allocation2 + $0xd6] sm:$0x7f]
        %v1731 = vld [vmem:[%s2 + $0x6] sm:$0x1]
        %v1732 = vperm.slane %v1731, 0
        %v1733 = vmul.f32 %v1717, %v1732
        %v1734 = vmul.f32 %v1718, %v1732
        %v1735 = vmul.f32 %v1719, %v1732
        %v1736 = vmul.f32 %v1720, %v1732
        %v1737 = vmul.f32 %v1721, %v1732
        %v1738 = vmul.f32 %v1722, %v1732
        %v1739 = vmul.f32 %v1723, %v1732
        %v1740 = vadd.f32 %v1710, %v1733
        %v1741 = vadd.f32 %v1711, %v1734
        %v1742 = vadd.f32 %v1712, %v1735
        %v1743 = vadd.f32 %v1713, %v1736
        %v1744 = vadd.f32 %v1714, %v1737
        %v1745 = vadd.f32 %v1715, %v1738
        %v1746 = vadd.f32 %v1716, %v1739
        %v1747 = vld [vmem:[%s888 + $0x6] sm:$0x1]
        %v1748 = vperm.slane %v1747, 0
        %v1749 = vmul.f32 %v1718, %v1748
        %v1750 = vmul.f32 %v1719, %v1748
        %v1751 = vmul.f32 %v1720, %v1748
        %v1752 = vmul.f32 %v1721, %v1748
        %v1753 = vmul.f32 %v1722, %v1748
        %v1754 = vmul.f32 %v1723, %v1748
        %v1755 = vmul.f32 %v1724, %v1748
        %v1756 = vadd.f32 %v1740, %v1749
        %v1757 = vadd.f32 %v1741, %v1750
        %v1758 = vadd.f32 %v1742, %v1751
        %v1759 = vadd.f32 %v1743, %v1752
        %v1760 = vadd.f32 %v1744, %v1753
        %v1761 = vadd.f32 %v1745, %v1754
        %v1762 = vadd.f32 %v1746, %v1755
        %v1763 = vld [vmem:[%s905 + $0x6] sm:$0x1]
        %v1764 = vperm.slane %v1763, 0
        %v1765 = vmul.f32 %v1719, %v1764
        %v1766 = vmul.f32 %v1720, %v1764
        %v1767 = vmul.f32 %v1721, %v1764
        %v1768 = vmul.f32 %v1722, %v1764
        %v1769 = vmul.f32 %v1723, %v1764
        %v1770 = vmul.f32 %v1724, %v1764
        %v1771 = vmul.f32 %v1725, %v1764
        %v1772 = vadd.f32 %v1756, %v1765
        %v1773 = vadd.f32 %v1757, %v1766
        %v1774 = vadd.f32 %v1758, %v1767
        %v1775 = vadd.f32 %v1759, %v1768
        %v1776 = vadd.f32 %v1760, %v1769
        %v1777 = vadd.f32 %v1761, %v1770
        %v1778 = vadd.f32 %v1762, %v1771
        %v1779 = vld [vmem:[%s922 + $0x6] sm:$0x1]
        %v1780 = vperm.slane %v1779, 0
        %v1781 = vmul.f32 %v1720, %v1780
        %v1782 = vmul.f32 %v1721, %v1780
        %v1783 = vmul.f32 %v1722, %v1780
        %v1784 = vmul.f32 %v1723, %v1780
        %v1785 = vmul.f32 %v1724, %v1780
        %v1786 = vmul.f32 %v1725, %v1780
        %v1787 = vmul.f32 %v1726, %v1780
        %v1788 = vadd.f32 %v1772, %v1781
        %v1789 = vadd.f32 %v1773, %v1782
        %v1790 = vadd.f32 %v1774, %v1783
        %v1791 = vadd.f32 %v1775, %v1784
        %v1792 = vadd.f32 %v1776, %v1785
        %v1793 = vadd.f32 %v1777, %v1786
        %v1794 = vadd.f32 %v1778, %v1787
        %v1795 = vld [vmem:[%s939 + $0x6] sm:$0x1]
        %v1796 = vperm.slane %v1795, 0
        %v1797 = vmul.f32 %v1721, %v1796
        %v1798 = vmul.f32 %v1722, %v1796
        %v1799 = vmul.f32 %v1723, %v1796
        %v1800 = vmul.f32 %v1724, %v1796
        %v1801 = vmul.f32 %v1725, %v1796
        %v1802 = vmul.f32 %v1726, %v1796
        %v1803 = vmul.f32 %v1727, %v1796
        %v1804 = vadd.f32 %v1788, %v1797
        %v1805 = vadd.f32 %v1789, %v1798
        %v1806 = vadd.f32 %v1790, %v1799
        %v1807 = vadd.f32 %v1791, %v1800
        %v1808 = vadd.f32 %v1792, %v1801
        %v1809 = vadd.f32 %v1793, %v1802
        %v1810 = vadd.f32 %v1794, %v1803
        %v1811 = vld [vmem:[%s956 + $0x6] sm:$0x1]
        %v1812 = vperm.slane %v1811, 0
        %v1813 = vmul.f32 %v1722, %v1812
        %v1814 = vmul.f32 %v1723, %v1812
        %v1815 = vmul.f32 %v1724, %v1812
        %v1816 = vmul.f32 %v1725, %v1812
        %v1817 = vmul.f32 %v1726, %v1812
        %v1818 = vmul.f32 %v1727, %v1812
        %v1819 = vmul.f32 %v1728, %v1812
        %v1820 = vadd.f32 %v1804, %v1813
        %v1821 = vadd.f32 %v1805, %v1814
        %v1822 = vadd.f32 %v1806, %v1815
        %v1823 = vadd.f32 %v1807, %v1816
        %v1824 = vadd.f32 %v1808, %v1817
        %v1825 = vadd.f32 %v1809, %v1818
        %v1826 = vadd.f32 %v1810, %v1819
        %v1827 = vld [vmem:[%s973 + $0x6] sm:$0x1]
        %v1828 = vperm.slane %v1827, 0
        %v1829 = vmul.f32 %v1723, %v1828
        %v1830 = vmul.f32 %v1724, %v1828
        %v1831 = vmul.f32 %v1725, %v1828
        %v1832 = vmul.f32 %v1726, %v1828
        %v1833 = vmul.f32 %v1727, %v1828
        %v1834 = vmul.f32 %v1728, %v1828
        %v1835 = vmul.f32 %v1729, %v1828
        %v1836 = vadd.f32 %v1820, %v1829
        %v1837 = vadd.f32 %v1821, %v1830
        %v1838 = vadd.f32 %v1822, %v1831
        %v1839 = vadd.f32 %v1823, %v1832
        %v1840 = vadd.f32 %v1824, %v1833
        %v1841 = vadd.f32 %v1825, %v1834
        %v1842 = vadd.f32 %v1826, %v1835
        %v1843 = vld [vmem:[%s990 + $0x6] sm:$0x1]
        %v1844 = vperm.slane %v1843, 0
        %v1845 = vmul.f32 %v1724, %v1844
        %v1846 = vmul.f32 %v1725, %v1844
        %v1847 = vmul.f32 %v1726, %v1844
        %v1848 = vmul.f32 %v1727, %v1844
        %v1849 = vmul.f32 %v1728, %v1844
        %v1850 = vmul.f32 %v1729, %v1844
        %v1851 = vmul.f32 %v1730, %v1844
        %v1852 = vadd.f32 %v1836, %v1845
        %v1853 = vadd.f32 %v1837, %v1846
        %v1854 = vadd.f32 %v1838, %v1847
        %v1855 = vadd.f32 %v1839, %v1848
        %v1856 = vadd.f32 %v1840, %v1849
        %v1857 = vadd.f32 %v1841, %v1850
        %v1858 = vadd.f32 %v1842, %v1851
        %v1859 = vld [vmem:[#allocation2 + $0x7] sm:$0x7f]
        %v1860 = vld [vmem:[#allocation2 + $0x17] sm:$0x7f]
        %v1861 = vld [vmem:[#allocation2 + $0x27] sm:$0x7f]
        %v1862 = vld [vmem:[#allocation2 + $0x37] sm:$0x7f]
        %v1863 = vld [vmem:[#allocation2 + $0x47] sm:$0x7f]
        %v1864 = vld [vmem:[#allocation2 + $0x57] sm:$0x7f]
        %v1865 = vld [vmem:[#allocation2 + $0x67] sm:$0x7f]
        %v1866 = vld [vmem:[#allocation2 + $0x77] sm:$0x7f]
        %v1867 = vld [vmem:[#allocation2 + $0x87] sm:$0x7f]
        %v1868 = vld [vmem:[#allocation2 + $0x97] sm:$0x7f]
        %v1869 = vld [vmem:[#allocation2 + $0xa7] sm:$0x7f]
        %v1870 = vld [vmem:[#allocation2 + $0xb7] sm:$0x7f]
        %v1871 = vld [vmem:[#allocation2 + $0xc7] sm:$0x7f]
        %v1872 = vld [vmem:[#allocation2 + $0xd7] sm:$0x7f]
        %v1873 = vld [vmem:[%s2 + $0x7] sm:$0x1]
        %v1874 = vperm.slane %v1873, 0
        %v1875 = vmul.f32 %v1859, %v1874
        %v1876 = vmul.f32 %v1860, %v1874
        %v1877 = vmul.f32 %v1861, %v1874
        %v1878 = vmul.f32 %v1862, %v1874
        %v1879 = vmul.f32 %v1863, %v1874
        %v1880 = vmul.f32 %v1864, %v1874
        %v1881 = vmul.f32 %v1865, %v1874
        %v1882 = vadd.f32 %v1852, %v1875
        %v1883 = vadd.f32 %v1853, %v1876
        %v1884 = vadd.f32 %v1854, %v1877
        %v1885 = vadd.f32 %v1855, %v1878
        %v1886 = vadd.f32 %v1856, %v1879
        %v1887 = vadd.f32 %v1857, %v1880
        %v1888 = vadd.f32 %v1858, %v1881
        %v1889 = vld [vmem:[%s888 + $0x7] sm:$0x1]
        %v1890 = vperm.slane %v1889, 0
        %v1891 = vmul.f32 %v1860, %v1890
        %v1892 = vmul.f32 %v1861, %v1890
        %v1893 = vmul.f32 %v1862, %v1890
        %v1894 = vmul.f32 %v1863, %v1890
        %v1895 = vmul.f32 %v1864, %v1890
        %v1896 = vmul.f32 %v1865, %v1890
        %v1897 = vmul.f32 %v1866, %v1890
        %v1898 = vadd.f32 %v1882, %v1891
        %v1899 = vadd.f32 %v1883, %v1892
        %v1900 = vadd.f32 %v1884, %v1893
        %v1901 = vadd.f32 %v1885, %v1894
        %v1902 = vadd.f32 %v1886, %v1895
        %v1903 = vadd.f32 %v1887, %v1896
        %v1904 = vadd.f32 %v1888, %v1897
        %v1905 = vld [vmem:[%s905 + $0x7] sm:$0x1]
        %v1906 = vperm.slane %v1905, 0
        %v1907 = vmul.f32 %v1861, %v1906
        %v1908 = vmul.f32 %v1862, %v1906
        %v1909 = vmul.f32 %v1863, %v1906
        %v1910 = vmul.f32 %v1864, %v1906
        %v1911 = vmul.f32 %v1865, %v1906
        %v1912 = vmul.f32 %v1866, %v1906
        %v1913 = vmul.f32 %v1867, %v1906
        %v1914 = vadd.f32 %v1898, %v1907
        %v1915 = vadd.f32 %v1899, %v1908
        %v1916 = vadd.f32 %v1900, %v1909
        %v1917 = vadd.f32 %v1901, %v1910
        %v1918 = vadd.f32 %v1902, %v1911
        %v1919 = vadd.f32 %v1903, %v1912
        %v1920 = vadd.f32 %v1904, %v1913
        %v1921 = vld [vmem:[%s922 + $0x7] sm:$0x1]
        %v1922 = vperm.slane %v1921, 0
        %v1923 = vmul.f32 %v1862, %v1922
        %v1924 = vmul.f32 %v1863, %v1922
        %v1925 = vmul.f32 %v1864, %v1922
        %v1926 = vmul.f32 %v1865, %v1922
        %v1927 = vmul.f32 %v1866, %v1922
        %v1928 = vmul.f32 %v1867, %v1922
        %v1929 = vmul.f32 %v1868, %v1922
        %v1930 = vadd.f32 %v1914, %v1923
        %v1931 = vadd.f32 %v1915, %v1924
        %v1932 = vadd.f32 %v1916, %v1925
        %v1933 = vadd.f32 %v1917, %v1926
        %v1934 = vadd.f32 %v1918, %v1927
        %v1935 = vadd.f32 %v1919, %v1928
        %v1936 = vadd.f32 %v1920, %v1929
        %v1937 = vld [vmem:[%s939 + $0x7] sm:$0x1]
        %v1938 = vperm.slane %v1937, 0
        %v1939 = vmul.f32 %v1863, %v1938
        %v1940 = vmul.f32 %v1864, %v1938
        %v1941 = vmul.f32 %v1865, %v1938
        %v1942 = vmul.f32 %v1866, %v1938
        %v1943 = vmul.f32 %v1867, %v1938
        %v1944 = vmul.f32 %v1868, %v1938
        %v1945 = vmul.f32 %v1869, %v1938
        %v1946 = vadd.f32 %v1930, %v1939
        %v1947 = vadd.f32 %v1931, %v1940
        %v1948 = vadd.f32 %v1932, %v1941
        %v1949 = vadd.f32 %v1933, %v1942
        %v1950 = vadd.f32 %v1934, %v1943
        %v1951 = vadd.f32 %v1935, %v1944
        %v1952 = vadd.f32 %v1936, %v1945
        %v1953 = vld [vmem:[%s956 + $0x7] sm:$0x1]
        %v1954 = vperm.slane %v1953, 0
        %v1955 = vmul.f32 %v1864, %v1954
        %v1956 = vmul.f32 %v1865, %v1954
        %v1957 = vmul.f32 %v1866, %v1954
        %v1958 = vmul.f32 %v1867, %v1954
        %v1959 = vmul.f32 %v1868, %v1954
        %v1960 = vmul.f32 %v1869, %v1954
        %v1961 = vmul.f32 %v1870, %v1954
        %v1962 = vadd.f32 %v1946, %v1955
        %v1963 = vadd.f32 %v1947, %v1956
        %v1964 = vadd.f32 %v1948, %v1957
        %v1965 = vadd.f32 %v1949, %v1958
        %v1966 = vadd.f32 %v1950, %v1959
        %v1967 = vadd.f32 %v1951, %v1960
        %v1968 = vadd.f32 %v1952, %v1961
        %v1969 = vld [vmem:[%s973 + $0x7] sm:$0x1]
        %v1970 = vperm.slane %v1969, 0
        %v1971 = vmul.f32 %v1865, %v1970
        %v1972 = vmul.f32 %v1866, %v1970
        %v1973 = vmul.f32 %v1867, %v1970
        %v1974 = vmul.f32 %v1868, %v1970
        %v1975 = vmul.f32 %v1869, %v1970
        %v1976 = vmul.f32 %v1870, %v1970
        %v1977 = vmul.f32 %v1871, %v1970
        %v1978 = vadd.f32 %v1962, %v1971
        %v1979 = vadd.f32 %v1963, %v1972
        %v1980 = vadd.f32 %v1964, %v1973
        %v1981 = vadd.f32 %v1965, %v1974
        %v1982 = vadd.f32 %v1966, %v1975
        %v1983 = vadd.f32 %v1967, %v1976
        %v1984 = vadd.f32 %v1968, %v1977
        %v1985 = vld [vmem:[%s990 + $0x7] sm:$0x1]
        %v1986 = vperm.slane %v1985, 0
        %v1987 = vmul.f32 %v1866, %v1986
        %v1988 = vmul.f32 %v1867, %v1986
        %v1989 = vmul.f32 %v1868, %v1986
        %v1990 = vmul.f32 %v1869, %v1986
        %v1991 = vmul.f32 %v1870, %v1986
        %v1992 = vmul.f32 %v1871, %v1986
        %v1993 = vmul.f32 %v1872, %v1986
        %v1994 = vadd.f32 %v1978, %v1987
        %v1995 = vadd.f32 %v1979, %v1988
        %v1996 = vadd.f32 %v1980, %v1989
        %v1997 = vadd.f32 %v1981, %v1990
        %v1998 = vadd.f32 %v1982, %v1991
        %v1999 = vadd.f32 %v1983, %v1992
        %v2000 = vadd.f32 %v1984, %v1993
        %v2001 = vld [vmem:[%s3] sm:$0x1]
        %v2003 = vperm.slane %v2001, 0
        %v2005 = vadd.f32 %v1994, %v2003
        %v2006 = vadd.f32 %v1995, %v2003
        %v2007 = vadd.f32 %v1996, %v2003
        %v2008 = vadd.f32 %v1997, %v2003
        %v2009 = vadd.f32 %v1998, %v2003
        %v2010 = vadd.f32 %v1999, %v2003
        %v2011 = vadd.f32 %v2000, %v2003
        %vm2012 = vcmask 1046528
        %v2013 = vsel %vm2012, %v2005, 0.0
        %2014 = vadd.xlane.f32.xlu0 %v2013
        %v2015 = vpop.xlane.xlu0 %2014
        %v2016 = vsel %vm2012, %v2006, 0.0
        %2017 = vadd.xlane.f32.xlu0 %v2016
        %v2018 = vpop.xlane.xlu0 %2017
        %v2019 = vsel %vm2012, %v2007, 0.0
        %2020 = vadd.xlane.f32.xlu0 %v2019
        %v2021 = vpop.xlane.xlu0 %2020
        %v2022 = vsel %vm2012, %v2008, 0.0
        %2023 = vadd.xlane.f32.xlu0 %v2022
        %v2024 = vpop.xlane.xlu0 %2023
        %v2025 = vsel %vm2012, %v2009, 0.0
        %2026 = vadd.xlane.f32.xlu0 %v2025
        %v2027 = vpop.xlane.xlu0 %2026
        %v2028 = vsel %vm2012, %v2010, 0.0
        %2029 = vadd.xlane.f32.xlu0 %v2028
        %v2030 = vpop.xlane.xlu0 %2029
        %v2031 = vsel %vm2012, %v2011, 0.0
        %2032 = vadd.xlane.f32.xlu0 %v2031
        %v2033 = vpop.xlane.xlu0 %2032
        %v2034 = vrcp.pop 128.0
        %v2035 = vmul.f32 128.0, %v2034
        %v2036 = vsub.f32 1.0, %v2035
        %v2037 = vmul.f32 %v2034, %v2036
        %v2038 = vadd.f32 %v2034, %v2037
        %vm2039 = vweird.f32 %v2034
        %v2040 = vsel %vm2039, %v2034, %v2038
        %v2041 = vmul.f32 %v2015, %v2040
        %v2042 = vmul.f32 %v2018, %v2040
        %v2043 = vmul.f32 %v2021, %v2040
        %v2044 = vmul.f32 %v2024, %v2040
        %v2045 = vmul.f32 %v2027, %v2040
        %v2046 = vmul.f32 %v2030, %v2040
        %v2047 = vmul.f32 %v2033, %v2040
        %v2048 = vsub.f32 %v2005, %v2041
        %v2049 = vsub.f32 %v2006, %v2042
        %v2050 = vsub.f32 %v2007, %v2043
        %v2051 = vsub.f32 %v2008, %v2044
        %v2052 = vsub.f32 %v2009, %v2045
        %v2053 = vsub.f32 %v2010, %v2046
        %v2054 = vsub.f32 %v2011, %v2047
        %v2055 = vand.u32 2147483647, %v2048
        %v2056 = vand.u32 2147483647, %v2049
        %v2057 = vand.u32 2147483647, %v2050
        %v2058 = vand.u32 2147483647, %v2051
        %v2059 = vand.u32 2147483647, %v2052
        %v2060 = vand.u32 2147483647, %v2053
        %v2061 = vand.u32 2147483647, %v2054
        %v2062 = vadd.f32 %v2055, 3e-05
        %v2063 = vadd.f32 %v2056, 3e-05
        %v2064 = vadd.f32 %v2057, 3e-05
        %v2065 = vadd.f32 %v2058, 3e-05
        %v2066 = vadd.f32 %v2059, 3e-05
        %v2067 = vadd.f32 %v2060, 3e-05
        %v2068 = vadd.f32 %v2061, 3e-05
        %2069 = vrot.lane.b32.xlu0 %v2005, 1
        %v2070 = vpop.permute.xlu0 %2069
        %2071 = vrot.lane.b32.xlu0 %v2006, 1
        %v2072 = vpop.permute.xlu0 %2071
        %2073 = vrot.lane.b32.xlu0 %v2007, 1
        %v2074 = vpop.permute.xlu0 %2073
        %2075 = vrot.lane.b32.xlu0 %v2008, 1
        %v2076 = vpop.permute.xlu0 %2075
        %2077 = vrot.lane.b32.xlu0 %v2009, 1
        %v2078 = vpop.permute.xlu0 %2077
        %2079 = vrot.lane.b32.xlu0 %v2010, 1
        %v2080 = vpop.permute.xlu0 %2079
        %2081 = vrot.lane.b32.xlu0 %v2011, 1
        %v2082 = vpop.permute.xlu0 %2081
        %v2083 = vsub.f32 %v2070, %v2041
        %v2084 = vsub.f32 %v2072, %v2042
        %v2085 = vsub.f32 %v2074, %v2043
        %v2086 = vsub.f32 %v2076, %v2044
        %v2087 = vsub.f32 %v2078, %v2045
        %v2088 = vsub.f32 %v2080, %v2046
        %v2089 = vsub.f32 %v2082, %v2047
        %v2090 = vand.u32 2147483647, %v2083
        %v2091 = vand.u32 2147483647, %v2084
        %v2092 = vand.u32 2147483647, %v2085
        %v2093 = vand.u32 2147483647, %v2086
        %v2094 = vand.u32 2147483647, %v2087
        %v2095 = vand.u32 2147483647, %v2088
        %v2096 = vand.u32 2147483647, %v2089
        %v2097 = vadd.f32 %v2062, %v2090
        %v2098 = vadd.f32 %v2063, %v2091
        %v2099 = vadd.f32 %v2064, %v2092
        %v2100 = vadd.f32 %v2065, %v2093
        %v2101 = vadd.f32 %v2066, %v2094
        %v2102 = vadd.f32 %v2067, %v2095
        %v2103 = vadd.f32 %v2068, %v2096
        %2104 = vrot.lane.b32.xlu0 %v2005, 127
        %v2105 = vpop.permute.xlu0 %2104
        %2106 = vrot.lane.b32.xlu0 %v2006, 127
        %v2107 = vpop.permute.xlu0 %2106
        %2108 = vrot.lane.b32.xlu0 %v2007, 127
        %v2109 = vpop.permute.xlu0 %2108
        %2110 = vrot.lane.b32.xlu0 %v2008, 127
        %v2111 = vpop.permute.xlu0 %2110
        %2112 = vrot.lane.b32.xlu0 %v2009, 127
        %v2113 = vpop.permute.xlu0 %2112
        %2114 = vrot.lane.b32.xlu0 %v2010, 127
        %v2115 = vpop.permute.xlu0 %2114
        %2116 = vrot.lane.b32.xlu0 %v2011, 127
        %v2117 = vpop.permute.xlu0 %2116
        %v2118 = vsub.f32 %v2105, %v2041
        %v2119 = vsub.f32 %v2107, %v2042
        %v2120 = vsub.f32 %v2109, %v2043
        %v2121 = vsub.f32 %v2111, %v2044
        %v2122 = vsub.f32 %v2113, %v2045
        %v2123 = vsub.f32 %v2115, %v2046
        %v2124 = vsub.f32 %v2117, %v2047
        %v2125 = vand.u32 2147483647, %v2118
        %v2126 = vand.u32 2147483647, %v2119
        %v2127 = vand.u32 2147483647, %v2120
        %v2128 = vand.u32 2147483647, %v2121
        %v2129 = vand.u32 2147483647, %v2122
        %v2130 = vand.u32 2147483647, %v2123
        %v2131 = vand.u32 2147483647, %v2124
        %v2132 = vadd.f32 %v2097, %v2125
        %v2133 = vadd.f32 %v2098, %v2126
        %v2134 = vadd.f32 %v2099, %v2127
        %v2135 = vadd.f32 %v2100, %v2128
        %v2136 = vadd.f32 %v2101, %v2129
        %v2137 = vadd.f32 %v2102, %v2130
        %v2138 = vadd.f32 %v2103, %v2131
        %v2139 = vrcp.pop %v2132
        %v2140 = vrcp.pop %v2133
        %v2141 = vrcp.pop %v2134
        %v2142 = vrcp.pop %v2135
        %v2143 = vrcp.pop %v2136
        %v2144 = vrcp.pop %v2137
        %v2145 = vrcp.pop %v2138
        %v2146 = vmul.f32 %v2005, %v2139
        %v2147 = vmul.f32 %v2006, %v2140
        %v2148 = vmul.f32 %v2007, %v2141
        %v2149 = vmul.f32 %v2008, %v2142
        %v2150 = vmul.f32 %v2009, %v2143
        %v2151 = vmul.f32 %v2010, %v2144
        %v2152 = vmul.f32 %v2011, %v2145
        %v2160 = vrot.slane %v2146, 1
        %v2161 = vrot.slane %v2146, 2
        %v2162 = vrot.slane %v2146, 3
        %v2163 = vrot.slane %v2146, 4
        %v2164 = vrot.slane %v2146, 5
        %v2165 = vrot.slane %v2146, 6
        %v2166 = vrot.slane %v2147, 1
        %v2167 = vrot.slane %v2147, 2
        %v2168 = vrot.slane %v2147, 3
        %v2169 = vrot.slane %v2147, 4
        %v2170 = vrot.slane %v2147, 5
        %v2171 = vrot.slane %v2147, 6
        %v2172 = vrot.slane %v2148, 1
        %v2173 = vrot.slane %v2148, 2
        %v2174 = vrot.slane %v2148, 3
        %v2175 = vrot.slane %v2148, 4
        %v2176 = vrot.slane %v2148, 5
        %v2177 = vrot.slane %v2148, 6
        %v2178 = vrot.slane %v2149, 1
        %v2179 = vrot.slane %v2149, 2
        %v2180 = vrot.slane %v2149, 3
        %v2181 = vrot.slane %v2149, 4
        %v2182 = vrot.slane %v2149, 5
        %v2183 = vrot.slane %v2149, 6
        %v2184 = vrot.slane %v2150, 1
        %v2185 = vrot.slane %v2150, 2
        %v2186 = vrot.slane %v2150, 3
        %v2187 = vrot.slane %v2150, 4
        %v2188 = vrot.slane %v2150, 5
        %v2189 = vrot.slane %v2150, 6
        %v2190 = vrot.slane %v2151, 1
        %v2191 = vrot.slane %v2151, 2
        %v2192 = vrot.slane %v2151, 3
        %v2193 = vrot.slane %v2151, 4
        %v2194 = vrot.slane %v2151, 5
        %v2195 = vrot.slane %v2151, 6
        %v2196 = vrot.slane %v2152, 1
        %v2197 = vrot.slane %v2152, 2
        %v2198 = vrot.slane %v2152, 3
        %v2199 = vrot.slane %v2152, 4
        %v2200 = vrot.slane %v2152, 5
        %v2201 = vrot.slane %v2152, 6
        %v2244 = vld [vmem:[%s4] sm:$0xff]
        %v2245 = vld [vmem:[%s4 + $0x8] sm:$0xff]
        %v2246 = vld [vmem:[%s4 + $0x10] sm:$0xff]
        %v2247 = vld [vmem:[%s4 + $0x18] sm:$0xff]
        %v2248 = vld [vmem:[%s4 + $0x20] sm:$0xff]
        %v2249 = vld [vmem:[%s4 + $0x28] sm:$0xff]
        %v2250 = vld [vmem:[%s4 + $0x30] sm:$0xff]
        %v2251 = vld [vmem:[%s4 + $0x38] sm:$0xff]
        %v2252 = vld [vmem:[%s4 + $0x40] sm:$0xff]
        %v2253 = vld [vmem:[%s4 + $0x48] sm:$0xff]
        %v2254 = vld [vmem:[%s4 + $0x50] sm:$0xff]
        %v2255 = vld [vmem:[%s4 + $0x58] sm:$0xff]
        %v2256 = vld [vmem:[%s4 + $0x60] sm:$0xff]
        %v2257 = vld [vmem:[%s4 + $0x68] sm:$0xff]
        %v2258 = vld [vmem:[%s4 + $0x70] sm:$0xff]
        %v2259 = vld [vmem:[%s4 + $0x78] sm:$0xff]
        %v2260 = vmul.f32 %v2146, %v2146
        %v2261 = vmul.f32 %v2160, %v2160
        %v2262 = vmul.f32 %v2161, %v2161
        %v2263 = vmul.f32 %v2162, %v2162
        %v2264 = vmul.f32 %v2163, %v2163
        %v2265 = vmul.f32 %v2164, %v2164
        %v2266 = vmul.f32 %v2165, %v2165
        %v2267 = vmul.f32 %v2147, %v2147
        %v2268 = vmul.f32 %v2166, %v2166
        %v2269 = vmul.f32 %v2167, %v2167
        %v2270 = vmul.f32 %v2168, %v2168
        %v2271 = vmul.f32 %v2169, %v2169
        %v2272 = vmul.f32 %v2170, %v2170
        %v2273 = vmul.f32 %v2171, %v2171
        %v2274 = vmul.f32 %v2148, %v2148
        %v2275 = vmul.f32 %v2172, %v2172
        %v2276 = vmul.f32 %v2173, %v2173
        %v2277 = vmul.f32 %v2174, %v2174
        %v2278 = vmul.f32 %v2175, %v2175
        %v2279 = vmul.f32 %v2176, %v2176
        %v2280 = vmul.f32 %v2177, %v2177
        %v2281 = vmul.f32 %v2149, %v2149
        %v2282 = vmul.f32 %v2178, %v2178
        %v2283 = vmul.f32 %v2179, %v2179
        %v2284 = vmul.f32 %v2180, %v2180
        %v2285 = vmul.f32 %v2181, %v2181
        %v2286 = vmul.f32 %v2182, %v2182
        %v2287 = vmul.f32 %v2183, %v2183
        %v2288 = vmul.f32 %v2150, %v2150
        %v2289 = vmul.f32 %v2184, %v2184
        %v2290 = vmul.f32 %v2185, %v2185
        %v2291 = vmul.f32 %v2186, %v2186
        %v2292 = vmul.f32 %v2187, %v2187
        %v2293 = vmul.f32 %v2188, %v2188
        %v2294 = vmul.f32 %v2189, %v2189
        %v2295 = vmul.f32 %v2151, %v2151
        %v2296 = vmul.f32 %v2190, %v2190
        %v2297 = vmul.f32 %v2191, %v2191
        %v2298 = vmul.f32 %v2192, %v2192
        %v2299 = vmul.f32 %v2193, %v2193
        %v2300 = vmul.f32 %v2194, %v2194
        %v2301 = vmul.f32 %v2195, %v2195
        %v2302 = vmul.f32 %v2152, %v2152
        %v2303 = vmul.f32 %v2196, %v2196
        %v2304 = vmul.f32 %v2197, %v2197
        %v2305 = vmul.f32 %v2198, %v2198
        %v2306 = vmul.f32 %v2199, %v2199
        %v2307 = vmul.f32 %v2200, %v2200
        %v2308 = vmul.f32 %v2201, %v2201
        %2358 = vst [vmem:[#allocation1] ss:$9 sm:$0xff] %v2260
        %s2359 = scalar_lea.vmem [#allocation1], 1
        %2360 = vst [vmem:[%s2359] ss:$9 sm:$0xff] %v2261
        %s2361 = scalar_lea.vmem [#allocation1], 2
        %2362 = vst [vmem:[%s2361] ss:$9 sm:$0xff] %v2262
        %s2363 = scalar_lea.vmem [#allocation1], 3
        %2364 = vst [vmem:[%s2363] ss:$9 sm:$0xff] %v2263
        %s2365 = scalar_lea.vmem [#allocation1], 4
        %2366 = vst [vmem:[%s2365] ss:$9 sm:$0xff] %v2264
        %s2367 = scalar_lea.vmem [#allocation1], 5
        %2368 = vst [vmem:[%s2367] ss:$9 sm:$0xff] %v2265
        %s2369 = scalar_lea.vmem [#allocation1], 6
        %2370 = vst [vmem:[%s2369] ss:$9 sm:$0xff] %v2266
        %s2371 = scalar_lea.vmem [#allocation1], 7
        %2372 = vst [vmem:[%s2371] ss:$9 sm:$0xff] %v2267
        %v2373 = vld [vmem:[#allocation1] sm:$0xff]
        %2374 = vst [vmem:[#allocation1] ss:$9 sm:$0xff] %v2268
        %2375 = vst [vmem:[%s2359] ss:$9 sm:$0xff] %v2269
        %2376 = vst [vmem:[%s2361] ss:$9 sm:$0xff] %v2270
        %2377 = vst [vmem:[%s2363] ss:$9 sm:$0xff] %v2271
        %2378 = vst [vmem:[%s2365] ss:$9 sm:$0xff] %v2272
        %2379 = vst [vmem:[%s2367] ss:$9 sm:$0xff] %v2273
        %2380 = vst [vmem:[%s2369] ss:$9 sm:$0xff] %v2274
        %2381 = vst [vmem:[%s2371] ss:$9 sm:$0xff] %v2275
        %v2382 = vld [vmem:[#allocation1] sm:$0xff]
        %2383 = vst [vmem:[#allocation1] ss:$9 sm:$0xff] %v2276
        %2384 = vst [vmem:[%s2359] ss:$9 sm:$0xff] %v2277
        %2385 = vst [vmem:[%s2361] ss:$9 sm:$0xff] %v2278
        %2386 = vst [vmem:[%s2363] ss:$9 sm:$0xff] %v2279
        %2387 = vst [vmem:[%s2365] ss:$9 sm:$0xff] %v2280
        %2388 = vst [vmem:[%s2367] ss:$9 sm:$0xff] %v2281
        %2389 = vst [vmem:[%s2369] ss:$9 sm:$0xff] %v2282
        %2390 = vst [vmem:[%s2371] ss:$9 sm:$0xff] %v2283
        %v2391 = vld [vmem:[#allocation1] sm:$0xff]
        %2392 = vst [vmem:[#allocation1] ss:$9 sm:$0xff] %v2284
        %2393 = vst [vmem:[%s2359] ss:$9 sm:$0xff] %v2285
        %2394 = vst [vmem:[%s2361] ss:$9 sm:$0xff] %v2286
        %2395 = vst [vmem:[%s2363] ss:$9 sm:$0xff] %v2287
        %2396 = vst [vmem:[%s2365] ss:$9 sm:$0xff] %v2288
        %2397 = vst [vmem:[%s2367] ss:$9 sm:$0xff] %v2289
        %2398 = vst [vmem:[%s2369] ss:$9 sm:$0xff] %v2290
        %2399 = vst [vmem:[%s2371] ss:$9 sm:$0xff] %v2291
        %v2400 = vld [vmem:[#allocation1] sm:$0xff]
        %2401 = vst [vmem:[#allocation1] ss:$9 sm:$0xff] %v2292
        %2402 = vst [vmem:[%s2359] ss:$9 sm:$0xff] %v2293
        %2403 = vst [vmem:[%s2361] ss:$9 sm:$0xff] %v2294
        %2404 = vst [vmem:[%s2363] ss:$9 sm:$0xff] %v2295
        %2405 = vst [vmem:[%s2365] ss:$9 sm:$0xff] %v2296
        %2406 = vst [vmem:[%s2367] ss:$9 sm:$0xff] %v2297
        %2407 = vst [vmem:[%s2369] ss:$9 sm:$0xff] %v2298
        %2408 = vst [vmem:[%s2371] ss:$9 sm:$0xff] %v2299
        %v2409 = vld [vmem:[#allocation1] sm:$0xff]
        %2410 = vst [vmem:[#allocation1] ss:$9 sm:$0xff] %v2300
        %2411 = vst [vmem:[%s2359] ss:$9 sm:$0xff] %v2301
        %2412 = vst [vmem:[%s2361] ss:$9 sm:$0xff] %v2302
        %2413 = vst [vmem:[%s2363] ss:$9 sm:$0xff] %v2303
        %2414 = vst [vmem:[%s2365] ss:$9 sm:$0xff] %v2304
        %2415 = vst [vmem:[%s2367] ss:$9 sm:$0xff] %v2305
        %2416 = vst [vmem:[%s2369] ss:$9 sm:$0xff] %v2306
        %2417 = vst [vmem:[%s2371] ss:$9 sm:$0xff] %v2307
        %v2418 = vld [vmem:[#allocation1] sm:$0xff]
        %2419 = vst [vmem:[#allocation1] ss:$9 sm:$0xff] %v2308
        %v2420 = vld [vmem:[#allocation1] sm:$0xff]
        %2428 = vmatpush.msra.mxu0 %v2259
        %2429 = vmatpush.msra.mxu0 %v2258
        %2430 = vmatpush.msra.mxu0 %v2257
        %2431 = vmatpush.msra.mxu0 %v2256
        %2432 = vmatpush.msra.mxu0 %v2255
        %2433 = vmatpush.msra.mxu0 %v2254
        %2434 = vmatpush.msra.mxu0 %v2253
        %2435 = vmatpush.msra.mxu0 %v2252
        %2436 = vmatpush.msra.mxu0 %v2251
        %2437 = vmatpush.msra.mxu0 %v2250
        %2438 = vmatpush.msra.mxu0 %v2249
        %2439 = vmatpush.msra.mxu0 %v2248
        %2440 = vmatpush.msra.mxu0 %v2247
        %2441 = vmatpush.msra.mxu0 %v2246
        %2442 = vmatpush.msra.mxu0 %v2245
        %2443 = vmatpush.msra.mxu0 %v2244
        %2444 = vmatmul.f32.gmra.mxu0 %v2373
        %v2445 = vpop.f32.mrf.mxu0
        %v2446 = vadd.f32 0.0, %v2445
        %2447 = vmatmul.f32.gmra.mxu0 %v2382
        %v2448 = vpop.f32.mrf.mxu0
        %v2449 = vadd.f32 0.0, %v2448
        %2450 = vmatmul.f32.gmra.mxu0 %v2391
        %v2451 = vpop.f32.mrf.mxu0
        %v2452 = vadd.f32 0.0, %v2451
        %2453 = vmatmul.f32.gmra.mxu0 %v2400
        %v2454 = vpop.f32.mrf.mxu0
        %v2455 = vadd.f32 0.0, %v2454
        %2456 = vmatmul.f32.gmra.mxu0 %v2409
        %v2457 = vpop.f32.mrf.mxu0
        %v2458 = vadd.f32 0.0, %v2457
        %2459 = vmatmul.f32.gmra.mxu0 %v2418
        %v2460 = vpop.f32.mrf.mxu0
        %v2461 = vadd.f32 0.0, %v2460
        %2462 = vmatmul.f32.gmra.mxu0 %v2420
        %v2463 = vpop.f32.mrf.mxu0
        %v2464 = vadd.f32 0.0, %v2463
        %2465 = vdwg.mxu0
        %v2466 = vadd.f32 %v2446, 1e-12
        %v2467 = vadd.f32 %v2449, 1e-12
        %v2468 = vadd.f32 %v2452, 1e-12
        %v2469 = vadd.f32 %v2455, 1e-12
        %v2470 = vadd.f32 %v2458, 1e-12
        %v2471 = vadd.f32 %v2461, 1e-12
        %v2472 = vadd.f32 %v2464, 1e-12
        %v2473 = vrsqrt.pop %v2466
        %v2474 = vmul.f32 %v2473, %v2466
        %v2475 = vmul.f32 %v2474, %v2473
        %v2476 = vmul.f32 0.5, %v2475
        %v2477 = vsub.f32 1.5, %v2476
        %v2478 = vmul.f32 %v2473, %v2477
        %vm2479 = vweird.f32 %v2466
        %vm2480 = vweird.f32 %v2473
        %vm2481 = vmor %vm2479, %vm2480
        %v2482 = vsel %vm2481, %v2473, %v2478
        %v2483 = vrsqrt.pop %v2467
        %v2484 = vmul.f32 %v2483, %v2467
        %v2485 = vmul.f32 %v2484, %v2483
        %v2486 = vmul.f32 0.5, %v2485
        %v2487 = vsub.f32 1.5, %v2486
        %v2488 = vmul.f32 %v2483, %v2487
        %vm2489 = vweird.f32 %v2467
        %vm2490 = vweird.f32 %v2483
        %vm2491 = vmor %vm2489, %vm2490
        %v2492 = vsel %vm2491, %v2483, %v2488
        %v2493 = vrsqrt.pop %v2468
        %v2494 = vmul.f32 %v2493, %v2468
        %v2495 = vmul.f32 %v2494, %v2493
        %v2496 = vmul.f32 0.5, %v2495
        %v2497 = vsub.f32 1.5, %v2496
        %v2498 = vmul.f32 %v2493, %v2497
        %vm2499 = vweird.f32 %v2468
        %vm2500 = vweird.f32 %v2493
        %vm2501 = vmor %vm2499, %vm2500
        %v2502 = vsel %vm2501, %v2493, %v2498
        %v2503 = vrsqrt.pop %v2469
        %v2504 = vmul.f32 %v2503, %v2469
        %v2505 = vmul.f32 %v2504, %v2503
        %v2506 = vmul.f32 0.5, %v2505
        %v2507 = vsub.f32 1.5, %v2506
        %v2508 = vmul.f32 %v2503, %v2507
        %vm2509 = vweird.f32 %v2469
        %vm2510 = vweird.f32 %v2503
        %vm2511 = vmor %vm2509, %vm2510
        %v2512 = vsel %vm2511, %v2503, %v2508
        %v2513 = vrsqrt.pop %v2470
        %v2514 = vmul.f32 %v2513, %v2470
        %v2515 = vmul.f32 %v2514, %v2513
        %v2516 = vmul.f32 0.5, %v2515
        %v2517 = vsub.f32 1.5, %v2516
        %v2518 = vmul.f32 %v2513, %v2517
        %vm2519 = vweird.f32 %v2470
        %vm2520 = vweird.f32 %v2513
        %vm2521 = vmor %vm2519, %vm2520
        %v2522 = vsel %vm2521, %v2513, %v2518
        %v2523 = vrsqrt.pop %v2471
        %v2524 = vmul.f32 %v2523, %v2471
        %v2525 = vmul.f32 %v2524, %v2523
        %v2526 = vmul.f32 0.5, %v2525
        %v2527 = vsub.f32 1.5, %v2526
        %v2528 = vmul.f32 %v2523, %v2527
        %vm2529 = vweird.f32 %v2471
        %vm2530 = vweird.f32 %v2523
        %vm2531 = vmor %vm2529, %vm2530
        %v2532 = vsel %vm2531, %v2523, %v2528
        %v2533 = vrsqrt.pop %v2472
        %v2534 = vmul.f32 %v2533, %v2472
        %v2535 = vmul.f32 %v2534, %v2533
        %v2536 = vmul.f32 0.5, %v2535
        %v2537 = vsub.f32 1.5, %v2536
        %v2538 = vmul.f32 %v2533, %v2537
        %vm2539 = vweird.f32 %v2472
        %vm2540 = vweird.f32 %v2533
        %vm2541 = vmor %vm2539, %vm2540
        %v2542 = vsel %vm2541, %v2533, %v2538
        %v2543 = vmul.f32 %v2446, %v2482
        %v2544 = vmul.f32 %v2449, %v2492
        %v2545 = vmul.f32 %v2452, %v2502
        %v2546 = vmul.f32 %v2455, %v2512
        %v2547 = vmul.f32 %v2458, %v2522
        %v2548 = vmul.f32 %v2461, %v2532
        %v2549 = vmul.f32 %v2464, %v2542
        %v2550 = vsub.f32 0.0, %v2543
        %v2551 = vsub.f32 0.0, %v2544
        %v2552 = vsub.f32 0.0, %v2545
        %v2553 = vsub.f32 0.0, %v2546
        %v2554 = vsub.f32 0.0, %v2547
        %v2555 = vsub.f32 0.0, %v2548
        %v2556 = vsub.f32 0.0, %v2549
        %v2557 = vmul.f32 %v2550, 1.442695
        %v2558 = vpow.pop %v2557
        %v2559 = vmul.f32 %v2551, 1.442695
        %v2560 = vpow.pop %v2559
        %v2561 = vmul.f32 %v2552, 1.442695
        %v2562 = vpow.pop %v2561
        %v2563 = vmul.f32 %v2553, 1.442695
        %v2564 = vpow.pop %v2563
        %v2565 = vmul.f32 %v2554, 1.442695
        %v2566 = vpow.pop %v2565
        %v2567 = vmul.f32 %v2555, 1.442695
        %v2568 = vpow.pop %v2567
        %v2569 = vmul.f32 %v2556, 1.442695
        %v2570 = vpow.pop %v2569
        %v2571 = vsub.f32 1.0, %v2558
        %v2572 = vsub.f32 1.0, %v2560
        %v2573 = vsub.f32 1.0, %v2562
        %v2574 = vsub.f32 1.0, %v2564
        %v2575 = vsub.f32 1.0, %v2566
        %v2576 = vsub.f32 1.0, %v2568
        %v2577 = vsub.f32 1.0, %v2570
        %v2578 = vmul.f32 %v2571, %v2482
        %v2579 = vmul.f32 %v2572, %v2492
        %v2580 = vmul.f32 %v2573, %v2502
        %v2581 = vmul.f32 %v2574, %v2512
        %v2582 = vmul.f32 %v2575, %v2522
        %v2583 = vmul.f32 %v2576, %v2532
        %v2584 = vmul.f32 %v2577, %v2542
        %2585 = vst [vmem:[#allocation1] ss:$9 sm:$0xff] %v2146
        %s2586 = scalar_lea.vmem [#allocation1], 1
        %2587 = vst [vmem:[%s2586] ss:$9 sm:$0xff] %v2160
        %s2588 = scalar_lea.vmem [#allocation1], 2
        %2589 = vst [vmem:[%s2588] ss:$9 sm:$0xff] %v2161
        %s2590 = scalar_lea.vmem [#allocation1], 3
        %2591 = vst [vmem:[%s2590] ss:$9 sm:$0xff] %v2162
        %s2592 = scalar_lea.vmem [#allocation1], 4
        %2593 = vst [vmem:[%s2592] ss:$9 sm:$0xff] %v2163
        %s2594 = scalar_lea.vmem [#allocation1], 5
        %2595 = vst [vmem:[%s2594] ss:$9 sm:$0xff] %v2164
        %s2596 = scalar_lea.vmem [#allocation1], 6
        %2597 = vst [vmem:[%s2596] ss:$9 sm:$0xff] %v2165
        %s2598 = scalar_lea.vmem [#allocation1], 7
        %2599 = vst [vmem:[%s2598] ss:$9 sm:$0xff] %v2147
        %v2600 = vld [vmem:[#allocation1] sm:$0xff]
        %2601 = vst [vmem:[#allocation1] ss:$9 sm:$0xff] %v2166
        %2602 = vst [vmem:[%s2586] ss:$9 sm:$0xff] %v2167
        %2603 = vst [vmem:[%s2588] ss:$9 sm:$0xff] %v2168
        %2604 = vst [vmem:[%s2590] ss:$9 sm:$0xff] %v2169
        %2605 = vst [vmem:[%s2592] ss:$9 sm:$0xff] %v2170
        %2606 = vst [vmem:[%s2594] ss:$9 sm:$0xff] %v2171
        %2607 = vst [vmem:[%s2596] ss:$9 sm:$0xff] %v2148
        %2608 = vst [vmem:[%s2598] ss:$9 sm:$0xff] %v2172
        %v2609 = vld [vmem:[#allocation1] sm:$0xff]
        %2610 = vst [vmem:[#allocation1] ss:$9 sm:$0xff] %v2173
        %2611 = vst [vmem:[%s2586] ss:$9 sm:$0xff] %v2174
        %2612 = vst [vmem:[%s2588] ss:$9 sm:$0xff] %v2175
        %2613 = vst [vmem:[%s2590] ss:$9 sm:$0xff] %v2176
        %2614 = vst [vmem:[%s2592] ss:$9 sm:$0xff] %v2177
        %2615 = vst [vmem:[%s2594] ss:$9 sm:$0xff] %v2149
        %2616 = vst [vmem:[%s2596] ss:$9 sm:$0xff] %v2178
        %2617 = vst [vmem:[%s2598] ss:$9 sm:$0xff] %v2179
        %v2618 = vld [vmem:[#allocation1] sm:$0xff]
        %2619 = vst [vmem:[#allocation1] ss:$9 sm:$0xff] %v2180
        %2620 = vst [vmem:[%s2586] ss:$9 sm:$0xff] %v2181
        %2621 = vst [vmem:[%s2588] ss:$9 sm:$0xff] %v2182
        %2622 = vst [vmem:[%s2590] ss:$9 sm:$0xff] %v2183
        %2623 = vst [vmem:[%s2592] ss:$9 sm:$0xff] %v2150
        %2624 = vst [vmem:[%s2594] ss:$9 sm:$0xff] %v2184
        %2625 = vst [vmem:[%s2596] ss:$9 sm:$0xff] %v2185
        %2626 = vst [vmem:[%s2598] ss:$9 sm:$0xff] %v2186
        %v2627 = vld [vmem:[#allocation1] sm:$0xff]
        %2628 = vst [vmem:[#allocation1] ss:$9 sm:$0xff] %v2187
        %2629 = vst [vmem:[%s2586] ss:$9 sm:$0xff] %v2188
        %2630 = vst [vmem:[%s2588] ss:$9 sm:$0xff] %v2189
        %2631 = vst [vmem:[%s2590] ss:$9 sm:$0xff] %v2151
        %2632 = vst [vmem:[%s2592] ss:$9 sm:$0xff] %v2190
        %2633 = vst [vmem:[%s2594] ss:$9 sm:$0xff] %v2191
        %2634 = vst [vmem:[%s2596] ss:$9 sm:$0xff] %v2192
        %2635 = vst [vmem:[%s2598] ss:$9 sm:$0xff] %v2193
        %v2636 = vld [vmem:[#allocation1] sm:$0xff]
        %2637 = vst [vmem:[#allocation1] ss:$9 sm:$0xff] %v2194
        %2638 = vst [vmem:[%s2586] ss:$9 sm:$0xff] %v2195
        %2639 = vst [vmem:[%s2588] ss:$9 sm:$0xff] %v2152
        %2640 = vst [vmem:[%s2590] ss:$9 sm:$0xff] %v2196
        %2641 = vst [vmem:[%s2592] ss:$9 sm:$0xff] %v2197
        %2642 = vst [vmem:[%s2594] ss:$9 sm:$0xff] %v2198
        %2643 = vst [vmem:[%s2596] ss:$9 sm:$0xff] %v2199
        %2644 = vst [vmem:[%s2598] ss:$9 sm:$0xff] %v2200
        %v2645 = vld [vmem:[#allocation1] sm:$0xff]
        %2646 = vst [vmem:[#allocation1] ss:$9 sm:$0xff] %v2201
        %v2647 = vld [vmem:[#allocation1] sm:$0xff]
        %v2655 = vmul.f32 %v2578, %v2600
        %v2656 = vmul.f32 %v2579, %v2609
        %v2657 = vmul.f32 %v2580, %v2618
        %v2658 = vmul.f32 %v2581, %v2627
        %v2659 = vmul.f32 %v2582, %v2636
        %v2660 = vmul.f32 %v2583, %v2645
        %v2661 = vmul.f32 %v2584, %v2647
        %2662 = vmatpush.msra.mxu0 %v2259
        %2663 = vmatpush.msra.mxu0 %v2258
        %2664 = vmatpush.msra.mxu0 %v2257
        %2665 = vmatpush.msra.mxu0 %v2256
        %2666 = vmatpush.msra.mxu0 %v2255
        %2667 = vmatpush.msra.mxu0 %v2254
        %2668 = vmatpush.msra.mxu0 %v2253
        %2669 = vmatpush.msra.mxu0 %v2252
        %2670 = vmatpush.msra.mxu0 %v2251
        %2671 = vmatpush.msra.mxu0 %v2250
        %2672 = vmatpush.msra.mxu0 %v2249
        %2673 = vmatpush.msra.mxu0 %v2248
        %2674 = vmatpush.msra.mxu0 %v2247
        %2675 = vmatpush.msra.mxu0 %v2246
        %2676 = vmatpush.msra.mxu0 %v2245
        %2677 = vmatpush.msra.mxu0 %v2244
        %2678 = vmatmul.f32.gmra.mxu0 %v2655
        %v2679 = vpop.f32.mrf.mxu0
        %v2680 = vadd.f32 0.0, %v2679
        %2681 = vmatmul.f32.gmra.mxu0 %v2656
        %v2682 = vpop.f32.mrf.mxu0
        %v2683 = vadd.f32 0.0, %v2682
        %2684 = vmatmul.f32.gmra.mxu0 %v2657
        %v2685 = vpop.f32.mrf.mxu0
        %v2686 = vadd.f32 0.0, %v2685
        %2687 = vmatmul.f32.gmra.mxu0 %v2658
        %v2688 = vpop.f32.mrf.mxu0
        %v2689 = vadd.f32 0.0, %v2688
        %2690 = vmatmul.f32.gmra.mxu0 %v2659
        %v2691 = vpop.f32.mrf.mxu0
        %v2692 = vadd.f32 0.0, %v2691
        %2693 = vmatmul.f32.gmra.mxu0 %v2660
        %v2694 = vpop.f32.mrf.mxu0
        %v2695 = vadd.f32 0.0, %v2694
        %2696 = vmatmul.f32.gmra.mxu0 %v2661
        %v2697 = vpop.f32.mrf.mxu0
        %v2698 = vadd.f32 0.0, %v2697
        %2699 = vdwg.mxu0
        %v2707 = vrot.slane %v2680, 1
        %v2708 = vrot.slane %v2680, 2
        %v2709 = vrot.slane %v2680, 3
        %v2710 = vrot.slane %v2680, 4
        %v2711 = vrot.slane %v2680, 5
        %v2712 = vrot.slane %v2680, 6
        %v2713 = vrot.slane %v2680, 7
        %v2714 = vrot.slane %v2683, 1
        %v2715 = vrot.slane %v2683, 2
        %v2716 = vrot.slane %v2683, 3
        %v2717 = vrot.slane %v2683, 4
        %v2718 = vrot.slane %v2683, 5
        %v2719 = vrot.slane %v2683, 6
        %v2720 = vrot.slane %v2683, 7
        %v2721 = vrot.slane %v2686, 1
        %v2722 = vrot.slane %v2686, 2
        %v2723 = vrot.slane %v2686, 3
        %v2724 = vrot.slane %v2686, 4
        %v2725 = vrot.slane %v2686, 5
        %v2726 = vrot.slane %v2686, 6
        %v2727 = vrot.slane %v2686, 7
        %v2728 = vrot.slane %v2689, 1
        %v2729 = vrot.slane %v2689, 2
        %v2730 = vrot.slane %v2689, 3
        %v2731 = vrot.slane %v2689, 4
        %v2732 = vrot.slane %v2689, 5
        %v2733 = vrot.slane %v2689, 6
        %v2734 = vrot.slane %v2689, 7
        %v2735 = vrot.slane %v2692, 1
        %v2736 = vrot.slane %v2692, 2
        %v2737 = vrot.slane %v2692, 3
        %v2738 = vrot.slane %v2692, 4
        %v2739 = vrot.slane %v2692, 5
        %v2740 = vrot.slane %v2692, 6
        %v2741 = vrot.slane %v2692, 7
        %v2742 = vrot.slane %v2695, 1
        %v2743 = vrot.slane %v2695, 2
        %v2744 = vrot.slane %v2695, 3
        %v2745 = vrot.slane %v2695, 4
        %v2746 = vrot.slane %v2695, 5
        %v2747 = vrot.slane %v2695, 6
        %v2748 = vrot.slane %v2695, 7
        %2749 = vst [vmem:[#allocation1] ss:$9 sm:$0xff] %v2680
        %s2750 = scalar_lea.vmem [#allocation1], 1
        %2751 = vst [vmem:[%s2750] ss:$9 sm:$0xff] %v2707
        %s2752 = scalar_lea.vmem [#allocation1], 2
        %2753 = vst [vmem:[%s2752] ss:$9 sm:$0xff] %v2708
        %s2754 = scalar_lea.vmem [#allocation1], 3
        %2755 = vst [vmem:[%s2754] ss:$9 sm:$0xff] %v2709
        %s2756 = scalar_lea.vmem [#allocation1], 4
        %2757 = vst [vmem:[%s2756] ss:$9 sm:$0xff] %v2710
        %s2758 = scalar_lea.vmem [#allocation1], 5
        %2759 = vst [vmem:[%s2758] ss:$9 sm:$0xff] %v2711
        %s2760 = scalar_lea.vmem [#allocation1], 6
        %2761 = vst [vmem:[%s2760] ss:$9 sm:$0xff] %v2712
        %v2762 = vld [vmem:[#allocation1] sm:$0xff]
        %2763 = vst [vmem:[#allocation1] ss:$9 sm:$0xff] %v2713
        %2764 = vst [vmem:[%s2750] ss:$9 sm:$0xff] %v2683
        %2765 = vst [vmem:[%s2752] ss:$9 sm:$0xff] %v2714
        %2766 = vst [vmem:[%s2754] ss:$9 sm:$0xff] %v2715
        %2767 = vst [vmem:[%s2756] ss:$9 sm:$0xff] %v2716
        %2768 = vst [vmem:[%s2758] ss:$9 sm:$0xff] %v2717
        %2769 = vst [vmem:[%s2760] ss:$9 sm:$0xff] %v2718
        %v2770 = vld [vmem:[#allocation1] sm:$0xff]
        %2771 = vst [vmem:[#allocation1] ss:$9 sm:$0xff] %v2719
        %2772 = vst [vmem:[%s2750] ss:$9 sm:$0xff] %v2720
        %2773 = vst [vmem:[%s2752] ss:$9 sm:$0xff] %v2686
        %2774 = vst [vmem:[%s2754] ss:$9 sm:$0xff] %v2721
        %2775 = vst [vmem:[%s2756] ss:$9 sm:$0xff] %v2722
        %2776 = vst [vmem:[%s2758] ss:$9 sm:$0xff] %v2723
        %2777 = vst [vmem:[%s2760] ss:$9 sm:$0xff] %v2724
        %v2778 = vld [vmem:[#allocation1] sm:$0xff]
        %2779 = vst [vmem:[#allocation1] ss:$9 sm:$0xff] %v2725
        %2780 = vst [vmem:[%s2750] ss:$9 sm:$0xff] %v2726
        %2781 = vst [vmem:[%s2752] ss:$9 sm:$0xff] %v2727
        %2782 = vst [vmem:[%s2754] ss:$9 sm:$0xff] %v2689
        %2783 = vst [vmem:[%s2756] ss:$9 sm:$0xff] %v2728
        %2784 = vst [vmem:[%s2758] ss:$9 sm:$0xff] %v2729
        %2785 = vst [vmem:[%s2760] ss:$9 sm:$0xff] %v2730
        %v2786 = vld [vmem:[#allocation1] sm:$0xff]
        %2787 = vst [vmem:[#allocation1] ss:$9 sm:$0xff] %v2731
        %2788 = vst [vmem:[%s2750] ss:$9 sm:$0xff] %v2732
        %2789 = vst [vmem:[%s2752] ss:$9 sm:$0xff] %v2733
        %2790 = vst [vmem:[%s2754] ss:$9 sm:$0xff] %v2734
        %2791 = vst [vmem:[%s2756] ss:$9 sm:$0xff] %v2692
        %2792 = vst [vmem:[%s2758] ss:$9 sm:$0xff] %v2735
        %2793 = vst [vmem:[%s2760] ss:$9 sm:$0xff] %v2736
        %v2794 = vld [vmem:[#allocation1] sm:$0xff]
        %2795 = vst [vmem:[#allocation1] ss:$9 sm:$0xff] %v2737
        %2796 = vst [vmem:[%s2750] ss:$9 sm:$0xff] %v2738
        %2797 = vst [vmem:[%s2752] ss:$9 sm:$0xff] %v2739
        %2798 = vst [vmem:[%s2754] ss:$9 sm:$0xff] %v2740
        %2799 = vst [vmem:[%s2756] ss:$9 sm:$0xff] %v2741
        %2800 = vst [vmem:[%s2758] ss:$9 sm:$0xff] %v2695
        %2801 = vst [vmem:[%s2760] ss:$9 sm:$0xff] %v2742
        %v2802 = vld [vmem:[#allocation1] sm:$0xff]
        %2803 = vst [vmem:[#allocation1] ss:$9 sm:$0xff] %v2743
        %2804 = vst [vmem:[%s2750] ss:$9 sm:$0xff] %v2744
        %2805 = vst [vmem:[%s2752] ss:$9 sm:$0xff] %v2745
        %2806 = vst [vmem:[%s2754] ss:$9 sm:$0xff] %v2746
        %2807 = vst [vmem:[%s2756] ss:$9 sm:$0xff] %v2747
        %2808 = vst [vmem:[%s2758] ss:$9 sm:$0xff] %v2748
        %2809 = vst [vmem:[%s2760] ss:$9 sm:$0xff] %v2698
        %v2810 = vld [vmem:[#allocation1] sm:$0xff]
        %2818 = vst [vmem:[#allocation3] sm:$0x7f] %v2762
        %2819 = vst [vmem:[#allocation3 + $0x8] sm:$0x7f] %v2770
        %2820 = vst [vmem:[#allocation3 + $0x10] sm:$0x7f] %v2778
        %2821 = vst [vmem:[#allocation3 + $0x18] sm:$0x7f] %v2786
        %2822 = vst [vmem:[#allocation3 + $0x20] sm:$0x7f] %v2794
        %2823 = vst [vmem:[#allocation3 + $0x28] sm:$0x7f] %v2802
        %2824 = vst [vmem:[#allocation3 + $0x30] sm:$0x7f] %v2810
        %v2825 = vld [vmem:[%s5] sm:$0xff]
        %v2826 = vld [vmem:[%s5 + $0x8] sm:$0xff]
        %v2827 = vld [vmem:[%s5 + $0x10] sm:$0xff]
        %v2828 = vld [vmem:[%s5 + $0x18] sm:$0xff]
        %v2829 = vld [vmem:[%s6] sm:$0xff]
        %v2830 = vld [vmem:[%s6 + $0x8] sm:$0xff]
        %v2831 = vld [vmem:[%s6 + $0x10] sm:$0xff]
        %v2832 = vld [vmem:[%s6 + $0x18] sm:$0xff]
        %v2833 = vld [vmem:[%s7] sm:$0xff]
        %v2834 = vld [vmem:[%s7 + $0x8] sm:$0xff]
        %v2835 = vld [vmem:[%s7 + $0x10] sm:$0xff]
        %v2836 = vld [vmem:[%s7 + $0x18] sm:$0xff]
        %v2837 = vld [vmem:[%s7 + $0x20] sm:$0xff]
        %v2838 = vld [vmem:[%s7 + $0x28] sm:$0xff]
        %v2839 = vld [vmem:[%s7 + $0x30] sm:$0xff]
        %v2840 = vld [vmem:[%s7 + $0x38] sm:$0xff]
        %v2841 = vld [vmem:[%s7 + $0x40] sm:$0xff]
        %v2842 = vld [vmem:[%s7 + $0x48] sm:$0xff]
        %v2843 = vld [vmem:[%s7 + $0x50] sm:$0xff]
        %v2844 = vld [vmem:[%s7 + $0x58] sm:$0xff]
        %v2845 = vld [vmem:[%s7 + $0x60] sm:$0xff]
        %v2846 = vld [vmem:[%s7 + $0x68] sm:$0xff]
        %v2847 = vld [vmem:[%s7 + $0x70] sm:$0xff]
        %v2848 = vld [vmem:[%s7 + $0x78] sm:$0xff]
        %v2849 = vld [vmem:[%s8] sm:$0xff]
        %v2850 = vld [vmem:[%s8 + $0x8] sm:$0xff]
        %v2851 = vld [vmem:[%s8 + $0x10] sm:$0xff]
        %v2852 = vld [vmem:[%s8 + $0x18] sm:$0xff]
        loop: start=0, step=1, limit=7
        $region57: #{final_capsnet_forward.1} parent=55 // loop_pre_header
          _
        $region58: #{final_capsnet_forward.1} parent=55 // loop_header
          %s2854 = sphi 0, %s2858
          %p2855 = scmp.ge.s32.totalorder %s2854, 7
          %s2859 = sphi 0.0, %s3666
          %s2860 = sphi 0.0, %s3679
        $region59: #{final_capsnet_forward.1} parent=55 // loop_header_branch
          %2857 = sbr.rel (%p2855) target = $region63
        $region60: #{final_capsnet_forward.1} parent=55 // loop_body
          %s2861 = smul.u32 %s2854, 8
          %s2862 = scalar_lea.vmem [#allocation3], %s2861
          %v2863 = vld [vmem:[%s2862] sm:$0x7f]
          %v2865 = vrot.slane %v2863, 1
          %v2866 = vrot.slane %v2863, 2
          %v2867 = vrot.slane %v2863, 3
          %v2868 = vrot.slane %v2863, 4
          %v2869 = vrot.slane %v2863, 5
          %v2870 = vrot.slane %v2863, 6
          %v2871 = vperm.slane %v2863, 0
          %v2872 = vperm.slane %v2865, 0
          %v2873 = vperm.slane %v2866, 0
          %v2874 = vperm.slane %v2867, 0
          %v2875 = vperm.slane %v2868, 0
          %v2876 = vperm.slane %v2869, 0
          %v2877 = vperm.slane %v2870, 0
          %v2885 = vmul.f32 %v2871, %v2825
          %v2886 = vmul.f32 %v2871, %v2826
          %v2887 = vmul.f32 %v2871, %v2827
          %v2888 = vmul.f32 %v2871, %v2828
          %v2889 = vmul.f32 %v2872, %v2825
          %v2890 = vmul.f32 %v2872, %v2826
          %v2891 = vmul.f32 %v2872, %v2827
          %v2892 = vmul.f32 %v2872, %v2828
          %v2893 = vmul.f32 %v2873, %v2825
          %v2894 = vmul.f32 %v2873, %v2826
          %v2895 = vmul.f32 %v2873, %v2827
          %v2896 = vmul.f32 %v2873, %v2828
          %v2897 = vmul.f32 %v2874, %v2825
          %v2898 = vmul.f32 %v2874, %v2826
          %v2899 = vmul.f32 %v2874, %v2827
          %v2900 = vmul.f32 %v2874, %v2828
          %v2901 = vmul.f32 %v2875, %v2825
          %v2902 = vmul.f32 %v2875, %v2826
          %v2903 = vmul.f32 %v2875, %v2827
          %v2904 = vmul.f32 %v2875, %v2828
          %v2905 = vmul.f32 %v2876, %v2825
          %v2906 = vmul.f32 %v2876, %v2826
          %v2907 = vmul.f32 %v2876, %v2827
          %v2908 = vmul.f32 %v2876, %v2828
          %v2909 = vmul.f32 %v2877, %v2825
          %v2910 = vmul.f32 %v2877, %v2826
          %v2911 = vmul.f32 %v2877, %v2827
          %v2912 = vmul.f32 %v2877, %v2828
          %v2913 = vmul.f32 %v2885, %v2885
          %v2914 = vmul.f32 %v2886, %v2886
          %v2915 = vmul.f32 %v2887, %v2887
          %v2916 = vmul.f32 %v2888, %v2888
          %v2917 = vmul.f32 %v2889, %v2889
          %v2918 = vmul.f32 %v2890, %v2890
          %v2919 = vmul.f32 %v2891, %v2891
          %v2920 = vmul.f32 %v2892, %v2892
          %v2921 = vmul.f32 %v2893, %v2893
          %v2922 = vmul.f32 %v2894, %v2894
          %v2923 = vmul.f32 %v2895, %v2895
          %v2924 = vmul.f32 %v2896, %v2896
          %v2925 = vmul.f32 %v2897, %v2897
          %v2926 = vmul.f32 %v2898, %v2898
          %v2927 = vmul.f32 %v2899, %v2899
          %v2928 = vmul.f32 %v2900, %v2900
          %v2929 = vmul.f32 %v2901, %v2901
          %v2930 = vmul.f32 %v2902, %v2902
          %v2931 = vmul.f32 %v2903, %v2903
          %v2932 = vmul.f32 %v2904, %v2904
          %v2933 = vmul.f32 %v2905, %v2905
          %v2934 = vmul.f32 %v2906, %v2906
          %v2935 = vmul.f32 %v2907, %v2907
          %v2936 = vmul.f32 %v2908, %v2908
          %v2937 = vmul.f32 %v2909, %v2909
          %v2938 = vmul.f32 %v2910, %v2910
          %v2939 = vmul.f32 %v2911, %v2911
          %v2940 = vmul.f32 %v2912, %v2912
          %2941 = vmatpush.msra.mxu0 %v2848
          %2942 = vmatpush.msra.mxu0 %v2847
          %2943 = vmatpush.msra.mxu0 %v2846
          %2944 = vmatpush.msra.mxu0 %v2845
          %2945 = vmatpush.msra.mxu0 %v2844
          %2946 = vmatpush.msra.mxu0 %v2843
          %2947 = vmatpush.msra.mxu0 %v2842
          %2948 = vmatpush.msra.mxu0 %v2841
          %2949 = vmatpush.msra.mxu0 %v2840
          %2950 = vmatpush.msra.mxu0 %v2839
          %2951 = vmatpush.msra.mxu0 %v2838
          %2952 = vmatpush.msra.mxu0 %v2837
          %2953 = vmatpush.msra.mxu0 %v2836
          %2954 = vmatpush.msra.mxu0 %v2835
          %2955 = vmatpush.msra.mxu0 %v2834
          %2956 = vmatpush.msra.mxu0 %v2833
          %2957 = vmatmul.f32.gmra.mxu0 %v2913
          %v2958 = vpop.f32.mrf.mxu0
          %v2959 = vadd.f32 0.0, %v2958
          %2960 = vmatmul.f32.gmra.mxu0 %v2914
          %v2961 = vpop.f32.mrf.mxu0
          %v2962 = vadd.f32 0.0, %v2961
          %2963 = vmatmul.f32.gmra.mxu0 %v2915
          %v2964 = vpop.f32.mrf.mxu0
          %v2965 = vadd.f32 0.0, %v2964
          %2966 = vmatmul.f32.gmra.mxu0 %v2916
          %v2967 = vpop.f32.mrf.mxu0
          %v2968 = vadd.f32 0.0, %v2967
          %2969 = vmatmul.f32.gmra.mxu0 %v2917
          %v2970 = vpop.f32.mrf.mxu0
          %v2971 = vadd.f32 0.0, %v2970
          %2972 = vmatmul.f32.gmra.mxu0 %v2918
          %v2973 = vpop.f32.mrf.mxu0
          %v2974 = vadd.f32 0.0, %v2973
          %2975 = vmatmul.f32.gmra.mxu0 %v2919
          %v2976 = vpop.f32.mrf.mxu0
          %v2977 = vadd.f32 0.0, %v2976
          %2978 = vmatmul.f32.gmra.mxu0 %v2920
          %v2979 = vpop.f32.mrf.mxu0
          %v2980 = vadd.f32 0.0, %v2979
          %2981 = vmatmul.f32.gmra.mxu0 %v2921
          %v2982 = vpop.f32.mrf.mxu0
          %v2983 = vadd.f32 0.0, %v2982
          %2984 = vmatmul.f32.gmra.mxu0 %v2922
          %v2985 = vpop.f32.mrf.mxu0
          %v2986 = vadd.f32 0.0, %v2985
          %2987 = vmatmul.f32.gmra.mxu0 %v2923
          %v2988 = vpop.f32.mrf.mxu0
          %v2989 = vadd.f32 0.0, %v2988
          %2990 = vmatmul.f32.gmra.mxu0 %v2924
          %v2991 = vpop.f32.mrf.mxu0
          %v2992 = vadd.f32 0.0, %v2991
          %2993 = vmatmul.f32.gmra.mxu0 %v2925
          %v2994 = vpop.f32.mrf.mxu0
          %v2995 = vadd.f32 0.0, %v2994
          %2996 = vmatmul.f32.gmra.mxu0 %v2926
          %v2997 = vpop.f32.mrf.mxu0
          %v2998 = vadd.f32 0.0, %v2997
          %2999 = vmatmul.f32.gmra.mxu0 %v2927
          %v3000 = vpop.f32.mrf.mxu0
          %v3001 = vadd.f32 0.0, %v3000
          %3002 = vmatmul.f32.gmra.mxu0 %v2928
          %v3003 = vpop.f32.mrf.mxu0
          %v3004 = vadd.f32 0.0, %v3003
          %3005 = vmatmul.f32.gmra.mxu0 %v2929
          %v3006 = vpop.f32.mrf.mxu0
          %v3007 = vadd.f32 0.0, %v3006
          %3008 = vmatmul.f32.gmra.mxu0 %v2930
          %v3009 = vpop.f32.mrf.mxu0
          %v3010 = vadd.f32 0.0, %v3009
          %3011 = vmatmul.f32.gmra.mxu0 %v2931
          %v3012 = vpop.f32.mrf.mxu0
          %v3013 = vadd.f32 0.0, %v3012
          %3014 = vmatmul.f32.gmra.mxu0 %v2932
          %v3015 = vpop.f32.mrf.mxu0
          %v3016 = vadd.f32 0.0, %v3015
          %3017 = vmatmul.f32.gmra.mxu0 %v2933
          %v3018 = vpop.f32.mrf.mxu0
          %v3019 = vadd.f32 0.0, %v3018
          %3020 = vmatmul.f32.gmra.mxu0 %v2934
          %v3021 = vpop.f32.mrf.mxu0
          %v3022 = vadd.f32 0.0, %v3021
          %3023 = vmatmul.f32.gmra.mxu0 %v2935
          %v3024 = vpop.f32.mrf.mxu0
          %v3025 = vadd.f32 0.0, %v3024
          %3026 = vmatmul.f32.gmra.mxu0 %v2936
          %v3027 = vpop.f32.mrf.mxu0
          %v3028 = vadd.f32 0.0, %v3027
          %3029 = vmatmul.f32.gmra.mxu0 %v2937
          %v3030 = vpop.f32.mrf.mxu0
          %v3031 = vadd.f32 0.0, %v3030
          %3032 = vmatmul.f32.gmra.mxu0 %v2938
          %v3033 = vpop.f32.mrf.mxu0
          %v3034 = vadd.f32 0.0, %v3033
          %3035 = vmatmul.f32.gmra.mxu0 %v2939
          %v3036 = vpop.f32.mrf.mxu0
          %v3037 = vadd.f32 0.0, %v3036
          %3038 = vmatmul.f32.gmra.mxu0 %v2940
          %v3039 = vpop.f32.mrf.mxu0
          %v3040 = vadd.f32 0.0, %v3039
          %3041 = vdwg.mxu0
          %v3042 = vmul.f32 %v2959, %v2829
          %v3043 = vmul.f32 %v2962, %v2830
          %v3044 = vmul.f32 %v2965, %v2831
          %v3045 = vmul.f32 %v2968, %v2832
          %v3046 = vmul.f32 %v2971, %v2829
          %v3047 = vmul.f32 %v2974, %v2830
          %v3048 = vmul.f32 %v2977, %v2831
          %v3049 = vmul.f32 %v2980, %v2832
          %v3050 = vmul.f32 %v2983, %v2829
          %v3051 = vmul.f32 %v2986, %v2830
          %v3052 = vmul.f32 %v2989, %v2831
          %v3053 = vmul.f32 %v2992, %v2832
          %v3054 = vmul.f32 %v2995, %v2829
          %v3055 = vmul.f32 %v2998, %v2830
          %v3056 = vmul.f32 %v3001, %v2831
          %v3057 = vmul.f32 %v3004, %v2832
          %v3058 = vmul.f32 %v3007, %v2829
          %v3059 = vmul.f32 %v3010, %v2830
          %v3060 = vmul.f32 %v3013, %v2831
          %v3061 = vmul.f32 %v3016, %v2832
          %v3062 = vmul.f32 %v3019, %v2829
          %v3063 = vmul.f32 %v3022, %v2830
          %v3064 = vmul.f32 %v3025, %v2831
          %v3065 = vmul.f32 %v3028, %v2832
          %v3066 = vmul.f32 %v3031, %v2829
          %v3067 = vmul.f32 %v3034, %v2830
          %v3068 = vmul.f32 %v3037, %v2831
          %v3069 = vmul.f32 %v3040, %v2832
          %v3070 = vmul.f32 %v3042, 1.442695
          %v3071 = vpow.pop %v3070
          %v3072 = vmul.f32 %v3043, 1.442695
          %v3073 = vpow.pop %v3072
          %v3074 = vmul.f32 %v3044, 1.442695
          %v3075 = vpow.pop %v3074
          %v3076 = vmul.f32 %v3045, 1.442695
          %v3077 = vpow.pop %v3076
          %v3078 = vmul.f32 %v3046, 1.442695
          %v3079 = vpow.pop %v3078
          %v3080 = vmul.f32 %v3047, 1.442695
          %v3081 = vpow.pop %v3080
          %v3082 = vmul.f32 %v3048, 1.442695
          %v3083 = vpow.pop %v3082
          %v3084 = vmul.f32 %v3049, 1.442695
          %v3085 = vpow.pop %v3084
          %v3086 = vmul.f32 %v3050, 1.442695
          %v3087 = vpow.pop %v3086
          %v3088 = vmul.f32 %v3051, 1.442695
          %v3089 = vpow.pop %v3088
          %v3090 = vmul.f32 %v3052, 1.442695
          %v3091 = vpow.pop %v3090
          %v3092 = vmul.f32 %v3053, 1.442695
          %v3093 = vpow.pop %v3092
          %v3094 = vmul.f32 %v3054, 1.442695
          %v3095 = vpow.pop %v3094
          %v3096 = vmul.f32 %v3055, 1.442695
          %v3097 = vpow.pop %v3096
          %v3098 = vmul.f32 %v3056, 1.442695
          %v3099 = vpow.pop %v3098
          %v3100 = vmul.f32 %v3057, 1.442695
          %v3101 = vpow.pop %v3100
          %v3102 = vmul.f32 %v3058, 1.442695
          %v3103 = vpow.pop %v3102
          %v3104 = vmul.f32 %v3059, 1.442695
          %v3105 = vpow.pop %v3104
          %v3106 = vmul.f32 %v3060, 1.442695
          %v3107 = vpow.pop %v3106
          %v3108 = vmul.f32 %v3061, 1.442695
          %v3109 = vpow.pop %v3108
          %v3110 = vmul.f32 %v3062, 1.442695
          %v3111 = vpow.pop %v3110
          %v3112 = vmul.f32 %v3063, 1.442695
          %v3113 = vpow.pop %v3112
          %v3114 = vmul.f32 %v3064, 1.442695
          %v3115 = vpow.pop %v3114
          %v3116 = vmul.f32 %v3065, 1.442695
          %v3117 = vpow.pop %v3116
          %v3118 = vmul.f32 %v3066, 1.442695
          %v3119 = vpow.pop %v3118
          %v3120 = vmul.f32 %v3067, 1.442695
          %v3121 = vpow.pop %v3120
          %v3122 = vmul.f32 %v3068, 1.442695
          %v3123 = vpow.pop %v3122
          %v3124 = vmul.f32 %v3069, 1.442695
          %v3125 = vpow.pop %v3124
          %3126 = vmatpush.msra.mxu0 %v2848
          %3127 = vmatpush.msra.mxu0 %v2847
          %3128 = vmatpush.msra.mxu0 %v2846
          %3129 = vmatpush.msra.mxu0 %v2845
          %3130 = vmatpush.msra.mxu0 %v2844
          %3131 = vmatpush.msra.mxu0 %v2843
          %3132 = vmatpush.msra.mxu0 %v2842
          %3133 = vmatpush.msra.mxu0 %v2841
          %3134 = vmatpush.msra.mxu0 %v2840
          %3135 = vmatpush.msra.mxu0 %v2839
          %3136 = vmatpush.msra.mxu0 %v2838
          %3137 = vmatpush.msra.mxu0 %v2837
          %3138 = vmatpush.msra.mxu0 %v2836
          %3139 = vmatpush.msra.mxu0 %v2835
          %3140 = vmatpush.msra.mxu0 %v2834
          %3141 = vmatpush.msra.mxu0 %v2833
          %3142 = vmatmul.f32.gmra.mxu0 %v3071
          %v3143 = vpop.f32.mrf.mxu0
          %v3144 = vadd.f32 0.0, %v3143
          %3145 = vmatmul.f32.gmra.mxu0 %v3073
          %v3146 = vpop.f32.mrf.mxu0
          %v3147 = vadd.f32 0.0, %v3146
          %3148 = vmatmul.f32.gmra.mxu0 %v3075
          %v3149 = vpop.f32.mrf.mxu0
          %v3150 = vadd.f32 0.0, %v3149
          %3151 = vmatmul.f32.gmra.mxu0 %v3077
          %v3152 = vpop.f32.mrf.mxu0
          %v3153 = vadd.f32 0.0, %v3152
          %3154 = vmatmul.f32.gmra.mxu0 %v3079
          %v3155 = vpop.f32.mrf.mxu0
          %v3156 = vadd.f32 0.0, %v3155
          %3157 = vmatmul.f32.gmra.mxu0 %v3081
          %v3158 = vpop.f32.mrf.mxu0
          %v3159 = vadd.f32 0.0, %v3158
          %3160 = vmatmul.f32.gmra.mxu0 %v3083
          %v3161 = vpop.f32.mrf.mxu0
          %v3162 = vadd.f32 0.0, %v3161
          %3163 = vmatmul.f32.gmra.mxu0 %v3085
          %v3164 = vpop.f32.mrf.mxu0
          %v3165 = vadd.f32 0.0, %v3164
          %3166 = vmatmul.f32.gmra.mxu0 %v3087
          %v3167 = vpop.f32.mrf.mxu0
          %v3168 = vadd.f32 0.0, %v3167
          %3169 = vmatmul.f32.gmra.mxu0 %v3089
          %v3170 = vpop.f32.mrf.mxu0
          %v3171 = vadd.f32 0.0, %v3170
          %3172 = vmatmul.f32.gmra.mxu0 %v3091
          %v3173 = vpop.f32.mrf.mxu0
          %v3174 = vadd.f32 0.0, %v3173
          %3175 = vmatmul.f32.gmra.mxu0 %v3093
          %v3176 = vpop.f32.mrf.mxu0
          %v3177 = vadd.f32 0.0, %v3176
          %3178 = vmatmul.f32.gmra.mxu0 %v3095
          %v3179 = vpop.f32.mrf.mxu0
          %v3180 = vadd.f32 0.0, %v3179
          %3181 = vmatmul.f32.gmra.mxu0 %v3097
          %v3182 = vpop.f32.mrf.mxu0
          %v3183 = vadd.f32 0.0, %v3182
          %3184 = vmatmul.f32.gmra.mxu0 %v3099
          %v3185 = vpop.f32.mrf.mxu0
          %v3186 = vadd.f32 0.0, %v3185
          %3187 = vmatmul.f32.gmra.mxu0 %v3101
          %v3188 = vpop.f32.mrf.mxu0
          %v3189 = vadd.f32 0.0, %v3188
          %3190 = vmatmul.f32.gmra.mxu0 %v3103
          %v3191 = vpop.f32.mrf.mxu0
          %v3192 = vadd.f32 0.0, %v3191
          %3193 = vmatmul.f32.gmra.mxu0 %v3105
          %v3194 = vpop.f32.mrf.mxu0
          %v3195 = vadd.f32 0.0, %v3194
          %3196 = vmatmul.f32.gmra.mxu0 %v3107
          %v3197 = vpop.f32.mrf.mxu0
          %v3198 = vadd.f32 0.0, %v3197
          %3199 = vmatmul.f32.gmra.mxu0 %v3109
          %v3200 = vpop.f32.mrf.mxu0
          %v3201 = vadd.f32 0.0, %v3200
          %3202 = vmatmul.f32.gmra.mxu0 %v3111
          %v3203 = vpop.f32.mrf.mxu0
          %v3204 = vadd.f32 0.0, %v3203
          %3205 = vmatmul.f32.gmra.mxu0 %v3113
          %v3206 = vpop.f32.mrf.mxu0
          %v3207 = vadd.f32 0.0, %v3206
          %3208 = vmatmul.f32.gmra.mxu0 %v3115
          %v3209 = vpop.f32.mrf.mxu0
          %v3210 = vadd.f32 0.0, %v3209
          %3211 = vmatmul.f32.gmra.mxu0 %v3117
          %v3212 = vpop.f32.mrf.mxu0
          %v3213 = vadd.f32 0.0, %v3212
          %3214 = vmatmul.f32.gmra.mxu0 %v3119
          %v3215 = vpop.f32.mrf.mxu0
          %v3216 = vadd.f32 0.0, %v3215
          %3217 = vmatmul.f32.gmra.mxu0 %v3121
          %v3218 = vpop.f32.mrf.mxu0
          %v3219 = vadd.f32 0.0, %v3218
          %3220 = vmatmul.f32.gmra.mxu0 %v3123
          %v3221 = vpop.f32.mrf.mxu0
          %v3222 = vadd.f32 0.0, %v3221
          %3223 = vmatmul.f32.gmra.mxu0 %v3125
          %v3224 = vpop.f32.mrf.mxu0
          %v3225 = vadd.f32 0.0, %v3224
          %3226 = vdwg.mxu0
          %v3227 = vmul.f32 %v2885, %v3071
          %v3228 = vmul.f32 %v2886, %v3073
          %v3229 = vmul.f32 %v2887, %v3075
          %v3230 = vmul.f32 %v2888, %v3077
          %v3231 = vmul.f32 %v2889, %v3079
          %v3232 = vmul.f32 %v2890, %v3081
          %v3233 = vmul.f32 %v2891, %v3083
          %v3234 = vmul.f32 %v2892, %v3085
          %v3235 = vmul.f32 %v2893, %v3087
          %v3236 = vmul.f32 %v2894, %v3089
          %v3237 = vmul.f32 %v2895, %v3091
          %v3238 = vmul.f32 %v2896, %v3093
          %v3239 = vmul.f32 %v2897, %v3095
          %v3240 = vmul.f32 %v2898, %v3097
          %v3241 = vmul.f32 %v2899, %v3099
          %v3242 = vmul.f32 %v2900, %v3101
          %v3243 = vmul.f32 %v2901, %v3103
          %v3244 = vmul.f32 %v2902, %v3105
          %v3245 = vmul.f32 %v2903, %v3107
          %v3246 = vmul.f32 %v2904, %v3109
          %v3247 = vmul.f32 %v2905, %v3111
          %v3248 = vmul.f32 %v2906, %v3113
          %v3249 = vmul.f32 %v2907, %v3115
          %v3250 = vmul.f32 %v2908, %v3117
          %v3251 = vmul.f32 %v2909, %v3119
          %v3252 = vmul.f32 %v2910, %v3121
          %v3253 = vmul.f32 %v2911, %v3123
          %v3254 = vmul.f32 %v2912, %v3125
          %v3255 = vrcp.pop %v3144
          %v3256 = vrcp.pop %v3147
          %v3257 = vrcp.pop %v3150
          %v3258 = vrcp.pop %v3153
          %v3259 = vrcp.pop %v3156
          %v3260 = vrcp.pop %v3159
          %v3261 = vrcp.pop %v3162
          %v3262 = vrcp.pop %v3165
          %v3263 = vrcp.pop %v3168
          %v3264 = vrcp.pop %v3171
          %v3265 = vrcp.pop %v3174
          %v3266 = vrcp.pop %v3177
          %v3267 = vrcp.pop %v3180
          %v3268 = vrcp.pop %v3183
          %v3269 = vrcp.pop %v3186
          %v3270 = vrcp.pop %v3189
          %v3271 = vrcp.pop %v3192
          %v3272 = vrcp.pop %v3195
          %v3273 = vrcp.pop %v3198
          %v3274 = vrcp.pop %v3201
          %v3275 = vrcp.pop %v3204
          %v3276 = vrcp.pop %v3207
          %v3277 = vrcp.pop %v3210
          %v3278 = vrcp.pop %v3213
          %v3279 = vrcp.pop %v3216
          %v3280 = vrcp.pop %v3219
          %v3281 = vrcp.pop %v3222
          %v3282 = vrcp.pop %v3225
          %v3283 = vmul.f32 %v3227, %v3255
          %v3284 = vmul.f32 %v3228, %v3256
          %v3285 = vmul.f32 %v3229, %v3257
          %v3286 = vmul.f32 %v3230, %v3258
          %v3287 = vmul.f32 %v3231, %v3259
          %v3288 = vmul.f32 %v3232, %v3260
          %v3289 = vmul.f32 %v3233, %v3261
          %v3290 = vmul.f32 %v3234, %v3262
          %v3291 = vmul.f32 %v3235, %v3263
          %v3292 = vmul.f32 %v3236, %v3264
          %v3293 = vmul.f32 %v3237, %v3265
          %v3294 = vmul.f32 %v3238, %v3266
          %v3295 = vmul.f32 %v3239, %v3267
          %v3296 = vmul.f32 %v3240, %v3268
          %v3297 = vmul.f32 %v3241, %v3269
          %v3298 = vmul.f32 %v3242, %v3270
          %v3299 = vmul.f32 %v3243, %v3271
          %v3300 = vmul.f32 %v3244, %v3272
          %v3301 = vmul.f32 %v3245, %v3273
          %v3302 = vmul.f32 %v3246, %v3274
          %v3303 = vmul.f32 %v3247, %v3275
          %v3304 = vmul.f32 %v3248, %v3276
          %v3305 = vmul.f32 %v3249, %v3277
          %v3306 = vmul.f32 %v3250, %v3278
          %v3307 = vmul.f32 %v3251, %v3279
          %v3308 = vmul.f32 %v3252, %v3280
          %v3309 = vmul.f32 %v3253, %v3281
          %v3310 = vmul.f32 %v3254, %v3282
          %3311 = vadd.xlane.f32.xlu0 %v3283
          %v3312 = vpop.xlane.xlu0 %3311
          %3313 = vadd.xlane.f32.xlu0 %v3284
          %v3314 = vpop.xlane.xlu0 %3313
          %3315 = vadd.xlane.f32.xlu0 %v3285
          %v3316 = vpop.xlane.xlu0 %3315
          %3317 = vadd.xlane.f32.xlu0 %v3286
          %v3318 = vpop.xlane.xlu0 %3317
          %3319 = vadd.xlane.f32.xlu0 %v3287
          %v3320 = vpop.xlane.xlu0 %3319
          %3321 = vadd.xlane.f32.xlu0 %v3288
          %v3322 = vpop.xlane.xlu0 %3321
          %3323 = vadd.xlane.f32.xlu0 %v3289
          %v3324 = vpop.xlane.xlu0 %3323
          %3325 = vadd.xlane.f32.xlu0 %v3290
          %v3326 = vpop.xlane.xlu0 %3325
          %3327 = vadd.xlane.f32.xlu0 %v3291
          %v3328 = vpop.xlane.xlu0 %3327
          %3329 = vadd.xlane.f32.xlu0 %v3292
          %v3330 = vpop.xlane.xlu0 %3329
          %3331 = vadd.xlane.f32.xlu0 %v3293
          %v3332 = vpop.xlane.xlu0 %3331
          %3333 = vadd.xlane.f32.xlu0 %v3294
          %v3334 = vpop.xlane.xlu0 %3333
          %3335 = vadd.xlane.f32.xlu0 %v3295
          %v3336 = vpop.xlane.xlu0 %3335
          %3337 = vadd.xlane.f32.xlu0 %v3296
          %v3338 = vpop.xlane.xlu0 %3337
          %3339 = vadd.xlane.f32.xlu0 %v3297
          %v3340 = vpop.xlane.xlu0 %3339
          %3341 = vadd.xlane.f32.xlu0 %v3298
          %v3342 = vpop.xlane.xlu0 %3341
          %3343 = vadd.xlane.f32.xlu0 %v3299
          %v3344 = vpop.xlane.xlu0 %3343
          %3345 = vadd.xlane.f32.xlu0 %v3300
          %v3346 = vpop.xlane.xlu0 %3345
          %3347 = vadd.xlane.f32.xlu0 %v3301
          %v3348 = vpop.xlane.xlu0 %3347
          %3349 = vadd.xlane.f32.xlu0 %v3302
          %v3350 = vpop.xlane.xlu0 %3349
          %3351 = vadd.xlane.f32.xlu0 %v3303
          %v3352 = vpop.xlane.xlu0 %3351
          %3353 = vadd.xlane.f32.xlu0 %v3304
          %v3354 = vpop.xlane.xlu0 %3353
          %3355 = vadd.xlane.f32.xlu0 %v3305
          %v3356 = vpop.xlane.xlu0 %3355
          %3357 = vadd.xlane.f32.xlu0 %v3306
          %v3358 = vpop.xlane.xlu0 %3357
          %3359 = vadd.xlane.f32.xlu0 %v3307
          %v3360 = vpop.xlane.xlu0 %3359
          %3361 = vadd.xlane.f32.xlu0 %v3308
          %v3362 = vpop.xlane.xlu0 %3361
          %3363 = vadd.xlane.f32.xlu0 %v3309
          %v3364 = vpop.xlane.xlu0 %3363
          %3365 = vadd.xlane.f32.xlu0 %v3310
          %v3366 = vpop.xlane.xlu0 %3365
          %v3367 = vadd.f32 %v3312, 0.0001
          %v3368 = vadd.f32 %v3314, 0.0001
          %v3369 = vadd.f32 %v3316, 0.0001
          %v3370 = vadd.f32 %v3318, 0.0001
          %v3371 = vadd.f32 %v3320, 0.0001
          %v3372 = vadd.f32 %v3322, 0.0001
          %v3373 = vadd.f32 %v3324, 0.0001
          %v3374 = vadd.f32 %v3326, 0.0001
          %v3375 = vadd.f32 %v3328, 0.0001
          %v3376 = vadd.f32 %v3330, 0.0001
          %v3377 = vadd.f32 %v3332, 0.0001
          %v3378 = vadd.f32 %v3334, 0.0001
          %v3379 = vadd.f32 %v3336, 0.0001
          %v3380 = vadd.f32 %v3338, 0.0001
          %v3381 = vadd.f32 %v3340, 0.0001
          %v3382 = vadd.f32 %v3342, 0.0001
          %v3383 = vadd.f32 %v3344, 0.0001
          %v3384 = vadd.f32 %v3346, 0.0001
          %v3385 = vadd.f32 %v3348, 0.0001
          %v3386 = vadd.f32 %v3350, 0.0001
          %v3387 = vadd.f32 %v3352, 0.0001
          %v3388 = vadd.f32 %v3354, 0.0001
          %v3389 = vadd.f32 %v3356, 0.0001
          %v3390 = vadd.f32 %v3358, 0.0001
          %v3391 = vadd.f32 %v3360, 0.0001
          %v3392 = vadd.f32 %v3362, 0.0001
          %v3393 = vadd.f32 %v3364, 0.0001
          %v3394 = vadd.f32 %v3366, 0.0001
          %v3395 = vmul.f32 %v3367, %v3367
          %v3396 = vmul.f32 %v3368, %v3368
          %v3397 = vmul.f32 %v3369, %v3369
          %v3398 = vmul.f32 %v3370, %v3370
          %v3399 = vmul.f32 %v3371, %v3371
          %v3400 = vmul.f32 %v3372, %v3372
          %v3401 = vmul.f32 %v3373, %v3373
          %v3402 = vmul.f32 %v3374, %v3374
          %v3403 = vmul.f32 %v3375, %v3375
          %v3404 = vmul.f32 %v3376, %v3376
          %v3405 = vmul.f32 %v3377, %v3377
          %v3406 = vmul.f32 %v3378, %v3378
          %v3407 = vmul.f32 %v3379, %v3379
          %v3408 = vmul.f32 %v3380, %v3380
          %v3409 = vmul.f32 %v3381, %v3381
          %v3410 = vmul.f32 %v3382, %v3382
          %v3411 = vmul.f32 %v3383, %v3383
          %v3412 = vmul.f32 %v3384, %v3384
          %v3413 = vmul.f32 %v3385, %v3385
          %v3414 = vmul.f32 %v3386, %v3386
          %v3415 = vmul.f32 %v3387, %v3387
          %v3416 = vmul.f32 %v3388, %v3388
          %v3417 = vmul.f32 %v3389, %v3389
          %v3418 = vmul.f32 %v3390, %v3390
          %v3419 = vmul.f32 %v3391, %v3391
          %v3420 = vmul.f32 %v3392, %v3392
          %v3421 = vmul.f32 %v3393, %v3393
          %v3422 = vmul.f32 %v3394, %v3394
          %v3451 = vlaneseq
          %v3452 = vand.u32 %v3451, 127
          %v3453 = vperm.slane %v3395, %v3452
          %v3454 = vadd.s32 %v3452, 4294967288
          %v3455 = vperm.slane %v3396, %v3454
          %vm3456 = vcmask 130112
          %v3457 = vsel %vm3456, %v3455, %v3453
          %v3458 = vadd.s32 %v3452, 4294967280
          %v3459 = vperm.slane %v3397, %v3458
          %vm3460 = vcmask 195712
          %v3461 = vsel %vm3460, %v3459, %v3457
          %v3462 = vadd.s32 %v3452, 4294967272
          %v3463 = vperm.slane %v3398, %v3462
          %vm3464 = vcmask 261312
          %v3465 = vsel %vm3464, %v3463, %v3461
          %v3466 = vperm.slane %v3399, %v3452
          %v3467 = vperm.slane %v3400, %v3454
          %v3468 = vsel %vm3456, %v3467, %v3466
          %v3469 = vperm.slane %v3401, %v3458
          %v3470 = vsel %vm3460, %v3469, %v3468
          %v3471 = vperm.slane %v3402, %v3462
          %v3472 = vsel %vm3464, %v3471, %v3470
          %v3473 = vperm.slane %v3403, %v3452
          %v3474 = vperm.slane %v3404, %v3454
          %v3475 = vsel %vm3456, %v3474, %v3473
          %v3476 = vperm.slane %v3405, %v3458
          %v3477 = vsel %vm3460, %v3476, %v3475
          %v3478 = vperm.slane %v3406, %v3462
          %v3479 = vsel %vm3464, %v3478, %v3477
          %v3480 = vperm.slane %v3407, %v3452
          %v3481 = vperm.slane %v3408, %v3454
          %v3482 = vsel %vm3456, %v3481, %v3480
          %v3483 = vperm.slane %v3409, %v3458
          %v3484 = vsel %vm3460, %v3483, %v3482
          %v3485 = vperm.slane %v3410, %v3462
          %v3486 = vsel %vm3464, %v3485, %v3484
          %v3487 = vperm.slane %v3411, %v3452
          %v3488 = vperm.slane %v3412, %v3454
          %v3489 = vsel %vm3456, %v3488, %v3487
          %v3490 = vperm.slane %v3413, %v3458
          %v3491 = vsel %vm3460, %v3490, %v3489
          %v3492 = vperm.slane %v3414, %v3462
          %v3493 = vsel %vm3464, %v3492, %v3491
          %v3494 = vperm.slane %v3415, %v3452
          %v3495 = vperm.slane %v3416, %v3454
          %v3496 = vsel %vm3456, %v3495, %v3494
          %v3497 = vperm.slane %v3417, %v3458
          %v3498 = vsel %vm3460, %v3497, %v3496
          %v3499 = vperm.slane %v3418, %v3462
          %v3500 = vsel %vm3464, %v3499, %v3498
          %v3501 = vperm.slane %v3419, %v3452
          %v3502 = vperm.slane %v3420, %v3454
          %v3503 = vsel %vm3456, %v3502, %v3501
          %v3504 = vperm.slane %v3421, %v3458
          %v3505 = vsel %vm3460, %v3504, %v3503
          %v3506 = vperm.slane %v3422, %v3462
          %v3507 = vsel %vm3464, %v3506, %v3505
          %vm3508 = vcmask 1041409
          %v3509 = vsel %vm3508, %v3472, %v3465
          %vm3510 = vcmask 1042434
          %v3511 = vsel %vm3510, %v3479, %v3509
          %vm3512 = vcmask 1043459
          %v3513 = vsel %vm3512, %v3486, %v3511
          %vm3514 = vcmask 1044484
          %v3515 = vsel %vm3514, %v3493, %v3513
          %vm3516 = vcmask 1045509
          %v3517 = vsel %vm3516, %v3500, %v3515
          %vm3518 = vcmask 1046534
          %v3519 = vsel %vm3518, %v3507, %v3517
          %vm3520 = vcmask 261120
          %v3521 = vsel %vm3520, %v3519, 0
          %3523 = vmatpush.msra.mxu0 0.0
          %3524 = vmatpush.msra.mxu0 0.0
          %3525 = vmatpush.msra.mxu0 0.0
          %3526 = vmatpush.msra.mxu0 0.0
          %3527 = vmatpush.msra.mxu0 0.0
          %3528 = vmatpush.msra.mxu0 0.0
          %3529 = vmatpush.msra.mxu0 0.0
          %3530 = vmatpush.msra.mxu0 0.0
          %3531 = vmatpush.msra.mxu0 0.0
          %3532 = vmatpush.msra.mxu0 0.0
          %3533 = vmatpush.msra.mxu0 0.0
          %3534 = vmatpush.msra.mxu0 0.0
          %3535 = vmatpush.msra.mxu0 %v2852
          %3536 = vmatpush.msra.mxu0 %v2851
          %3537 = vmatpush.msra.mxu0 %v2850
          %3538 = vmatpush.msra.mxu0 %v2849
          %3539 = vmatmul.f32.gmra.mxu0 %v3521
          %v3540 = vpop.f32.mrf.mxu0
          %v3541 = vadd.f32 0.0, %v3540
          %3542 = vdwg.mxu0
          %v3543 = vadd.f32 %v3541, 1.0
          %v3544 = vrcp.pop %v3543
          %v3545 = vmul.f32 %v3541, %v3544
          %v3574 = vperm.slane %v3367, %v3452
          %v3575 = vperm.slane %v3368, %v3454
          %v3576 = vsel %vm3456, %v3575, %v3574
          %v3577 = vperm.slane %v3369, %v3458
          %v3578 = vsel %vm3460, %v3577, %v3576
          %v3579 = vperm.slane %v3370, %v3462
          %v3580 = vsel %vm3464, %v3579, %v3578
          %v3581 = vperm.slane %v3371, %v3452
          %v3582 = vperm.slane %v3372, %v3454
          %v3583 = vsel %vm3456, %v3582, %v3581
          %v3584 = vperm.slane %v3373, %v3458
          %v3585 = vsel %vm3460, %v3584, %v3583
          %v3586 = vperm.slane %v3374, %v3462
          %v3587 = vsel %vm3464, %v3586, %v3585
          %v3588 = vperm.slane %v3375, %v3452
          %v3589 = vperm.slane %v3376, %v3454
          %v3590 = vsel %vm3456, %v3589, %v3588
          %v3591 = vperm.slane %v3377, %v3458
          %v3592 = vsel %vm3460, %v3591, %v3590
          %v3593 = vperm.slane %v3378, %v3462
          %v3594 = vsel %vm3464, %v3593, %v3592
          %v3595 = vperm.slane %v3379, %v3452
          %v3596 = vperm.slane %v3380, %v3454
          %v3597 = vsel %vm3456, %v3596, %v3595
          %v3598 = vperm.slane %v3381, %v3458
          %v3599 = vsel %vm3460, %v3598, %v3597
          %v3600 = vperm.slane %v3382, %v3462
          %v3601 = vsel %vm3464, %v3600, %v3599
          %v3602 = vperm.slane %v3383, %v3452
          %v3603 = vperm.slane %v3384, %v3454
          %v3604 = vsel %vm3456, %v3603, %v3602
          %v3605 = vperm.slane %v3385, %v3458
          %v3606 = vsel %vm3460, %v3605, %v3604
          %v3607 = vperm.slane %v3386, %v3462
          %v3608 = vsel %vm3464, %v3607, %v3606
          %v3609 = vperm.slane %v3387, %v3452
          %v3610 = vperm.slane %v3388, %v3454
          %v3611 = vsel %vm3456, %v3610, %v3609
          %v3612 = vperm.slane %v3389, %v3458
          %v3613 = vsel %vm3460, %v3612, %v3611
          %v3614 = vperm.slane %v3390, %v3462
          %v3615 = vsel %vm3464, %v3614, %v3613
          %v3616 = vperm.slane %v3391, %v3452
          %v3617 = vperm.slane %v3392, %v3454
          %v3618 = vsel %vm3456, %v3617, %v3616
          %v3619 = vperm.slane %v3393, %v3458
          %v3620 = vsel %vm3460, %v3619, %v3618
          %v3621 = vperm.slane %v3394, %v3462
          %v3622 = vsel %vm3464, %v3621, %v3620
          %v3623 = vsel %vm3508, %v3587, %v3580
          %v3624 = vsel %vm3510, %v3594, %v3623
          %v3625 = vsel %vm3512, %v3601, %v3624
          %v3626 = vsel %vm3514, %v3608, %v3625
          %v3627 = vsel %vm3516, %v3615, %v3626
          %v3628 = vsel %vm3518, %v3622, %v3627
          %v3630 = vmul.f32 %v3545, %v3628
          %v3631 = vadd.f32 %v3541, 1e-12
          %v3632 = vrsqrt.pop %v3631
          %v3633 = vmul.f32 %v3632, %v3631
          %v3634 = vmul.f32 %v3633, %v3632
          %v3635 = vmul.f32 0.5, %v3634
          %v3636 = vsub.f32 1.5, %v3635
          %v3637 = vmul.f32 %v3632, %v3636
          %vm3638 = vweird.f32 %v3631
          %vm3639 = vweird.f32 %v3632
          %vm3640 = vmor %vm3638, %vm3639
          %v3641 = vsel %vm3640, %v3632, %v3637
          %v3642 = vmul.f32 %v3630, %v3641
          %s3643 = scalar_lea.vmem %s369, %s2861
          %vm3644 = vcmask 260096
          %3645 = vst.msk [vmem:[%s3643] sm:$0x7f] %vm3644, %v3642
          %v3646 = vlaneseq
          %v3647 = vshrl.u32 %v3646, 7
          %s3648 = smul.u32 %s2854, 7
          %v3649 = vstv %s3648
          %v3650 = vadd.s32 %v3649, %v3647
          %v3651 = vmul.u32 %v3650, 32
          %v3652 = vadd.s32 %v3651, %v3452
          %v3653 = vmul.f32 %v3642, %v3642
          %vm3654 = vcmp.lt.s32.totalorder %v3652, 784
          %v3655 = vsel %vm3654, %v3653, 0.0
          %v3656 = vsel %vm3644, %v3655, 0.0
          %3657 = vadd.xlane.f32.xlu0 %v3656
          %v3658 = vpop.xlane.xlu0 %3657
          %v3659 = vrot.slane %v3658, 4
          %v3660 = vadd.f32 %v3658, %v3659
          %v3661 = vrot.slane %v3660, 2
          %v3662 = vadd.f32 %v3660, %v3661
          %v3663 = vrot.slane %v3662, 1
          %v3664 = vadd.f32 %v3662, %v3663
          %s3665 = vtos %v3664
          %s3666 = sadd.f32 %s2859, %s3665
          %vm3667 = vcmp.ge.s32.totalorder %v3652, 784
          %v3668 = vsel %vm3667, %v3653, 0.0
          %v3669 = vsel %vm3644, %v3668, 0.0
          %3670 = vadd.xlane.f32.xlu0 %v3669
          %v3671 = vpop.xlane.xlu0 %3670
          %v3672 = vrot.slane %v3671, 4
          %v3673 = vadd.f32 %v3671, %v3672
          %v3674 = vrot.slane %v3673, 2
          %v3675 = vadd.f32 %v3673, %v3674
          %v3676 = vrot.slane %v3675, 1
          %v3677 = vadd.f32 %v3675, %v3676
          %s3678 = vtos %v3677
          %s3679 = sadd.f32 %s2860, %s3678
        $region61: #{final_capsnet_forward.1} parent=55 // loop_footer
          %s2858 = sadd.s32 1, %s2854
        $region62: #{final_capsnet_forward.1} parent=55 // loop_footer_branch
          %2853 = sbr.rel target = $region58
        $region63: #{final_capsnet_forward.1} parent=55 // loop_exit
          _
        %v3680 = vlaneseq
        %v3681 = vand.u32 %v3680, 127
        %vm3682 = vcmp.eq.s32.totalorder %v3681, 0
        %v3683 = vstv %s2859
        %v3684 = vstv %s2860
        %v3685 = vsel %vm3682, %v3683, %v3684
        %v3686 = vadd.f32 %v3685, 1e-10
        %v3687 = vrsqrt.pop %v3686
        %v3688 = vmul.f32 %v3687, %v3686
        %v3689 = vmul.f32 %v3688, %v3687
        %v3690 = vmul.f32 0.5, %v3689
        %v3691 = vsub.f32 1.5, %v3690
        %v3692 = vmul.f32 %v3687, %v3691
        %v3693 = vmul.f32 %v3686, %v3692
        %vm3694 = vcmp.eq.f32.partialorder %v3686, inf
        %v3695 = vsel %vm3694, %v3686, %v3693
        %vm3696 = vcmp.eq.f32.partialorder %v3686, 0.0
        %v3697 = vand.u32 %v3686, 2147483648
        %v3698 = vsel %vm3696, %v3697, %v3695
        %vm3699 = vcmask 8192
        %3700 = vst.msk [vmem:[%s359] sm:$0x1] %vm3699, %v3698
        %p3701 = scmp.lt.s32.totalorder %s25, 1
        %s3702 = scalar_select %p3701, %s25, 1
        %s3703 = smul.addr %s3702, 7
        %s3704 = smul.addr %s3703, 8
        %s3705 = scalar_lea.vmem %s9, %s3704
        %s3706 = sand.u32 %s253, 1
        %s3707 = scalar_lea.sflag [#allocation5], %s3706
        %s3708 = sand.u32 %s253, 1
        %s3709 = scalar_lea.vmem [#allocation4], %s3708
        // Predicated region
        $region64: #{final_capsnet_forward.1} parent=55 // pred_check
          %p3710 = pneg %p237
        $region65: #{final_capsnet_forward.1} parent=55 // pred_check_branch
          %3712 = sbr.rel (%p3710) target = $region67
        $region66: #{final_capsnet_forward.1} parent=55 // pred_region
          _
        $region67: #{final_capsnet_forward.1} parent=55 // pred_fallthru
          _
        // Predicated region
        $region68: #{final_capsnet_forward.1} parent=55 // pred_check
          %p3713 = pneg %p263
        $region69: #{final_capsnet_forward.1} parent=55 // pred_check_branch
          %3715 = sbr.rel (%p3713) target = $region71
        $region70: #{final_capsnet_forward.1} parent=55 // pred_region
          %3717 = vsyncadd %s3707, 0
          %s3718 = scalar_lea.hbm %s10, %s25
          %s3720 = sshll.u32 %s3709, 4
          %s3721 = int_to_ptr.vmem [resolvable:$true] %s3720
          %s3722 = sshll.u32 %s3718, 4
          %s3723 = int_to_ptr.hbm [resolvable:$true] %s3722
          %3725 = dma.vmem_to_hbm [thread:$0]  %s3721, 16, %s3723, %s3707
        $region71: #{final_capsnet_forward.1} parent=55 // pred_fallthru
          _
      $region56: #{final_capsnet_forward.1} parent=5 // pred_fallthru
        _
      %p3726 = scmp.le.s32.totalorder 2, %s20
      // Predicated region
      $region72: #{final_capsnet_forward.1} parent=5 // pred_check
        %p3727 = pneg %p3726
      $region73: #{final_capsnet_forward.1} parent=5 // pred_check_branch
        %3729 = sbr.rel (%p3727) target = $region75
      $region74: #{final_capsnet_forward.1} parent=5 // pred_region
        %s3730 = ssub.s32 %s20, 2
        // Predicated region
        $region76: #{final_capsnet_forward.1} parent=74 // pred_check
          %p3731 = pneg %p243
        $region77: #{final_capsnet_forward.1} parent=74 // pred_check_branch
          %3733 = sbr.rel (%p3731) target = $region79
        $region78: #{final_capsnet_forward.1} parent=74 // pred_region
          %p3734 = scmp.lt.s32.totalorder %s26, 1
          %s3735 = scalar_select %p3734, %s26, 1
          %s3736 = smul.addr %s3735, 7
          %s3737 = smul.addr %s3736, 8
          %s3738 = scalar_lea.vmem %s9, %s3737
        $region79: #{final_capsnet_forward.1} parent=74 // pred_fallthru
          _
        // Predicated region
        $region80: #{final_capsnet_forward.1} parent=74 // pred_check
          %p3739 = pneg %p269
        $region81: #{final_capsnet_forward.1} parent=74 // pred_check_branch
          %3741 = sbr.rel (%p3739) target = $region83
        $region82: #{final_capsnet_forward.1} parent=74 // pred_region
          %s3742 = sand.u32 %s254, 1
          %s3743 = scalar_lea.sflag [#allocation5], %s3742
          %s3744 = sand.u32 %s254, 1
          %s3745 = scalar_lea.vmem [#allocation4], %s3744
          %3747 = dma.done %s3743, 16
        $region83: #{final_capsnet_forward.1} parent=74 // pred_fallthru
          _
      $region75: #{final_capsnet_forward.1} parent=5 // pred_fallthru
        _
    $region6: #{final_capsnet_forward.1} parent=1 // loop_footer
      %s24 = sadd.s32 1, %s20
    $region7: #{final_capsnet_forward.1} parent=1 // loop_footer_branch
      %19 = sbr.rel target = $region3
    $region8: #{final_capsnet_forward.1} parent=1 // loop_exit
      _
    %3748 = vsyncpa [#allocation5], 1
    %s3749 = scalar_lea.sflag [#allocation5], 1
    %3750 = vsyncpa %s3749, 1

</llo_original>
